<compile_context>
chip_gen: v7x
topology: tpu7x:2x2x1
jax: 0.10.0
libtpu: 0.0.40
codegen_flags: <defaults>
</compile_context>

<pallas_src>
import functools

import numpy as np
import jax
import jax.numpy as jnp
from jax.experimental import pallas as pl
from jax.experimental.pallas import tpu as pltpu


def _stage_kernel(H, W, xs_ref, xb_ref, u_ref, wk9_ref, scale_ref, shift_ref,
                  w1_ref, b1_ref, w2_ref, b2_ref, o_ref):
    """One aggregation stage, all in (H*W, C) layout:
         up  = U @ xs                       (bilinear x2, align_corners=True)
         m   = xb * up                      (torch.mul gate)
         y   = BN(conv3x3(m, pad=1))        (im2col K=9C matmul + folded BN)
         out = y + conv1x1(relu(conv1x1(y)))  (shared residual bottleneck)
    """
    f32 = jnp.float32
    bf16 = jnp.bfloat16
    HW, C = xb_ref.shape

    # ---- bilinear upsample: single MXU matmul with combined spatial matrix ----
    up = jnp.dot(u_ref[...], xs_ref[...].astype(bf16),
                 preferred_element_type=f32)                     # (HW, C) f32

    # ---- elementwise gate (f32, VPU) ----
    m = xb_ref[...] * up                                         # (HW, C) f32

    # ---- 3x3 conv (padding=1, no bias) as one im2col matmul, K = 9*C ----
    # Shifted windows built from static row slices + boundary masks; no scratch.
    col_w = jax.lax.broadcasted_iota(jnp.int32, (HW, C), 0) % W
    mask_l = col_w >= 1          # destination column valid for dx = -1
    mask_r = col_w <= W - 2      # destination column valid for dx = +1

    def shift_rows(x, s):
        # tap[p] = x[p + s], zero-filled outside [0, HW)
        if s == 0:
            return x
        z = jnp.zeros((abs(s), C), dtype=x.dtype)
        if s > 0:
            return jnp.concatenate([x[s:], z], axis=0)
        return jnp.concatenate([z, x[:s]], axis=0)

    taps = []
    for dy in (-1, 0, 1):
        for dx in (-1, 0, 1):
            t = shift_rows(m, dy * W + dx)
            if dx == -1:
                t = jnp.where(mask_l, t, 0.0)
            elif dx == 1:
                t = jnp.where(mask_r, t, 0.0)
            taps.append(t.astype(bf16))
    im2col = jnp.concatenate(taps, axis=1)                       # (HW, 9C) bf16

    acc = jnp.dot(im2col, wk9_ref[...], preferred_element_type=f32)  # (HW, C)

    # ---- batchnorm folded to per-channel scale/shift (f32, VPU) ----
    y = acc * scale_ref[...] + shift_ref[...]

    # ---- residual 1x1 conv -> ReLU -> 1x1 conv (MXU bf16, f32 accum) ----
    h = jnp.dot(y.astype(bf16), w1_ref[...], preferred_element_type=f32) + b1_ref[...]
    h = jnp.maximum(h, 0.0)
    y = y + jnp.dot(h.astype(bf16), w2_ref[...], preferred_element_type=f32) + b2_ref[...]

    o_ref[...] = y.astype(o_ref.dtype)


def aggregation_stage(xs_flat, xb_flat, u, wk9, scale, shift, w1, b1, w2, b2, H, W):
    """Run one fused stage over the batch via a Pallas grid (parallel over N)."""
    N, HW, C = xb_flat.shape
    HsWs = xs_flat.shape[1]

    def full(shape):
        return pl.BlockSpec(shape, lambda n: (0,) * len(shape))

    grid_spec = pltpu.PrefetchScalarGridSpec(
        num_scalar_prefetch=0,
        grid=(N,),
        in_specs=[
            pl.BlockSpec((pl.Squeezed(), HsWs, C), lambda n: (n, 0, 0)),
            pl.BlockSpec((pl.Squeezed(), HW, C), lambda n: (n, 0, 0)),
            full(u.shape),      # combined spatial interpolation matrix (HW, HsWs) bf16
            full(wk9.shape),    # 3x3 conv weights as (9*C, C) bf16
            full(scale.shape),  # folded BN scale (1, C) f32
            full(shift.shape),  # folded BN shift (1, C) f32
            full(w1.shape),     # 1x1 conv #1 (C, C) bf16
            full(b1.shape),     # bias #1 (1, C) f32
            full(w2.shape),     # 1x1 conv #2 (C, C) bf16
            full(b2.shape),     # bias #2 (1, C) f32
        ],
        out_specs=pl.BlockSpec((pl.Squeezed(), HW, C), lambda n: (n, 0, 0)),
        scratch_shapes=[],
    )
    return pl.pallas_call(
        functools.partial(_stage_kernel, H, W),
        out_shape=jax.ShapeDtypeStruct((N, HW, C), jnp.float32),
        grid_spec=grid_spec,
        compiler_params=pltpu.CompilerParams(dimension_semantics=("parallel",)),
    )(xs_flat, xb_flat, u, wk9, scale, shift, w1, b1, w2, b2)


def bilinear_matrix(n_in, n_out):
    """1-D bilinear interpolation matrix of shape (n_out, n_in), align_corners=True."""
    A = np.zeros((n_out, n_in), dtype=np.float32)
    if n_in == 1:
        A[:, 0] = 1.0
        return A
    for i in range(n_out):
        src = i * (n_in - 1) / (n_out - 1)
        lo = int(np.floor(src))
        hi = min(lo + 1, n_in - 1)
        frac = src - lo
        A[i, lo] += 1.0 - frac
        A[i, hi] += frac
    return A


@jax.jit
def aggregation_mul_forward(x2, x3, x4, wk34, scale34, shift34,
                            wk234, scale234, shift234, w1, b1, w2, b2):
    # x2: (N, H, W, C); x3: (N, H/2, W/2, C); x4: (N, H/4, W/4, C)   (NHWC)
    N, H, W, C = x2.shape
    H3, W3 = x3.shape[1], x3.shape[2]
    H4, W4 = x4.shape[1], x4.shape[2]
    bf16 = jnp.bfloat16

    # Combined spatial interpolation matrices (no per-channel kron inflation).
    u1 = jnp.asarray(np.kron(bilinear_matrix(H4, H3), bilinear_matrix(W4, W3)), bf16)
    u2 = jnp.asarray(np.kron(bilinear_matrix(H3, H), bilinear_matrix(W3, W)), bf16)

    # 3x3 conv weights (kh, kw, Cin, Cout) -> im2col layout (9*Cin, Cout), bf16 for MXU.
    wk9_1 = wk34.reshape(9 * C, C).astype(bf16)
    wk9_2 = wk234.reshape(9 * C, C).astype(bf16)
    w1b = w1.astype(bf16)
    w2b = w2.astype(bf16)

    # Flat (pixels, channels) activations.
    x4f = x4.reshape(N, H4 * W4, C)
    x3f = x3.reshape(N, H3 * W3, C)
    x2f = x2.reshape(N, H * W, C)

    # stage 1: x3_4 = BN(conv3x3(x3 * up(x4))); x3_4 += conv(x3_4)
    x3_4 = aggregation_stage(x4f, x3f, u1, wk9_1, scale34, shift34,
                             w1b, b1, w2b, b2, H3, W3)

    # stage 2: x2_34 = BN(conv3x3(x2 * up(x3_4))); x2_34 += conv(x2_34)
    x2_34 = aggregation_stage(x3_4, x2f, u2, wk9_2, scale234, shift234,
                              w1b, b1, w2b, b2, H, W)
    return x2_34.reshape(N, H, W, C)


if __name__ == "__main__":
    key = jax.random.PRNGKey(0)
    N, C = 2, 32          # channel=32 matches the module default
    H = W = 16            # x2 is the finest resolution
    ks = jax.random.split(key, 11)

    x2 = jax.random.normal(ks[0], (N, H, W, C), jnp.float32)
    x3 = jax.random.normal(ks[1], (N, H // 2, W // 2, C), jnp.float32)
    x4 = jax.random.normal(ks[2], (N, H // 4, W // 4, C), jnp.float32)

    # 3x3 conv weights for mul3_4 / mul2_34, layout (kh, kw, Cin, Cout)
    wk34 = 0.1 * jax.random.normal(ks[3], (3, 3, C, C), jnp.float32)
    wk234 = 0.1 * jax.random.normal(ks[4], (3, 3, C, C), jnp.float32)

    def bn_fold(k):
        kg, kb, km, kv = jax.random.split(k, 4)
        gamma = 1.0 + 0.1 * jax.random.normal(kg, (C,), jnp.float32)
        beta = 0.1 * jax.random.normal(kb, (C,), jnp.float32)
        mean = 0.1 * jax.random.normal(km, (C,), jnp.float32)
        var = 1.0 + 0.1 * jnp.abs(jax.random.normal(kv, (C,), jnp.float32))
        scale = gamma * jax.lax.rsqrt(var + 1e-5)
        shift = beta - mean * scale
        return scale.reshape(1, C), shift.reshape(1, C)

    scale34, shift34 = bn_fold(ks[5])
    scale234, shift234 = bn_fold(ks[6])

    # shared self.conv bottleneck: 1x1 conv -> ReLU -> 1x1 conv (same weights both stages)
    w1 = 0.1 * jax.random.normal(ks[7], (C, C), jnp.float32)
    b1 = 0.1 * jax.random.normal(ks[8], (1, C), jnp.float32)
    w2 = 0.1 * jax.random.normal(ks[9], (C, C), jnp.float32)
    b2 = 0.1 * jax.random.normal(ks[10], (1, C), jnp.float32)

    out = aggregation_mul_forward(x2, x3, x4, wk34, scale34, shift34,
                                  wk234, scale234, shift234, w1, b1, w2, b2)
    out = jax.block_until_ready(out)
    assert out.shape == (N, H, W, C), out.shape
    assert bool(jnp.all(jnp.isfinite(out)))
    print("KERNEL_OK")
</pallas_src>

<mosaic_0001>
module attributes {stable_mosaic.version = 11 : i64} {
  func.func @_stage_kernel(%arg0: i32, %arg1: memref<1x16x32xf32, #tpu.memory_space<vmem>>, %arg2: memref<1x64x32xf32, #tpu.memory_space<vmem>>, %arg3: memref<64x16xbf16, #tpu.memory_space<vmem>>, %arg4: memref<288x32xbf16, #tpu.memory_space<vmem>>, %arg5: memref<1x32xf32, #tpu.memory_space<vmem>>, %arg6: memref<1x32xf32, #tpu.memory_space<vmem>>, %arg7: memref<32x32xbf16, #tpu.memory_space<vmem>>, %arg8: memref<1x32xf32, #tpu.memory_space<vmem>>, %arg9: memref<32x32xbf16, #tpu.memory_space<vmem>>, %arg10: memref<1x32xf32, #tpu.memory_space<vmem>>, %arg11: memref<1x64x32xf32, #tpu.memory_space<vmem>>) attributes {dimension_semantics = [#tpu.dimension_semantics<parallel>], iteration_bounds = array<i64: 2>, scalar_prefetch = 0 : i64, scratch_operands = 0 : i64, tpu.core_type = #tpu.core_type<tc>, window_params = [{transform_indices = @transform_0, window_bounds = array<i64: 1, 16, 32>}, {transform_indices = @transform_1, window_bounds = array<i64: 1, 64, 32>}, {pipeline_mode = #tpu.pipeline_mode<synchronous>, transform_indices = @transform_2, window_bounds = array<i64: 64, 16>}, {pipeline_mode = #tpu.pipeline_mode<synchronous>, transform_indices = @transform_3, window_bounds = array<i64: 288, 32>}, {pipeline_mode = #tpu.pipeline_mode<synchronous>, transform_indices = @transform_4, window_bounds = array<i64: 1, 32>}, {pipeline_mode = #tpu.pipeline_mode<synchronous>, transform_indices = @transform_5, window_bounds = array<i64: 1, 32>}, {pipeline_mode = #tpu.pipeline_mode<synchronous>, transform_indices = @transform_6, window_bounds = array<i64: 32, 32>}, {pipeline_mode = #tpu.pipeline_mode<synchronous>, transform_indices = @transform_7, window_bounds = array<i64: 1, 32>}, {pipeline_mode = #tpu.pipeline_mode<synchronous>, transform_indices = @transform_8, window_bounds = array<i64: 32, 32>}, {pipeline_mode = #tpu.pipeline_mode<synchronous>, transform_indices = @transform_9, window_bounds = array<i64: 1, 32>}, {transform_indices = @transform_10, window_bounds = array<i64: 1, 64, 32>}]} {
    %c0 = arith.constant 0 : index
    %c0_0 = arith.constant 0 : index
    %0 = vector.load %arg3[%c0, %c0_0] : memref<64x16xbf16, #tpu.memory_space<vmem>>, vector<64x16xbf16>
    %c0_1 = arith.constant 0 : index
    %c0_2 = arith.constant 0 : index
    %c0_3 = arith.constant 0 : index
    %1 = vector.load %arg1[%c0_1, %c0_2, %c0_3] : memref<1x16x32xf32, #tpu.memory_space<vmem>>, vector<1x16x32xf32>
    %2 = vector.shape_cast %1 : vector<1x16x32xf32> to vector<16x32xf32>
    %3 = arith.truncf %2 : vector<16x32xf32> to vector<16x32xbf16>
    %cst = arith.constant dense<0.000000e+00> : vector<64x32xf32>
    %4 = tpu.matmul %0, %3, %cst {dimension_numbers = #tpu.dot_dimension_numbers<[1], [0], [0], [1], [0, 0, 1, 1], [], []>} : vector<64x16xbf16>, vector<16x32xbf16>, vector<64x32xf32> -> vector<64x32xf32>
    %c0_4 = arith.constant 0 : index
    %c0_5 = arith.constant 0 : index
    %c0_6 = arith.constant 0 : index
    %5 = vector.load %arg2[%c0_4, %c0_5, %c0_6] : memref<1x64x32xf32, #tpu.memory_space<vmem>>, vector<1x64x32xf32>
    %6 = vector.shape_cast %5 : vector<1x64x32xf32> to vector<64x32xf32>
    %7 = arith.mulf %6, %4 : vector<64x32xf32>
    %8 = tpu.iota {dimensions = array<i32: 0>} : vector<64x32xi32>
    %c8_i32 = arith.constant 8 : i32
    %c0_i32 = arith.constant 0 : i32
    %9 = arith.cmpi eq, %c8_i32, %c0_i32 : i32
    %c1_i32 = arith.constant 1 : i32
    %10 = arith.select %9, %c1_i32, %c8_i32 : i32
    %11 = vector.broadcast %10 : i32 to vector<64x32xi32>
    %12 = arith.remsi %8, %11 : vector<64x32xi32>
    %c0_i32_7 = arith.constant 0 : i32
    %13 = vector.broadcast %c0_i32_7 : i32 to vector<64x32xi32>
    %14 = arith.cmpi ne, %12, %13 : vector<64x32xi32>
    %c0_i32_8 = arith.constant 0 : i32
    %15 = vector.broadcast %c0_i32_8 : i32 to vector<64x32xi32>
    %16 = arith.cmpi slt, %12, %15 : vector<64x32xi32>
    %c0_i32_9 = arith.constant 0 : i32
    %17 = arith.cmpi slt, %10, %c0_i32_9 : i32
    %18 = vector.broadcast %17 : i1 to vector<64x32xi1>
    %19 = vector.broadcast %18 : vector<64x32xi1> to vector<64x32xi1>
    %20 = arith.xori %16, %19 : vector<64x32xi1>
    %21 = arith.andi %20, %14 : vector<64x32xi1>
    %22 = vector.broadcast %10 : i32 to vector<64x32xi32>
    %23 = arith.addi %12, %22 : vector<64x32xi32>
    %24 = arith.select %21, %23, %12 : vector<64x32xi1>, vector<64x32xi32>
    %c1_i32_10 = arith.constant 1 : i32
    %25 = vector.broadcast %c1_i32_10 : i32 to vector<64x32xi32>
    %26 = arith.cmpi sge, %24, %25 : vector<64x32xi32>
    %c6_i32 = arith.constant 6 : i32
    %27 = vector.broadcast %c6_i32 : i32 to vector<64x32xi32>
    %28 = arith.cmpi sle, %24, %27 : vector<64x32xi32>
    %cst_11 = arith.constant 0.000000e+00 : f32
    %29 = vector.broadcast %cst_11 : f32 to vector<9x32xf32>
    %30 = vector.extract_strided_slice %7 {offsets = [0, 0], sizes = [55, 32], strides = [1, 1]} : vector<64x32xf32> to vector<55x32xf32>
    %31 = tpu.concatenate %29, %30 in 0 : vector<9x32xf32>, vector<55x32xf32> -> vector<64x32xf32>
    %cst_12 = arith.constant 0.000000e+00 : f32
    %32 = vector.broadcast %cst_12 : f32 to vector<64x32xf32>
    %33 = arith.select %26, %31, %32 : vector<64x32xi1>, vector<64x32xf32>
    %34 = arith.truncf %33 : vector<64x32xf32> to vector<64x32xbf16>
    %cst_13 = arith.constant 0.000000e+00 : f32
    %35 = vector.broadcast %cst_13 : f32 to vector<8x32xf32>
    %36 = vector.extract_strided_slice %7 {offsets = [0, 0], sizes = [56, 32], strides = [1, 1]} : vector<64x32xf32> to vector<56x32xf32>
    %37 = tpu.concatenate %35, %36 in 0 : vector<8x32xf32>, vector<56x32xf32> -> vector<64x32xf32>
    %38 = arith.truncf %37 : vector<64x32xf32> to vector<64x32xbf16>
    %cst_14 = arith.constant 0.000000e+00 : f32
    %39 = vector.broadcast %cst_14 : f32 to vector<7x32xf32>
    %40 = vector.extract_strided_slice %7 {offsets = [0, 0], sizes = [57, 32], strides = [1, 1]} : vector<64x32xf32> to vector<57x32xf32>
    %41 = tpu.concatenate %39, %40 in 0 : vector<7x32xf32>, vector<57x32xf32> -> vector<64x32xf32>
    %cst_15 = arith.constant 0.000000e+00 : f32
    %42 = vector.broadcast %cst_15 : f32 to vector<64x32xf32>
    %43 = arith.select %28, %41, %42 : vector<64x32xi1>, vector<64x32xf32>
    %44 = arith.truncf %43 : vector<64x32xf32> to vector<64x32xbf16>
    %cst_16 = arith.constant 0.000000e+00 : f32
    %45 = vector.broadcast %cst_16 : f32 to vector<1x32xf32>
    %46 = vector.extract_strided_slice %7 {offsets = [0, 0], sizes = [63, 32], strides = [1, 1]} : vector<64x32xf32> to vector<63x32xf32>
    %47 = tpu.concatenate %45, %46 in 0 : vector<1x32xf32>, vector<63x32xf32> -> vector<64x32xf32>
    %cst_17 = arith.constant 0.000000e+00 : f32
    %48 = vector.broadcast %cst_17 : f32 to vector<64x32xf32>
    %49 = arith.select %26, %47, %48 : vector<64x32xi1>, vector<64x32xf32>
    %50 = arith.truncf %49 : vector<64x32xf32> to vector<64x32xbf16>
    %51 = arith.truncf %7 : vector<64x32xf32> to vector<64x32xbf16>
    %cst_18 = arith.constant 0.000000e+00 : f32
    %52 = vector.broadcast %cst_18 : f32 to vector<1x32xf32>
    %53 = vector.extract_strided_slice %7 {offsets = [1, 0], sizes = [63, 32], strides = [1, 1]} : vector<64x32xf32> to vector<63x32xf32>
    %54 = tpu.concatenate %53, %52 in 0 : vector<63x32xf32>, vector<1x32xf32> -> vector<64x32xf32>
    %cst_19 = arith.constant 0.000000e+00 : f32
    %55 = vector.broadcast %cst_19 : f32 to vector<64x32xf32>
    %56 = arith.select %28, %54, %55 : vector<64x32xi1>, vector<64x32xf32>
    %57 = arith.truncf %56 : vector<64x32xf32> to vector<64x32xbf16>
    %cst_20 = arith.constant 0.000000e+00 : f32
    %58 = vector.broadcast %cst_20 : f32 to vector<7x32xf32>
    %59 = vector.extract_strided_slice %7 {offsets = [7, 0], sizes = [57, 32], strides = [1, 1]} : vector<64x32xf32> to vector<57x32xf32>
    %60 = tpu.concatenate %59, %58 in 0 : vector<57x32xf32>, vector<7x32xf32> -> vector<64x32xf32>
    %cst_21 = arith.constant 0.000000e+00 : f32
    %61 = vector.broadcast %cst_21 : f32 to vector<64x32xf32>
    %62 = arith.select %26, %60, %61 : vector<64x32xi1>, vector<64x32xf32>
    %63 = arith.truncf %62 : vector<64x32xf32> to vector<64x32xbf16>
    %cst_22 = arith.constant 0.000000e+00 : f32
    %64 = vector.broadcast %cst_22 : f32 to vector<8x32xf32>
    %65 = vector.extract_strided_slice %7 {offsets = [8, 0], sizes = [56, 32], strides = [1, 1]} : vector<64x32xf32> to vector<56x32xf32>
    %66 = tpu.concatenate %65, %64 in 0 : vector<56x32xf32>, vector<8x32xf32> -> vector<64x32xf32>
    %67 = arith.truncf %66 : vector<64x32xf32> to vector<64x32xbf16>
    %cst_23 = arith.constant 0.000000e+00 : f32
    %68 = vector.broadcast %cst_23 : f32 to vector<9x32xf32>
    %69 = vector.extract_strided_slice %7 {offsets = [9, 0], sizes = [55, 32], strides = [1, 1]} : vector<64x32xf32> to vector<55x32xf32>
    %70 = tpu.concatenate %69, %68 in 0 : vector<55x32xf32>, vector<9x32xf32> -> vector<64x32xf32>
    %cst_24 = arith.constant 0.000000e+00 : f32
    %71 = vector.broadcast %cst_24 : f32 to vector<64x32xf32>
    %72 = arith.select %28, %70, %71 : vector<64x32xi1>, vector<64x32xf32>
    %73 = arith.truncf %72 : vector<64x32xf32> to vector<64x32xbf16>
    %74 = tpu.concatenate %34, %38, %44, %50, %51, %57, %63, %67, %73 in 1 : vector<64x32xbf16>, vector<64x32xbf16>, vector<64x32xbf16>, vector<64x32xbf16>, vector<64x32xbf16>, vector<64x32xbf16>, vector<64x32xbf16>, vector<64x32xbf16>, vector<64x32xbf16> -> vector<64x288xbf16>
    %c0_25 = arith.constant 0 : index
    %c0_26 = arith.constant 0 : index
    %75 = vector.load %arg4[%c0_25, %c0_26] : memref<288x32xbf16, #tpu.memory_space<vmem>>, vector<288x32xbf16>
    %cst_27 = arith.constant dense<0.000000e+00> : vector<64x32xf32>
    %76 = tpu.matmul %74, %75, %cst_27 {dimension_numbers = #tpu.dot_dimension_numbers<[1], [0], [0], [1], [0, 0, 1, 1], [], []>} : vector<64x288xbf16>, vector<288x32xbf16>, vector<64x32xf32> -> vector<64x32xf32>
    %c0_28 = arith.constant 0 : index
    %c0_29 = arith.constant 0 : index
    %77 = vector.load %arg5[%c0_28, %c0_29] : memref<1x32xf32, #tpu.memory_space<vmem>>, vector<1x32xf32>
    %78 = vector.broadcast %77 : vector<1x32xf32> to vector<64x32xf32>
    %79 = arith.mulf %76, %78 : vector<64x32xf32>
    %c0_30 = arith.constant 0 : index
    %c0_31 = arith.constant 0 : index
    %80 = vector.load %arg6[%c0_30, %c0_31] : memref<1x32xf32, #tpu.memory_space<vmem>>, vector<1x32xf32>
    %81 = vector.broadcast %80 : vector<1x32xf32> to vector<64x32xf32>
    %82 = arith.addf %79, %81 : vector<64x32xf32>
    %83 = arith.truncf %82 : vector<64x32xf32> to vector<64x32xbf16>
    %c0_32 = arith.constant 0 : index
    %c0_33 = arith.constant 0 : index
    %84 = vector.load %arg7[%c0_32, %c0_33] : memref<32x32xbf16, #tpu.memory_space<vmem>>, vector<32x32xbf16>
    %cst_34 = arith.constant dense<0.000000e+00> : vector<64x32xf32>
    %85 = tpu.matmul %83, %84, %cst_34 {dimension_numbers = #tpu.dot_dimension_numbers<[1], [0], [0], [1], [0, 0, 1, 1], [], []>} : vector<64x32xbf16>, vector<32x32xbf16>, vector<64x32xf32> -> vector<64x32xf32>
    %c0_35 = arith.constant 0 : index
    %c0_36 = arith.constant 0 : index
    %86 = vector.load %arg8[%c0_35, %c0_36] : memref<1x32xf32, #tpu.memory_space<vmem>>, vector<1x32xf32>
    %87 = vector.broadcast %86 : vector<1x32xf32> to vector<64x32xf32>
    %88 = arith.addf %85, %87 : vector<64x32xf32>
    %cst_37 = arith.constant 0.000000e+00 : f32
    %89 = vector.broadcast %cst_37 : f32 to vector<64x32xf32>
    %90 = arith.maximumf %88, %89 : vector<64x32xf32>
    %91 = arith.truncf %90 : vector<64x32xf32> to vector<64x32xbf16>
    %c0_38 = arith.constant 0 : index
    %c0_39 = arith.constant 0 : index
    %92 = vector.load %arg9[%c0_38, %c0_39] : memref<32x32xbf16, #tpu.memory_space<vmem>>, vector<32x32xbf16>
    %cst_40 = arith.constant dense<0.000000e+00> : vector<64x32xf32>
    %93 = tpu.matmul %91, %92, %cst_40 {dimension_numbers = #tpu.dot_dimension_numbers<[1], [0], [0], [1], [0, 0, 1, 1], [], []>} : vector<64x32xbf16>, vector<32x32xbf16>, vector<64x32xf32> -> vector<64x32xf32>
    %94 = arith.addf %82, %93 : vector<64x32xf32>
    %c0_41 = arith.constant 0 : index
    %c0_42 = arith.constant 0 : index
    %95 = vector.load %arg10[%c0_41, %c0_42] : memref<1x32xf32, #tpu.memory_space<vmem>>, vector<1x32xf32>
    %96 = vector.broadcast %95 : vector<1x32xf32> to vector<64x32xf32>
    %97 = arith.addf %94, %96 : vector<64x32xf32>
    %c0_43 = arith.constant 0 : index
    %c0_44 = arith.constant 0 : index
    %c0_45 = arith.constant 0 : index
    %98 = vector.load %arg11[%c0_43, %c0_44, %c0_45] : memref<1x64x32xf32, #tpu.memory_space<vmem>>, vector<1x64x32xf32>
    %99 = vector.shape_cast %98 : vector<1x64x32xf32> to vector<64x32xf32>
    %100 = vector.shape_cast %97 : vector<64x32xf32> to vector<1x64x32xf32>
    tpu.vector_store %arg11[%c0_43, %c0_44, %c0_45], %100 {strides = array<i32>} : memref<1x64x32xf32, #tpu.memory_space<vmem>>, vector<1x64x32xf32>,
    return
  }
  func.func @transform_0(%arg0: i32) -> (i32, i32, i32) {
    %c0_i32 = arith.constant 0 : i32
    %c0_i32_0 = arith.constant 0 : i32
    %c0_i32_1 = arith.constant 0 : i32
    return %arg0, %c0_i32, %c0_i32_0 : i32, i32, i32
  }
  func.func @transform_1(%arg0: i32) -> (i32, i32, i32) {
    %c0_i32 = arith.constant 0 : i32
    %c0_i32_0 = arith.constant 0 : i32
    %c0_i32_1 = arith.constant 0 : i32
    return %arg0, %c0_i32, %c0_i32_0 : i32, i32, i32
  }
  func.func @transform_2(%arg0: i32) -> (i32, i32) {
    %c0_i32 = arith.constant 0 : i32
    %c0_i32_0 = arith.constant 0 : i32
    %c0_i32_1 = arith.constant 0 : i32
    return %c0_i32, %c0_i32_0 : i32, i32
  }
  func.func @transform_3(%arg0: i32) -> (i32, i32) {
    %c0_i32 = arith.constant 0 : i32
    %c0_i32_0 = arith.constant 0 : i32
    %c0_i32_1 = arith.constant 0 : i32
    return %c0_i32, %c0_i32_0 : i32, i32
  }
  func.func @transform_4(%arg0: i32) -> (i32, i32) {
    %c0_i32 = arith.constant 0 : i32
    %c0_i32_0 = arith.constant 0 : i32
    %c0_i32_1 = arith.constant 0 : i32
    return %c0_i32, %c0_i32_0 : i32, i32
  }
  func.func @transform_5(%arg0: i32) -> (i32, i32) {
    %c0_i32 = arith.constant 0 : i32
    %c0_i32_0 = arith.constant 0 : i32
    %c0_i32_1 = arith.constant 0 : i32
    return %c0_i32, %c0_i32_0 : i32, i32
  }
  func.func @transform_6(%arg0: i32) -> (i32, i32) {
    %c0_i32 = arith.constant 0 : i32
    %c0_i32_0 = arith.constant 0 : i32
    %c0_i32_1 = arith.constant 0 : i32
    return %c0_i32, %c0_i32_0 : i32, i32
  }
  func.func @transform_7(%arg0: i32) -> (i32, i32) {
    %c0_i32 = arith.constant 0 : i32
    %c0_i32_0 = arith.constant 0 : i32
    %c0_i32_1 = arith.constant 0 : i32
    return %c0_i32, %c0_i32_0 : i32, i32
  }
  func.func @transform_8(%arg0: i32) -> (i32, i32) {
    %c0_i32 = arith.constant 0 : i32
    %c0_i32_0 = arith.constant 0 : i32
    %c0_i32_1 = arith.constant 0 : i32
    return %c0_i32, %c0_i32_0 : i32, i32
  }
  func.func @transform_9(%arg0: i32) -> (i32, i32) {
    %c0_i32 = arith.constant 0 : i32
    %c0_i32_0 = arith.constant 0 : i32
    %c0_i32_1 = arith.constant 0 : i32
    return %c0_i32, %c0_i32_0 : i32, i32
  }
  func.func @transform_10(%arg0: i32) -> (i32, i32, i32) {
    %c0_i32 = arith.constant 0 : i32
    %c0_i32_0 = arith.constant 0 : i32
    %c0_i32_1 = arith.constant 0 : i32
    return %arg0, %c0_i32, %c0_i32_0 : i32, i32, i32
  }
}

module attributes {stable_mosaic.version = 11 : i64} {
  func.func @_stage_kernel(%arg0: i32, %arg1: memref<1x64x32xf32, #tpu.memory_space<vmem>>, %arg2: memref<1x256x32xf32, #tpu.memory_space<vmem>>, %arg3: memref<256x64xbf16, #tpu.memory_space<vmem>>, %arg4: memref<288x32xbf16, #tpu.memory_space<vmem>>, %arg5: memref<1x32xf32, #tpu.memory_space<vmem>>, %arg6: memref<1x32xf32, #tpu.memory_space<vmem>>, %arg7: memref<32x32xbf16, #tpu.memory_space<vmem>>, %arg8: memref<1x32xf32, #tpu.memory_space<vmem>>, %arg9: memref<32x32xbf16, #tpu.memory_space<vmem>>, %arg10: memref<1x32xf32, #tpu.memory_space<vmem>>, %arg11: memref<1x256x32xf32, #tpu.memory_space<vmem>>) attributes {dimension_semantics = [#tpu.dimension_semantics<parallel>], iteration_bounds = array<i64: 2>, scalar_prefetch = 0 : i64, scratch_operands = 0 : i64, tpu.core_type = #tpu.core_type<tc>, window_params = [{transform_indices = @transform_0, window_bounds = array<i64: 1, 64, 32>}, {transform_indices = @transform_1, window_bounds = array<i64: 1, 256, 32>}, {pipeline_mode = #tpu.pipeline_mode<synchronous>, transform_indices = @transform_2, window_bounds = array<i64: 256, 64>}, {pipeline_mode = #tpu.pipeline_mode<synchronous>, transform_indices = @transform_3, window_bounds = array<i64: 288, 32>}, {pipeline_mode = #tpu.pipeline_mode<synchronous>, transform_indices = @transform_4, window_bounds = array<i64: 1, 32>}, {pipeline_mode = #tpu.pipeline_mode<synchronous>, transform_indices = @transform_5, window_bounds = array<i64: 1, 32>}, {pipeline_mode = #tpu.pipeline_mode<synchronous>, transform_indices = @transform_6, window_bounds = array<i64: 32, 32>}, {pipeline_mode = #tpu.pipeline_mode<synchronous>, transform_indices = @transform_7, window_bounds = array<i64: 1, 32>}, {pipeline_mode = #tpu.pipeline_mode<synchronous>, transform_indices = @transform_8, window_bounds = array<i64: 32, 32>}, {pipeline_mode = #tpu.pipeline_mode<synchronous>, transform_indices = @transform_9, window_bounds = array<i64: 1, 32>}, {transform_indices = @transform_10, window_bounds = array<i64: 1, 256, 32>}]} {
    %c0 = arith.constant 0 : index
    %c0_0 = arith.constant 0 : index
    %0 = vector.load %arg3[%c0, %c0_0] : memref<256x64xbf16, #tpu.memory_space<vmem>>, vector<256x64xbf16>
    %c0_1 = arith.constant 0 : index
    %c0_2 = arith.constant 0 : index
    %c0_3 = arith.constant 0 : index
    %1 = vector.load %arg1[%c0_1, %c0_2, %c0_3] : memref<1x64x32xf32, #tpu.memory_space<vmem>>, vector<1x64x32xf32>
    %2 = vector.shape_cast %1 : vector<1x64x32xf32> to vector<64x32xf32>
    %3 = arith.truncf %2 : vector<64x32xf32> to vector<64x32xbf16>
    %cst = arith.constant dense<0.000000e+00> : vector<256x32xf32>
    %4 = tpu.matmul %0, %3, %cst {dimension_numbers = #tpu.dot_dimension_numbers<[1], [0], [0], [1], [0, 0, 1, 1], [], []>} : vector<256x64xbf16>, vector<64x32xbf16>, vector<256x32xf32> -> vector<256x32xf32>
    %c0_4 = arith.constant 0 : index
    %c0_5 = arith.constant 0 : index
    %c0_6 = arith.constant 0 : index
    %5 = vector.load %arg2[%c0_4, %c0_5, %c0_6] : memref<1x256x32xf32, #tpu.memory_space<vmem>>, vector<1x256x32xf32>
    %6 = vector.shape_cast %5 : vector<1x256x32xf32> to vector<256x32xf32>
    %7 = arith.mulf %6, %4 : vector<256x32xf32>
    %8 = tpu.iota {dimensions = array<i32: 0>} : vector<256x32xi32>
    %c16_i32 = arith.constant 16 : i32
    %c0_i32 = arith.constant 0 : i32
    %9 = arith.cmpi eq, %c16_i32, %c0_i32 : i32
    %c1_i32 = arith.constant 1 : i32
    %10 = arith.select %9, %c1_i32, %c16_i32 : i32
    %11 = vector.broadcast %10 : i32 to vector<256x32xi32>
    %12 = arith.remsi %8, %11 : vector<256x32xi32>
    %c0_i32_7 = arith.constant 0 : i32
    %13 = vector.broadcast %c0_i32_7 : i32 to vector<256x32xi32>
    %14 = arith.cmpi ne, %12, %13 : vector<256x32xi32>
    %c0_i32_8 = arith.constant 0 : i32
    %15 = vector.broadcast %c0_i32_8 : i32 to vector<256x32xi32>
    %16 = arith.cmpi slt, %12, %15 : vector<256x32xi32>
    %c0_i32_9 = arith.constant 0 : i32
    %17 = arith.cmpi slt, %10, %c0_i32_9 : i32
    %18 = vector.broadcast %17 : i1 to vector<256x32xi1>
    %19 = vector.broadcast %18 : vector<256x32xi1> to vector<256x32xi1>
    %20 = arith.xori %16, %19 : vector<256x32xi1>
    %21 = arith.andi %20, %14 : vector<256x32xi1>
    %22 = vector.broadcast %10 : i32 to vector<256x32xi32>
    %23 = arith.addi %12, %22 : vector<256x32xi32>
    %24 = arith.select %21, %23, %12 : vector<256x32xi1>, vector<256x32xi32>
    %c1_i32_10 = arith.constant 1 : i32
    %25 = vector.broadcast %c1_i32_10 : i32 to vector<256x32xi32>
    %26 = arith.cmpi sge, %24, %25 : vector<256x32xi32>
    %c14_i32 = arith.constant 14 : i32
    %27 = vector.broadcast %c14_i32 : i32 to vector<256x32xi32>
    %28 = arith.cmpi sle, %24, %27 : vector<256x32xi32>
    %cst_11 = arith.constant 0.000000e+00 : f32
    %29 = vector.broadcast %cst_11 : f32 to vector<17x32xf32>
    %30 = vector.extract_strided_slice %7 {offsets = [0, 0], sizes = [239, 32], strides = [1, 1]} : vector<256x32xf32> to vector<239x32xf32>
    %31 = tpu.concatenate %29, %30 in 0 : vector<17x32xf32>, vector<239x32xf32> -> vector<256x32xf32>
    %cst_12 = arith.constant 0.000000e+00 : f32
    %32 = vector.broadcast %cst_12 : f32 to vector<256x32xf32>
    %33 = arith.select %26, %31, %32 : vector<256x32xi1>, vector<256x32xf32>
    %34 = arith.truncf %33 : vector<256x32xf32> to vector<256x32xbf16>
    %cst_13 = arith.constant 0.000000e+00 : f32
    %35 = vector.broadcast %cst_13 : f32 to vector<16x32xf32>
    %36 = vector.extract_strided_slice %7 {offsets = [0, 0], sizes = [240, 32], strides = [1, 1]} : vector<256x32xf32> to vector<240x32xf32>
    %37 = tpu.concatenate %35, %36 in 0 : vector<16x32xf32>, vector<240x32xf32> -> vector<256x32xf32>
    %38 = arith.truncf %37 : vector<256x32xf32> to vector<256x32xbf16>
    %cst_14 = arith.constant 0.000000e+00 : f32
    %39 = vector.broadcast %cst_14 : f32 to vector<15x32xf32>
    %40 = vector.extract_strided_slice %7 {offsets = [0, 0], sizes = [241, 32], strides = [1, 1]} : vector<256x32xf32> to vector<241x32xf32>
    %41 = tpu.concatenate %39, %40 in 0 : vector<15x32xf32>, vector<241x32xf32> -> vector<256x32xf32>
    %cst_15 = arith.constant 0.000000e+00 : f32
    %42 = vector.broadcast %cst_15 : f32 to vector<256x32xf32>
    %43 = arith.select %28, %41, %42 : vector<256x32xi1>, vector<256x32xf32>
    %44 = arith.truncf %43 : vector<256x32xf32> to vector<256x32xbf16>
    %cst_16 = arith.constant 0.000000e+00 : f32
    %45 = vector.broadcast %cst_16 : f32 to vector<1x32xf32>
    %46 = vector.extract_strided_slice %7 {offsets = [0, 0], sizes = [255, 32], strides = [1, 1]} : vector<256x32xf32> to vector<255x32xf32>
    %47 = tpu.concatenate %45, %46 in 0 : vector<1x32xf32>, vector<255x32xf32> -> vector<256x32xf32>
    %cst_17 = arith.constant 0.000000e+00 : f32
    %48 = vector.broadcast %cst_17 : f32 to vector<256x32xf32>
    %49 = arith.select %26, %47, %48 : vector<256x32xi1>, vector<256x32xf32>
    %50 = arith.truncf %49 : vector<256x32xf32> to vector<256x32xbf16>
    %51 = arith.truncf %7 : vector<256x32xf32> to vector<256x32xbf16>
    %cst_18 = arith.constant 0.000000e+00 : f32
    %52 = vector.broadcast %cst_18 : f32 to vector<1x32xf32>
    %53 = vector.extract_strided_slice %7 {offsets = [1, 0], sizes = [255, 32], strides = [1, 1]} : vector<256x32xf32> to vector<255x32xf32>
    %54 = tpu.concatenate %53, %52 in 0 : vector<255x32xf32>, vector<1x32xf32> -> vector<256x32xf32>
    %cst_19 = arith.constant 0.000000e+00 : f32
    %55 = vector.broadcast %cst_19 : f32 to vector<256x32xf32>
    %56 = arith.select %28, %54, %55 : vector<256x32xi1>, vector<256x32xf32>
    %57 = arith.truncf %56 : vector<256x32xf32> to vector<256x32xbf16>
    %cst_20 = arith.constant 0.000000e+00 : f32
    %58 = vector.broadcast %cst_20 : f32 to vector<15x32xf32>
    %59 = vector.extract_strided_slice %7 {offsets = [15, 0], sizes = [241, 32], strides = [1, 1]} : vector<256x32xf32> to vector<241x32xf32>
    %60 = tpu.concatenate %59, %58 in 0 : vector<241x32xf32>, vector<15x32xf32> -> vector<256x32xf32>
    %cst_21 = arith.constant 0.000000e+00 : f32
    %61 = vector.broadcast %cst_21 : f32 to vector<256x32xf32>
    %62 = arith.select %26, %60, %61 : vector<256x32xi1>, vector<256x32xf32>
    %63 = arith.truncf %62 : vector<256x32xf32> to vector<256x32xbf16>
    %cst_22 = arith.constant 0.000000e+00 : f32
    %64 = vector.broadcast %cst_22 : f32 to vector<16x32xf32>
    %65 = vector.extract_strided_slice %7 {offsets = [16, 0], sizes = [240, 32], strides = [1, 1]} : vector<256x32xf32> to vector<240x32xf32>
    %66 = tpu.concatenate %65, %64 in 0 : vector<240x32xf32>, vector<16x32xf32> -> vector<256x32xf32>
    %67 = arith.truncf %66 : vector<256x32xf32> to vector<256x32xbf16>
    %cst_23 = arith.constant 0.000000e+00 : f32
    %68 = vector.broadcast %cst_23 : f32 to vector<17x32xf32>
    %69 = vector.extract_strided_slice %7 {offsets = [17, 0], sizes = [239, 32], strides = [1, 1]} : vector<256x32xf32> to vector<239x32xf32>
    %70 = tpu.concatenate %69, %68 in 0 : vector<239x32xf32>, vector<17x32xf32> -> vector<256x32xf32>
    %cst_24 = arith.constant 0.000000e+00 : f32
    %71 = vector.broadcast %cst_24 : f32 to vector<256x32xf32>
    %72 = arith.select %28, %70, %71 : vector<256x32xi1>, vector<256x32xf32>
    %73 = arith.truncf %72 : vector<256x32xf32> to vector<256x32xbf16>
    %74 = tpu.concatenate %34, %38, %44, %50, %51, %57, %63, %67, %73 in 1 : vector<256x32xbf16>, vector<256x32xbf16>, vector<256x32xbf16>, vector<256x32xbf16>, vector<256x32xbf16>, vector<256x32xbf16>, vector<256x32xbf16>, vector<256x32xbf16>, vector<256x32xbf16> -> vector<256x288xbf16>
    %c0_25 = arith.constant 0 : index
    %c0_26 = arith.constant 0 : index
    %75 = vector.load %arg4[%c0_25, %c0_26] : memref<288x32xbf16, #tpu.memory_space<vmem>>, vector<288x32xbf16>
    %cst_27 = arith.constant dense<0.000000e+00> : vector<256x32xf32>
    %76 = tpu.matmul %74, %75, %cst_27 {dimension_numbers = #tpu.dot_dimension_numbers<[1], [0], [0], [1], [0, 0, 1, 1], [], []>} : vector<256x288xbf16>, vector<288x32xbf16>, vector<256x32xf32> -> vector<256x32xf32>
    %c0_28 = arith.constant 0 : index
    %c0_29 = arith.constant 0 : index
    %77 = vector.load %arg5[%c0_28, %c0_29] : memref<1x32xf32, #tpu.memory_space<vmem>>, vector<1x32xf32>
    %78 = vector.broadcast %77 : vector<1x32xf32> to vector<256x32xf32>
    %79 = arith.mulf %76, %78 : vector<256x32xf32>
    %c0_30 = arith.constant 0 : index
    %c0_31 = arith.constant 0 : index
    %80 = vector.load %arg6[%c0_30, %c0_31] : memref<1x32xf32, #tpu.memory_space<vmem>>, vector<1x32xf32>
    %81 = vector.broadcast %80 : vector<1x32xf32> to vector<256x32xf32>
    %82 = arith.addf %79, %81 : vector<256x32xf32>
    %83 = arith.truncf %82 : vector<256x32xf32> to vector<256x32xbf16>
    %c0_32 = arith.constant 0 : index
    %c0_33 = arith.constant 0 : index
    %84 = vector.load %arg7[%c0_32, %c0_33] : memref<32x32xbf16, #tpu.memory_space<vmem>>, vector<32x32xbf16>
    %cst_34 = arith.constant dense<0.000000e+00> : vector<256x32xf32>
    %85 = tpu.matmul %83, %84, %cst_34 {dimension_numbers = #tpu.dot_dimension_numbers<[1], [0], [0], [1], [0, 0, 1, 1], [], []>} : vector<256x32xbf16>, vector<32x32xbf16>, vector<256x32xf32> -> vector<256x32xf32>
    %c0_35 = arith.constant 0 : index
    %c0_36 = arith.constant 0 : index
    %86 = vector.load %arg8[%c0_35, %c0_36] : memref<1x32xf32, #tpu.memory_space<vmem>>, vector<1x32xf32>
    %87 = vector.broadcast %86 : vector<1x32xf32> to vector<256x32xf32>
    %88 = arith.addf %85, %87 : vector<256x32xf32>
    %cst_37 = arith.constant 0.000000e+00 : f32
    %89 = vector.broadcast %cst_37 : f32 to vector<256x32xf32>
    %90 = arith.maximumf %88, %89 : vector<256x32xf32>
    %91 = arith.truncf %90 : vector<256x32xf32> to vector<256x32xbf16>
    %c0_38 = arith.constant 0 : index
    %c0_39 = arith.constant 0 : index
    %92 = vector.load %arg9[%c0_38, %c0_39] : memref<32x32xbf16, #tpu.memory_space<vmem>>, vector<32x32xbf16>
    %cst_40 = arith.constant dense<0.000000e+00> : vector<256x32xf32>
    %93 = tpu.matmul %91, %92, %cst_40 {dimension_numbers = #tpu.dot_dimension_numbers<[1], [0], [0], [1], [0, 0, 1, 1], [], []>} : vector<256x32xbf16>, vector<32x32xbf16>, vector<256x32xf32> -> vector<256x32xf32>
    %94 = arith.addf %82, %93 : vector<256x32xf32>
    %c0_41 = arith.constant 0 : index
    %c0_42 = arith.constant 0 : index
    %95 = vector.load %arg10[%c0_41, %c0_42] : memref<1x32xf32, #tpu.memory_space<vmem>>, vector<1x32xf32>
    %96 = vector.broadcast %95 : vector<1x32xf32> to vector<256x32xf32>
    %97 = arith.addf %94, %96 : vector<256x32xf32>
    %c0_43 = arith.constant 0 : index
    %c0_44 = arith.constant 0 : index
    %c0_45 = arith.constant 0 : index
    %98 = vector.load %arg11[%c0_43, %c0_44, %c0_45] : memref<1x256x32xf32, #tpu.memory_space<vmem>>, vector<1x256x32xf32>
    %99 = vector.shape_cast %98 : vector<1x256x32xf32> to vector<256x32xf32>
    %100 = vector.shape_cast %97 : vector<256x32xf32> to vector<1x256x32xf32>
    tpu.vector_store %arg11[%c0_43, %c0_44, %c0_45], %100 {strides = array<i32>} : memref<1x256x32xf32, #tpu.memory_space<vmem>>, vector<1x256x32xf32>,
    return
  }
  func.func @transform_0(%arg0: i32) -> (i32, i32, i32) {
    %c0_i32 = arith.constant 0 : i32
    %c0_i32_0 = arith.constant 0 : i32
    %c0_i32_1 = arith.constant 0 : i32
    return %arg0, %c0_i32, %c0_i32_0 : i32, i32, i32
  }
  func.func @transform_1(%arg0: i32) -> (i32, i32, i32) {
    %c0_i32 = arith.constant 0 : i32
    %c0_i32_0 = arith.constant 0 : i32
    %c0_i32_1 = arith.constant 0 : i32
    return %arg0, %c0_i32, %c0_i32_0 : i32, i32, i32
  }
  func.func @transform_2(%arg0: i32) -> (i32, i32) {
    %c0_i32 = arith.constant 0 : i32
    %c0_i32_0 = arith.constant 0 : i32
    %c0_i32_1 = arith.constant 0 : i32
    return %c0_i32, %c0_i32_0 : i32, i32
  }
  func.func @transform_3(%arg0: i32) -> (i32, i32) {
    %c0_i32 = arith.constant 0 : i32
    %c0_i32_0 = arith.constant 0 : i32
    %c0_i32_1 = arith.constant 0 : i32
    return %c0_i32, %c0_i32_0 : i32, i32
  }
  func.func @transform_4(%arg0: i32) -> (i32, i32) {
    %c0_i32 = arith.constant 0 : i32
    %c0_i32_0 = arith.constant 0 : i32
    %c0_i32_1 = arith.constant 0 : i32
    return %c0_i32, %c0_i32_0 : i32, i32
  }
  func.func @transform_5(%arg0: i32) -> (i32, i32) {
    %c0_i32 = arith.constant 0 : i32
    %c0_i32_0 = arith.constant 0 : i32
    %c0_i32_1 = arith.constant 0 : i32
    return %c0_i32, %c0_i32_0 : i32, i32
  }
  func.func @transform_6(%arg0: i32) -> (i32, i32) {
    %c0_i32 = arith.constant 0 : i32
    %c0_i32_0 = arith.constant 0 : i32
    %c0_i32_1 = arith.constant 0 : i32
    return %c0_i32, %c0_i32_0 : i32, i32
  }
  func.func @transform_7(%arg0: i32) -> (i32, i32) {
    %c0_i32 = arith.constant 0 : i32
    %c0_i32_0 = arith.constant 0 : i32
    %c0_i32_1 = arith.constant 0 : i32
    return %c0_i32, %c0_i32_0 : i32, i32
  }
  func.func @transform_8(%arg0: i32) -> (i32, i32) {
    %c0_i32 = arith.constant 0 : i32
    %c0_i32_0 = arith.constant 0 : i32
    %c0_i32_1 = arith.constant 0 : i32
    return %c0_i32, %c0_i32_0 : i32, i32
  }
  func.func @transform_9(%arg0: i32) -> (i32, i32) {
    %c0_i32 = arith.constant 0 : i32
    %c0_i32_0 = arith.constant 0 : i32
    %c0_i32_1 = arith.constant 0 : i32
    return %c0_i32, %c0_i32_0 : i32, i32
  }
  func.func @transform_10(%arg0: i32) -> (i32, i32, i32) {
    %c0_i32 = arith.constant 0 : i32
    %c0_i32_0 = arith.constant 0 : i32
    %c0_i32_1 = arith.constant 0 : i32
    return %arg0, %c0_i32, %c0_i32_0 : i32, i32, i32
  }
}

</mosaic_0001>

<llo_original>
// kernel: aggregation_mul_forward.2
$region0: #{aggregation_mul_forward.2}
  #allocation0 [shape = 'u32[]', space=smem, size = 0x4, offset = 0x4, fixed_abs, tag = 'smem constant byte address 0x4 - core index']
  #allocation1 [shape = 'u32[144,128]{1,0:T(1,128)}', space=vmem, size = 0x12000, scoped, tag = 'internal scratch']
  %s0 = inlined_call_operand.vmem [shape: f32[2,16,32], index: 0, kind: input, shape index: {}]
  %s1 = inlined_call_operand.vmem [shape: f32[2,64,32], index: 1, kind: input, shape index: {}]
  %s2 = inlined_call_operand.vmem [shape: bf16[64,16], index: 2, kind: input, shape index: {}]
  %s3 = inlined_call_operand.vmem [shape: bf16[288,32], index: 3, kind: input, shape index: {}]
  %s4 = inlined_call_operand.vmem [shape: f32[1,32], index: 4, kind: input, shape index: {}]
  %s5 = inlined_call_operand.vmem [shape: f32[1,32], index: 5, kind: input, shape index: {}]
  %s6 = inlined_call_operand.vmem [shape: bf16[32,32], index: 6, kind: input, shape index: {}]
  %s7 = inlined_call_operand.vmem [shape: f32[1,32], index: 7, kind: input, shape index: {}]
  %s8 = inlined_call_operand.vmem [shape: bf16[32,32], index: 8, kind: input, shape index: {}]
  %s9 = inlined_call_operand.vmem [shape: f32[1,32], index: 9, kind: input, shape index: {}]
  %s10 = inlined_call_operand.vmem [shape: f32[2,64,32], index: 10, kind: output, shape index: {}]
  %s11 = sld [smem:[#allocation0]]
  $region73: #{aggregation_mul_forward.2} parent=0
    _
  %s13 = ssub.s32 1, %s11
  %s14 = scalar_select 0, %s13, %s11
  loop: start=0, step=1, limit=4
  $region2: #{aggregation_mul_forward.2} parent=0 // loop_pre_header
    _
  $region3: #{aggregation_mul_forward.2} parent=0 // loop_header
    %s16 = sphi 0, %s20
    %p17 = scmp.ge.s32.totalorder %s16, 4
    %s26 = sphi 0, %s28
    %s29 = sphi 0, %s26
    %s30 = sphi 0, %s29
    %s46 = sphi 0, %s30
    %s52 = sphi 0, %s54
    %s55 = sphi 0, %s52
    %s56 = sphi 0, %s55
    %s72 = sphi 0, %s56
    %s76 = sphi 0, %s76
    %s78 = sphi 0, %s76
    %s79 = sphi 0, %s78
    %s93 = sphi 0, %s79
    %s97 = sphi 0, %s97
    %s99 = sphi 0, %s97
    %s100 = sphi 0, %s99
    %s114 = sphi 0, %s100
    %s118 = sphi 0, %s118
    %s120 = sphi 0, %s118
    %s121 = sphi 0, %s120
    %s135 = sphi 0, %s121
    %s139 = sphi 0, %s139
    %s141 = sphi 0, %s139
    %s142 = sphi 0, %s141
    %s156 = sphi 0, %s142
    %s160 = sphi 0, %s160
    %s162 = sphi 0, %s160
    %s163 = sphi 0, %s162
    %s177 = sphi 0, %s163
    %s181 = sphi 0, %s181
    %s183 = sphi 0, %s181
    %s184 = sphi 0, %s183
    %s198 = sphi 0, %s184
    %s202 = sphi 0, %s202
    %s204 = sphi 0, %s202
    %s205 = sphi 0, %s204
    %s219 = sphi 0, %s205
    %s223 = sphi 0, %s223
    %s225 = sphi 0, %s223
    %s226 = sphi 0, %s225
    %s240 = sphi 0, %s226
    %s246 = sphi 0, %s248
    %s249 = sphi 0, %s246
    %s250 = sphi 0, %s249
    %s266 = sphi 0, %s250
  $region4: #{aggregation_mul_forward.2} parent=0 // loop_header_branch
    %19 = sbr.rel (%p17) target = $region8
  $region5: #{aggregation_mul_forward.2} parent=0 // loop_body
    %s21 = ssub.s32 %s16, 1
    %s22 = ssub.s32 %s16, 2
    %s23 = sadd.s32 %s16, 1
    %s24 = ssub.s32 %s16, %s23
    %p25 = scmp.eq.s32.totalorder %s24, 0
    %s27 = sadd.s32 %s26, 1
    %s28 = scalar_select %p25, %s26, %s27
    %p31 = pneg %p25
    %p32 = scmp.eq.s32.totalorder %s16, 1
    %p33 = por %p31, %p32
    %p34 = scmp.ne.s32.totalorder %s26, %s29
    %p35 = scmp.eq.s32.totalorder %s16, 0
    %p36 = por %p34, %p35
    %p37 = scmp.ne.s32.totalorder %s26, %s29
    %p38 = scmp.eq.s32.totalorder %s21, 1
    %p39 = por %p37, %p38
    %p40 = scmp.ne.s32.totalorder %s29, %s30
    %p41 = scmp.eq.s32.totalorder %s21, 0
    %p42 = por %p40, %p41
    %p43 = scmp.ne.s32.totalorder %s29, %s30
    %p44 = scmp.eq.s32.totalorder %s22, 1
    %p45 = por %p43, %p44
    %p47 = scmp.ne.s32.totalorder %s30, %s46
    %p48 = scmp.eq.s32.totalorder %s22, 0
    %p49 = por %p47, %p48
    %s50 = ssub.s32 %s16, %s23
    %p51 = scmp.eq.s32.totalorder %s50, 0
    %s53 = sadd.s32 %s52, 1
    %s54 = scalar_select %p51, %s52, %s53
    %p57 = pneg %p51
    %p58 = scmp.eq.s32.totalorder %s16, 1
    %p59 = por %p57, %p58
    %p60 = scmp.ne.s32.totalorder %s52, %s55
    %p61 = scmp.eq.s32.totalorder %s16, 0
    %p62 = por %p60, %p61
    %p63 = scmp.ne.s32.totalorder %s52, %s55
    %p64 = scmp.eq.s32.totalorder %s21, 1
    %p65 = por %p63, %p64
    %p66 = scmp.ne.s32.totalorder %s55, %s56
    %p67 = scmp.eq.s32.totalorder %s21, 0
    %p68 = por %p66, %p67
    %p69 = scmp.ne.s32.totalorder %s55, %s56
    %p70 = scmp.eq.s32.totalorder %s22, 1
    %p71 = por %p69, %p70
    %p73 = scmp.ne.s32.totalorder %s56, %s72
    %p74 = scmp.eq.s32.totalorder %s22, 0
    %p75 = por %p73, %p74
    %s77 = sadd.s32 %s76, 1
    %p80 = scmp.eq.s32.totalorder %s16, 1
    %p81 = scmp.ne.s32.totalorder %s76, %s78
    %p82 = scmp.eq.s32.totalorder %s16, 0
    %p83 = por %p81, %p82
    %p84 = scmp.ne.s32.totalorder %s76, %s78
    %p85 = scmp.eq.s32.totalorder %s21, 1
    %p86 = por %p84, %p85
    %p87 = scmp.ne.s32.totalorder %s78, %s79
    %p88 = scmp.eq.s32.totalorder %s21, 0
    %p89 = por %p87, %p88
    %p90 = scmp.ne.s32.totalorder %s78, %s79
    %p91 = scmp.eq.s32.totalorder %s22, 1
    %p92 = por %p90, %p91
    %p94 = scmp.ne.s32.totalorder %s79, %s93
    %p95 = scmp.eq.s32.totalorder %s22, 0
    %p96 = por %p94, %p95
    %s98 = sadd.s32 %s97, 1
    %p101 = scmp.eq.s32.totalorder %s16, 1
    %p102 = scmp.ne.s32.totalorder %s97, %s99
    %p103 = scmp.eq.s32.totalorder %s16, 0
    %p104 = por %p102, %p103
    %p105 = scmp.ne.s32.totalorder %s97, %s99
    %p106 = scmp.eq.s32.totalorder %s21, 1
    %p107 = por %p105, %p106
    %p108 = scmp.ne.s32.totalorder %s99, %s100
    %p109 = scmp.eq.s32.totalorder %s21, 0
    %p110 = por %p108, %p109
    %p111 = scmp.ne.s32.totalorder %s99, %s100
    %p112 = scmp.eq.s32.totalorder %s22, 1
    %p113 = por %p111, %p112
    %p115 = scmp.ne.s32.totalorder %s100, %s114
    %p116 = scmp.eq.s32.totalorder %s22, 0
    %p117 = por %p115, %p116
    %s119 = sadd.s32 %s118, 1
    %p122 = scmp.eq.s32.totalorder %s16, 1
    %p123 = scmp.ne.s32.totalorder %s118, %s120
    %p124 = scmp.eq.s32.totalorder %s16, 0
    %p125 = por %p123, %p124
    %p126 = scmp.ne.s32.totalorder %s118, %s120
    %p127 = scmp.eq.s32.totalorder %s21, 1
    %p128 = por %p126, %p127
    %p129 = scmp.ne.s32.totalorder %s120, %s121
    %p130 = scmp.eq.s32.totalorder %s21, 0
    %p131 = por %p129, %p130
    %p132 = scmp.ne.s32.totalorder %s120, %s121
    %p133 = scmp.eq.s32.totalorder %s22, 1
    %p134 = por %p132, %p133
    %p136 = scmp.ne.s32.totalorder %s121, %s135
    %p137 = scmp.eq.s32.totalorder %s22, 0
    %p138 = por %p136, %p137
    %s140 = sadd.s32 %s139, 1
    %p143 = scmp.eq.s32.totalorder %s16, 1
    %p144 = scmp.ne.s32.totalorder %s139, %s141
    %p145 = scmp.eq.s32.totalorder %s16, 0
    %p146 = por %p144, %p145
    %p147 = scmp.ne.s32.totalorder %s139, %s141
    %p148 = scmp.eq.s32.totalorder %s21, 1
    %p149 = por %p147, %p148
    %p150 = scmp.ne.s32.totalorder %s141, %s142
    %p151 = scmp.eq.s32.totalorder %s21, 0
    %p152 = por %p150, %p151
    %p153 = scmp.ne.s32.totalorder %s141, %s142
    %p154 = scmp.eq.s32.totalorder %s22, 1
    %p155 = por %p153, %p154
    %p157 = scmp.ne.s32.totalorder %s142, %s156
    %p158 = scmp.eq.s32.totalorder %s22, 0
    %p159 = por %p157, %p158
    %s161 = sadd.s32 %s160, 1
    %p164 = scmp.eq.s32.totalorder %s16, 1
    %p165 = scmp.ne.s32.totalorder %s160, %s162
    %p166 = scmp.eq.s32.totalorder %s16, 0
    %p167 = por %p165, %p166
    %p168 = scmp.ne.s32.totalorder %s160, %s162
    %p169 = scmp.eq.s32.totalorder %s21, 1
    %p170 = por %p168, %p169
    %p171 = scmp.ne.s32.totalorder %s162, %s163
    %p172 = scmp.eq.s32.totalorder %s21, 0
    %p173 = por %p171, %p172
    %p174 = scmp.ne.s32.totalorder %s162, %s163
    %p175 = scmp.eq.s32.totalorder %s22, 1
    %p176 = por %p174, %p175
    %p178 = scmp.ne.s32.totalorder %s163, %s177
    %p179 = scmp.eq.s32.totalorder %s22, 0
    %p180 = por %p178, %p179
    %s182 = sadd.s32 %s181, 1
    %p185 = scmp.eq.s32.totalorder %s16, 1
    %p186 = scmp.ne.s32.totalorder %s181, %s183
    %p187 = scmp.eq.s32.totalorder %s16, 0
    %p188 = por %p186, %p187
    %p189 = scmp.ne.s32.totalorder %s181, %s183
    %p190 = scmp.eq.s32.totalorder %s21, 1
    %p191 = por %p189, %p190
    %p192 = scmp.ne.s32.totalorder %s183, %s184
    %p193 = scmp.eq.s32.totalorder %s21, 0
    %p194 = por %p192, %p193
    %p195 = scmp.ne.s32.totalorder %s183, %s184
    %p196 = scmp.eq.s32.totalorder %s22, 1
    %p197 = por %p195, %p196
    %p199 = scmp.ne.s32.totalorder %s184, %s198
    %p200 = scmp.eq.s32.totalorder %s22, 0
    %p201 = por %p199, %p200
    %s203 = sadd.s32 %s202, 1
    %p206 = scmp.eq.s32.totalorder %s16, 1
    %p207 = scmp.ne.s32.totalorder %s202, %s204
    %p208 = scmp.eq.s32.totalorder %s16, 0
    %p209 = por %p207, %p208
    %p210 = scmp.ne.s32.totalorder %s202, %s204
    %p211 = scmp.eq.s32.totalorder %s21, 1
    %p212 = por %p210, %p211
    %p213 = scmp.ne.s32.totalorder %s204, %s205
    %p214 = scmp.eq.s32.totalorder %s21, 0
    %p215 = por %p213, %p214
    %p216 = scmp.ne.s32.totalorder %s204, %s205
    %p217 = scmp.eq.s32.totalorder %s22, 1
    %p218 = por %p216, %p217
    %p220 = scmp.ne.s32.totalorder %s205, %s219
    %p221 = scmp.eq.s32.totalorder %s22, 0
    %p222 = por %p220, %p221
    %s224 = sadd.s32 %s223, 1
    %p227 = scmp.eq.s32.totalorder %s16, 1
    %p228 = scmp.ne.s32.totalorder %s223, %s225
    %p229 = scmp.eq.s32.totalorder %s16, 0
    %p230 = por %p228, %p229
    %p231 = scmp.ne.s32.totalorder %s223, %s225
    %p232 = scmp.eq.s32.totalorder %s21, 1
    %p233 = por %p231, %p232
    %p234 = scmp.ne.s32.totalorder %s225, %s226
    %p235 = scmp.eq.s32.totalorder %s21, 0
    %p236 = por %p234, %p235
    %p237 = scmp.ne.s32.totalorder %s225, %s226
    %p238 = scmp.eq.s32.totalorder %s22, 1
    %p239 = por %p237, %p238
    %p241 = scmp.ne.s32.totalorder %s226, %s240
    %p242 = scmp.eq.s32.totalorder %s22, 0
    %p243 = por %p241, %p242
    %s244 = ssub.s32 %s16, %s23
    %p245 = scmp.eq.s32.totalorder %s244, 0
    %s247 = sadd.s32 %s246, 1
    %s248 = scalar_select %p245, %s246, %s247
    %p251 = pneg %p245
    %p252 = scmp.eq.s32.totalorder %s16, 1
    %p253 = por %p251, %p252
    %p254 = scmp.ne.s32.totalorder %s246, %s249
    %p255 = scmp.eq.s32.totalorder %s16, 0
    %p256 = por %p254, %p255
    %p257 = scmp.ne.s32.totalorder %s246, %s249
    %p258 = scmp.eq.s32.totalorder %s21, 1
    %p259 = por %p257, %p258
    %p260 = scmp.ne.s32.totalorder %s249, %s250
    %p261 = scmp.eq.s32.totalorder %s21, 0
    %p262 = por %p260, %p261
    %p263 = scmp.ne.s32.totalorder %s249, %s250
    %p264 = scmp.eq.s32.totalorder %s22, 1
    %p265 = por %p263, %p264
    %p267 = scmp.ne.s32.totalorder %s250, %s266
    %p268 = scmp.eq.s32.totalorder %s22, 0
    %p269 = por %p267, %p268
    %p270 = scmp.le.s32.totalorder 1, %s16
    %p271 = scmp.lt.s32.totalorder %s16, 3
    %p272 = pnand %p270, %p271
    %p273 = pneg %p272
    // Predicated region
    $region9: #{aggregation_mul_forward.2} parent=5 // pred_check
      _
    $region10: #{aggregation_mul_forward.2} parent=5 // pred_check_branch
      %275 = sbr.rel (%p272) target = $region12
    $region11: #{aggregation_mul_forward.2} parent=5 // pred_region
      %s276 = ssub.s32 %s16, 1
      // Predicated region
      $region13: #{aggregation_mul_forward.2} parent=11 // pred_check
        %p277 = pneg %p89
      $region14: #{aggregation_mul_forward.2} parent=11 // pred_check_branch
        %279 = sbr.rel (%p277) target = $region16
      $region15: #{aggregation_mul_forward.2} parent=11 // pred_region
        _
      $region16: #{aggregation_mul_forward.2} parent=11 // pred_fallthru
        _
      // Predicated region
      $region17: #{aggregation_mul_forward.2} parent=11 // pred_check
        %p280 = pneg %p110
      $region18: #{aggregation_mul_forward.2} parent=11 // pred_check_branch
        %282 = sbr.rel (%p280) target = $region20
      $region19: #{aggregation_mul_forward.2} parent=11 // pred_region
        _
      $region20: #{aggregation_mul_forward.2} parent=11 // pred_fallthru
        _
      // Predicated region
      $region21: #{aggregation_mul_forward.2} parent=11 // pred_check
        %p283 = pneg %p131
      $region22: #{aggregation_mul_forward.2} parent=11 // pred_check_branch
        %285 = sbr.rel (%p283) target = $region24
      $region23: #{aggregation_mul_forward.2} parent=11 // pred_region
        _
      $region24: #{aggregation_mul_forward.2} parent=11 // pred_fallthru
        _
      // Predicated region
      $region25: #{aggregation_mul_forward.2} parent=11 // pred_check
        %p286 = pneg %p152
      $region26: #{aggregation_mul_forward.2} parent=11 // pred_check_branch
        %288 = sbr.rel (%p286) target = $region28
      $region27: #{aggregation_mul_forward.2} parent=11 // pred_region
        _
      $region28: #{aggregation_mul_forward.2} parent=11 // pred_fallthru
        _
      // Predicated region
      $region29: #{aggregation_mul_forward.2} parent=11 // pred_check
        %p289 = pneg %p173
      $region30: #{aggregation_mul_forward.2} parent=11 // pred_check_branch
        %291 = sbr.rel (%p289) target = $region32
      $region31: #{aggregation_mul_forward.2} parent=11 // pred_region
        _
      $region32: #{aggregation_mul_forward.2} parent=11 // pred_fallthru
        _
      // Predicated region
      $region33: #{aggregation_mul_forward.2} parent=11 // pred_check
        %p292 = pneg %p194
      $region34: #{aggregation_mul_forward.2} parent=11 // pred_check_branch
        %294 = sbr.rel (%p292) target = $region36
      $region35: #{aggregation_mul_forward.2} parent=11 // pred_region
        _
      $region36: #{aggregation_mul_forward.2} parent=11 // pred_fallthru
        _
      // Predicated region
      $region37: #{aggregation_mul_forward.2} parent=11 // pred_check
        %p295 = pneg %p215
      $region38: #{aggregation_mul_forward.2} parent=11 // pred_check_branch
        %297 = sbr.rel (%p295) target = $region40
      $region39: #{aggregation_mul_forward.2} parent=11 // pred_region
        _
      $region40: #{aggregation_mul_forward.2} parent=11 // pred_fallthru
        _
      // Predicated region
      $region41: #{aggregation_mul_forward.2} parent=11 // pred_check
        %p298 = pneg %p236
      $region42: #{aggregation_mul_forward.2} parent=11 // pred_check_branch
        %300 = sbr.rel (%p298) target = $region44
      $region43: #{aggregation_mul_forward.2} parent=11 // pred_region
        _
      $region44: #{aggregation_mul_forward.2} parent=11 // pred_fallthru
        _
    $region12: #{aggregation_mul_forward.2} parent=5 // pred_fallthru
      _
    %p301 = scmp.lt.s32.totalorder %s16, 2
    // Predicated region
    $region45: #{aggregation_mul_forward.2} parent=5 // pred_check
      %p302 = pneg %p301
    $region46: #{aggregation_mul_forward.2} parent=5 // pred_check_branch
      %304 = sbr.rel (%p302) target = $region48
    $region47: #{aggregation_mul_forward.2} parent=5 // pred_region
      // Predicated region
      $region49: #{aggregation_mul_forward.2} parent=47 // pred_check
        %p305 = pneg %p36
      $region50: #{aggregation_mul_forward.2} parent=47 // pred_check_branch
        %307 = sbr.rel (%p305) target = $region52
      $region51: #{aggregation_mul_forward.2} parent=47 // pred_region
        %p308 = scmp.lt.s32.totalorder %s16, 1
        %s309 = scalar_select %p308, %s16, 1
        %s310 = smul.addr %s309, 2
        %s311 = smul.addr %s310, 8
        %s312 = scalar_lea.vmem %s0, %s311
      $region52: #{aggregation_mul_forward.2} parent=47 // pred_fallthru
        _
      // Predicated region
      $region53: #{aggregation_mul_forward.2} parent=47 // pred_check
        %p313 = pneg %p62
      $region54: #{aggregation_mul_forward.2} parent=47 // pred_check_branch
        %315 = sbr.rel (%p313) target = $region56
      $region55: #{aggregation_mul_forward.2} parent=47 // pred_region
        %p316 = scmp.lt.s32.totalorder %s16, 1
        %s317 = scalar_select %p316, %s16, 1
        %s318 = smul.addr %s317, 8
        %s319 = smul.addr %s318, 8
        %s320 = scalar_lea.vmem %s1, %s319
      $region56: #{aggregation_mul_forward.2} parent=47 // pred_fallthru
        _
    $region48: #{aggregation_mul_forward.2} parent=5 // pred_fallthru
      _
    %p321 = scmp.le.s32.totalorder 1, %s16
    %p322 = scmp.lt.s32.totalorder %s16, 3
    %p323 = pnand %p321, %p322
    %p324 = pneg %p323
    // Predicated region
    $region57: #{aggregation_mul_forward.2} parent=5 // pred_check
      _
    $region58: #{aggregation_mul_forward.2} parent=5 // pred_check_branch
      %326 = sbr.rel (%p323) target = $region60
    $region59: #{aggregation_mul_forward.2} parent=5 // pred_region
      %s327 = ssub.s32 %s16, 1
      %p328 = scmp.lt.s32.totalorder %s21, 1
      %s329 = scalar_select %p328, %s21, 1
      %s330 = smul.addr %s329, 2
      %s331 = smul.addr %s330, 8
      %s332 = scalar_lea.vmem %s0, %s331
      %p333 = pneg %p42
      %p334 = pneg %p39
      %p335 = scmp.lt.s32.totalorder %s21, 1
      %s336 = scalar_select %p335, %s21, 1
      %s337 = smul.addr %s336, 8
      %s338 = smul.addr %s337, 8
      %s339 = scalar_lea.vmem %s1, %s338
      %p340 = pneg %p68
      %p341 = pneg %p65
      %p342 = pneg %p89
      %p343 = pneg %p86
      %p344 = pneg %p110
      %p345 = pneg %p107
      %p346 = pneg %p131
      %p347 = pneg %p128
      %p348 = pneg %p152
      %p349 = pneg %p149
      %p350 = pneg %p173
      %p351 = pneg %p170
      %p352 = pneg %p194
      %p353 = pneg %p191
      %p354 = pneg %p215
      %p355 = pneg %p212
      %p356 = pneg %p236
      %p357 = pneg %p233
      %p358 = pneg %p262
      %p359 = pneg %p259
      %p360 = scmp.lt.s32.totalorder %s21, 1
      %s361 = scalar_select %p360, %s21, 1
      %s362 = smul.addr %s361, 8
      %s363 = smul.addr %s362, 8
      %s364 = scalar_lea.vmem %s10, %s363
      %p365 = scmp.lt.s32.totalorder %s21, 1
      %s366 = scalar_select %p365, %s21, 1
      %s367 = smul.addr %s366, 2
      %s368 = smul.addr %s367, 8
      %s369 = scalar_lea.vmem %s0, %s368
      %p370 = scmp.lt.s32.totalorder %s21, 1
      %s371 = scalar_select %p370, %s21, 1
      %s372 = smul.addr %s371, 8
      %s373 = smul.addr %s372, 8
      %s374 = scalar_lea.vmem %s1, %s373
      %p375 = scmp.lt.s32.totalorder %s21, 1
      %s376 = scalar_select %p375, %s21, 1
      %s377 = smul.addr %s376, 8
      %s378 = smul.addr %s377, 8
      %s379 = scalar_lea.vmem %s10, %s378
      %v381 = vld [vmem:[%s2] sm:$0xf]
      %v382 = vld [vmem:[%s2 + $0x4] sm:$0xf]
      %v383 = vld [vmem:[%s2 + $0x8] sm:$0xf]
      %v384 = vld [vmem:[%s2 + $0xc] sm:$0xf]
      %v385 = vld [vmem:[%s2 + $0x10] sm:$0xf]
      %v386 = vld [vmem:[%s2 + $0x14] sm:$0xf]
      %v387 = vld [vmem:[%s2 + $0x18] sm:$0xf]
      %v388 = vld [vmem:[%s2 + $0x1c] sm:$0xf]
      %v389 = vld [vmem:[%s369] sm:$0xff]
      %v390 = vld [vmem:[%s369 + $0x8] sm:$0xff]
      %v391 = vpack.c.bf16 %v390, %v389
      %v400 = vunpack.c.l.b16 %v381
      %v401 = vunpack.c.l.b16 %v382
      %v402 = vunpack.c.l.b16 %v383
      %v403 = vunpack.c.l.b16 %v384
      %v404 = vunpack.c.l.b16 %v385
      %v405 = vunpack.c.l.b16 %v386
      %v406 = vunpack.c.l.b16 %v387
      %v407 = vunpack.c.l.b16 %v388
      %v408 = vpack.c.b16 %v401, %v400
      %v409 = vpack.c.b16 %v403, %v402
      %v410 = vpack.c.b16 %v405, %v404
      %v411 = vpack.c.b16 %v407, %v406
      %vm412 = vcmask 130048
      %v414 = vsel %vm412, %v408, 0
      %v417 = vsel %vm412, %v409, 0
      %v420 = vsel %vm412, %v410, 0
      %v423 = vsel %vm412, %v411, 0
      %425 = vmatprep.subr.bf16.mxu0 0
      %426 = vmatpush1.bf16.msra.mxu0 %v391
      %427 = vmatprep.subr.bf16.mxu0 0
      %428 = vmatpush1.bf16.msra.mxu0 0
      %429 = vmatprep.subr.bf16.mxu0 0
      %430 = vmatpush1.bf16.msra.mxu0 0
      %431 = vmatprep.subr.bf16.mxu0 0
      %432 = vmatpush1.bf16.msra.mxu0 0
      %433 = vmatprep.subr.bf16.mxu0 0
      %434 = vmatpush1.bf16.msra.mxu0 0
      %435 = vmatprep.subr.bf16.mxu0 0
      %436 = vmatpush1.bf16.msra.mxu0 0
      %437 = vmatprep.subr.bf16.mxu0 0
      %438 = vmatpush1.bf16.msra.mxu0 0
      %439 = vmatprep.subr.bf16.mxu0 0
      %440 = vmatpush1.bf16.msra.mxu0 0
      %441 = vmatprep.subr.bf16.mxu0 0
      %442 = vmatpush1.bf16.msra.mxu0 0
      %443 = vmatprep.subr.bf16.mxu0 0
      %444 = vmatpush1.bf16.msra.mxu0 0
      %445 = vmatprep.subr.bf16.mxu0 0
      %446 = vmatpush1.bf16.msra.mxu0 0
      %447 = vmatprep.subr.bf16.mxu0 0
      %448 = vmatpush1.bf16.msra.mxu0 0
      %449 = vmatprep.subr.bf16.mxu0 0
      %450 = vmatpush1.bf16.msra.mxu0 0
      %451 = vmatprep.subr.bf16.mxu0 0
      %452 = vmatpush1.bf16.msra.mxu0 0
      %453 = vmatprep.subr.bf16.mxu0 0
      %454 = vmatpush1.bf16.msra.mxu0 0
      %455 = vmatprep.subr.bf16.mxu0 0
      %456 = vmatpush1.bf16.msra.mxu0 0
      %457 = vmatprep.mubr.bf16.mxu0 0
      %458 = vmatmul.mubr.bf16.gmra.mrb[0].mxu0 %v414
      %v459 = vpop.f32.mrb[0].mxu0
      %v460 = vadd.f32 0.0, %v459
      %v461 = vpop.f32.mrb[0].mxu0
      %v462 = vpop.f32.mrb[0].mxu0
      %v463 = vadd.f32 0.0, %v462
      %v464 = vpop.f32.mrb[0].mxu0
      %465 = vmatprep.mubr.bf16.mxu0 0
      %466 = vmatmul.mubr.bf16.gmra.mrb[0].mxu0 %v417
      %v467 = vpop.f32.mrb[0].mxu0
      %v468 = vadd.f32 0.0, %v467
      %v469 = vpop.f32.mrb[0].mxu0
      %v470 = vpop.f32.mrb[0].mxu0
      %v471 = vadd.f32 0.0, %v470
      %v472 = vpop.f32.mrb[0].mxu0
      %473 = vmatprep.mubr.bf16.mxu0 0
      %474 = vmatmul.mubr.bf16.gmra.mrb[0].mxu0 %v420
      %v475 = vpop.f32.mrb[0].mxu0
      %v476 = vadd.f32 0.0, %v475
      %v477 = vpop.f32.mrb[0].mxu0
      %v478 = vpop.f32.mrb[0].mxu0
      %v479 = vadd.f32 0.0, %v478
      %v480 = vpop.f32.mrb[0].mxu0
      %481 = vmatprep.mubr.bf16.mxu0 0
      %482 = vmatmul.mubr.bf16.gmra.mrb[0].mxu0 %v423
      %v483 = vpop.f32.mrb[0].mxu0
      %v484 = vadd.f32 0.0, %v483
      %v485 = vpop.f32.mrb[0].mxu0
      %v486 = vpop.f32.mrb[0].mxu0
      %v487 = vadd.f32 0.0, %v486
      %v488 = vpop.f32.mrb[0].mxu0
      %489 = vdwg.mxu0
      %v490 = vld [vmem:[%s374] sm:$0xff]
      %v491 = vld [vmem:[%s374 + $0x8] sm:$0xff]
      %v492 = vld [vmem:[%s374 + $0x10] sm:$0xff]
      %v493 = vld [vmem:[%s374 + $0x18] sm:$0xff]
      %v494 = vld [vmem:[%s374 + $0x20] sm:$0xff]
      %v495 = vld [vmem:[%s374 + $0x28] sm:$0xff]
      %v496 = vld [vmem:[%s374 + $0x30] sm:$0xff]
      %v497 = vld [vmem:[%s374 + $0x38] sm:$0xff]
      %v498 = vmul.f32 %v490, %v460
      %v499 = vmul.f32 %v491, %v463
      %v500 = vmul.f32 %v492, %v468
      %v501 = vmul.f32 %v493, %v471
      %v502 = vmul.f32 %v494, %v476
      %v503 = vmul.f32 %v495, %v479
      %v504 = vmul.f32 %v496, %v484
      %v505 = vmul.f32 %v497, %v487
      %v506 = vlaneseq
      %v507 = vshrl.u32 %v506, 7
      %v508 = vadd.s32 %v507, 8
      %v509 = vadd.s32 %v507, 16
      %v510 = vadd.s32 %v507, 24
      %v511 = vadd.s32 %v507, 32
      %v512 = vadd.s32 %v507, 40
      %v513 = vadd.s32 %v507, 48
      %v514 = vadd.s32 %v507, 56
      %vm515 = vcmp.lt.s32.totalorder %v507, 0
      %v516 = vsub.s32 0, %v507
      %v517 = vsel %vm515, %v516, %v507
      %v518 = vshrl.u32 %v517, 3
      %v519 = vand.u32 %v517, 7
      %v520 = vsub.s32 0, %v519
      %v521 = vsel %vm515, %v520, %v519
      %vm522 = vcmp.lt.s32.totalorder %v508, 0
      %v523 = vsub.s32 0, %v508
      %v524 = vsel %vm522, %v523, %v508
      %v525 = vshrl.u32 %v524, 3
      %v526 = vand.u32 %v524, 7
      %v527 = vsub.s32 0, %v526
      %v528 = vsel %vm522, %v527, %v526
      %vm529 = vcmp.lt.s32.totalorder %v509, 0
      %v530 = vsub.s32 0, %v509
      %v531 = vsel %vm529, %v530, %v509
      %v532 = vshrl.u32 %v531, 3
      %v533 = vand.u32 %v531, 7
      %v534 = vsub.s32 0, %v533
      %v535 = vsel %vm529, %v534, %v533
      %vm536 = vcmp.lt.s32.totalorder %v510, 0
      %v537 = vsub.s32 0, %v510
      %v538 = vsel %vm536, %v537, %v510
      %v539 = vshrl.u32 %v538, 3
      %v540 = vand.u32 %v538, 7
      %v541 = vsub.s32 0, %v540
      %v542 = vsel %vm536, %v541, %v540
      %vm543 = vcmp.lt.s32.totalorder %v511, 0
      %v544 = vsub.s32 0, %v511
      %v545 = vsel %vm543, %v544, %v511
      %v546 = vshrl.u32 %v545, 3
      %v547 = vand.u32 %v545, 7
      %v548 = vsub.s32 0, %v547
      %v549 = vsel %vm543, %v548, %v547
      %vm550 = vcmp.lt.s32.totalorder %v512, 0
      %v551 = vsub.s32 0, %v512
      %v552 = vsel %vm550, %v551, %v512
      %v553 = vshrl.u32 %v552, 3
      %v554 = vand.u32 %v552, 7
      %v555 = vsub.s32 0, %v554
      %v556 = vsel %vm550, %v555, %v554
      %vm557 = vcmp.lt.s32.totalorder %v513, 0
      %v558 = vsub.s32 0, %v513
      %v559 = vsel %vm557, %v558, %v513
      %v560 = vshrl.u32 %v559, 3
      %v561 = vand.u32 %v559, 7
      %v562 = vsub.s32 0, %v561
      %v563 = vsel %vm557, %v562, %v561
      %vm564 = vcmp.lt.s32.totalorder %v514, 0
      %v565 = vsub.s32 0, %v514
      %v566 = vsel %vm564, %v565, %v514
      %v567 = vshrl.u32 %v566, 3
      %v568 = vand.u32 %v566, 7
      %v569 = vsub.s32 0, %v568
      %v570 = vsel %vm564, %v569, %v568
      %vm571 = vcmp.ne.s32.totalorder %v521, 0
      %vm572 = vcmp.ne.s32.totalorder %v528, 0
      %vm573 = vcmp.ne.s32.totalorder %v535, 0
      %vm574 = vcmp.ne.s32.totalorder %v542, 0
      %vm575 = vcmp.ne.s32.totalorder %v549, 0
      %vm576 = vcmp.ne.s32.totalorder %v556, 0
      %vm577 = vcmp.ne.s32.totalorder %v563, 0
      %vm578 = vcmp.ne.s32.totalorder %v570, 0
      %vm579 = vcmp.lt.s32.totalorder %v521, 0
      %vm580 = vcmp.lt.s32.totalorder %v528, 0
      %vm581 = vcmp.lt.s32.totalorder %v535, 0
      %vm582 = vcmp.lt.s32.totalorder %v542, 0
      %vm583 = vcmp.lt.s32.totalorder %v549, 0
      %vm584 = vcmp.lt.s32.totalorder %v556, 0
      %vm585 = vcmp.lt.s32.totalorder %v563, 0
      %vm586 = vcmp.lt.s32.totalorder %v570, 0
      %vm587 = vmand %vm579, %vm571
      %vm588 = vmand %vm580, %vm572
      %vm589 = vmand %vm581, %vm573
      %vm590 = vmand %vm582, %vm574
      %vm591 = vmand %vm583, %vm575
      %vm592 = vmand %vm584, %vm576
      %vm593 = vmand %vm585, %vm577
      %vm594 = vmand %vm586, %vm578
      %v595 = vadd.s32 %v521, 8
      %v596 = vadd.s32 %v528, 8
      %v597 = vadd.s32 %v535, 8
      %v598 = vadd.s32 %v542, 8
      %v599 = vadd.s32 %v549, 8
      %v600 = vadd.s32 %v556, 8
      %v601 = vadd.s32 %v563, 8
      %v602 = vadd.s32 %v570, 8
      %v603 = vsel %vm587, %v595, %v521
      %v604 = vsel %vm588, %v596, %v528
      %v605 = vsel %vm589, %v597, %v535
      %v606 = vsel %vm590, %v598, %v542
      %v607 = vsel %vm591, %v599, %v549
      %v608 = vsel %vm592, %v600, %v556
      %v609 = vsel %vm593, %v601, %v563
      %v610 = vsel %vm594, %v602, %v570
      %vm611 = vcmp.ge.s32.totalorder %v603, 1
      %vm612 = vcmp.ge.s32.totalorder %v604, 1
      %vm613 = vcmp.ge.s32.totalorder %v605, 1
      %vm614 = vcmp.ge.s32.totalorder %v606, 1
      %vm615 = vcmp.ge.s32.totalorder %v607, 1
      %vm616 = vcmp.ge.s32.totalorder %v608, 1
      %vm617 = vcmp.ge.s32.totalorder %v609, 1
      %vm618 = vcmp.ge.s32.totalorder %v610, 1
      %vm619 = vcmp.le.s32.totalorder %v603, 6
      %vm620 = vcmp.le.s32.totalorder %v604, 6
      %vm621 = vcmp.le.s32.totalorder %v605, 6
      %vm622 = vcmp.le.s32.totalorder %v606, 6
      %vm623 = vcmp.le.s32.totalorder %v607, 6
      %vm624 = vcmp.le.s32.totalorder %v608, 6
      %vm625 = vcmp.le.s32.totalorder %v609, 6
      %vm626 = vcmp.le.s32.totalorder %v610, 6
      %vm634 = vcmask 1040384
      %v635 = vrot.slane %v498, 7
      %v636 = vrot.slane %v499, 7
      %v637 = vsel %vm634, %v635, %v636
      %v638 = vrot.slane %v500, 7
      %v639 = vsel %vm634, %v636, %v638
      %v640 = vrot.slane %v501, 7
      %v641 = vsel %vm634, %v638, %v640
      %v642 = vrot.slane %v502, 7
      %v643 = vsel %vm634, %v640, %v642
      %v644 = vrot.slane %v503, 7
      %v645 = vsel %vm634, %v642, %v644
      %v646 = vrot.slane %v504, 7
      %v647 = vsel %vm634, %v644, %v646
      %v655 = vsel %vm634, 0.0, %v635
      %v656 = vsel %vm612, %v655, 0.0
      %v657 = vsel %vm613, %v637, 0.0
      %v658 = vsel %vm614, %v639, 0.0
      %v659 = vsel %vm615, %v641, 0.0
      %v660 = vsel %vm616, %v643, 0.0
      %v661 = vsel %vm617, %v645, 0.0
      %v662 = vsel %vm618, %v647, 0.0
      %v663 = vpack.c.bf16 %v656, 0.0
      %v664 = vpack.c.bf16 %v658, %v657
      %v665 = vpack.c.bf16 %v660, %v659
      %v666 = vpack.c.bf16 %v662, %v661
      %v667 = vpack.c.bf16 %v498, 0.0
      %v668 = vpack.c.bf16 %v500, %v499
      %v669 = vpack.c.bf16 %v502, %v501
      %v670 = vpack.c.bf16 %v504, %v503
      %vm672 = vcmask 1046528
      %v673 = vrot.slane %v498, 1
      %v674 = vrot.slane %v499, 1
      %v675 = vsel %vm672, %v673, %v674
      %v676 = vrot.slane %v500, 1
      %v677 = vsel %vm672, %v674, %v676
      %v678 = vrot.slane %v501, 1
      %v679 = vsel %vm672, %v676, %v678
      %v680 = vrot.slane %v502, 1
      %v681 = vsel %vm672, %v678, %v680
      %v682 = vrot.slane %v503, 1
      %v683 = vsel %vm672, %v680, %v682
      %v684 = vrot.slane %v504, 1
      %v685 = vsel %vm672, %v682, %v684
      %v686 = vrot.slane %v505, 1
      %v687 = vsel %vm672, %v684, %v686
      %v696 = vsel %vm672, 0.0, %v673
      %v697 = vsel %vm619, %v696, 0.0
      %v698 = vsel %vm620, %v675, 0.0
      %v699 = vsel %vm621, %v677, 0.0
      %v700 = vsel %vm622, %v679, 0.0
      %v701 = vsel %vm623, %v681, 0.0
      %v702 = vsel %vm624, %v683, 0.0
      %v703 = vsel %vm625, %v685, 0.0
      %v704 = vsel %vm626, %v687, 0.0
      %v705 = vpack.c.bf16 %v698, %v697
      %v706 = vpack.c.bf16 %v700, %v699
      %v707 = vpack.c.bf16 %v702, %v701
      %v708 = vpack.c.bf16 %v704, %v703
      %v709 = vrot.slane %v505, 7
      %v710 = vsel %vm634, %v646, %v709
      %v712 = vsel %vm611, %v655, 0.0
      %v713 = vsel %vm612, %v637, 0.0
      %v714 = vsel %vm613, %v639, 0.0
      %v715 = vsel %vm614, %v641, 0.0
      %v716 = vsel %vm615, %v643, 0.0
      %v717 = vsel %vm616, %v645, 0.0
      %v718 = vsel %vm617, %v647, 0.0
      %v719 = vsel %vm618, %v710, 0.0
      %v720 = vpack.c.bf16 %v713, %v712
      %v721 = vpack.c.bf16 %v715, %v714
      %v722 = vpack.c.bf16 %v717, %v716
      %v723 = vpack.c.bf16 %v719, %v718
      %v724 = vpack.c.bf16 %v499, %v498
      %v725 = vpack.c.bf16 %v501, %v500
      %v726 = vpack.c.bf16 %v503, %v502
      %v727 = vpack.c.bf16 %v505, %v504
      %v729 = vsel %vm672, %v686, 0.0
      %v730 = vsel %vm619, %v675, 0.0
      %v731 = vsel %vm620, %v677, 0.0
      %v732 = vsel %vm621, %v679, 0.0
      %v733 = vsel %vm622, %v681, 0.0
      %v734 = vsel %vm623, %v683, 0.0
      %v735 = vsel %vm624, %v685, 0.0
      %v736 = vsel %vm625, %v687, 0.0
      %v737 = vsel %vm626, %v729, 0.0
      %v738 = vpack.c.bf16 %v731, %v730
      %v739 = vpack.c.bf16 %v733, %v732
      %v740 = vpack.c.bf16 %v735, %v734
      %v741 = vpack.c.bf16 %v737, %v736
      %v743 = vsel %vm634, %v709, 0.0
      %v744 = vsel %vm611, %v637, 0.0
      %v745 = vsel %vm612, %v639, 0.0
      %v746 = vsel %vm613, %v641, 0.0
      %v747 = vsel %vm614, %v643, 0.0
      %v748 = vsel %vm615, %v645, 0.0
      %v749 = vsel %vm616, %v647, 0.0
      %v750 = vsel %vm617, %v710, 0.0
      %v751 = vsel %vm618, %v743, 0.0
      %v752 = vpack.c.bf16 %v745, %v744
      %v753 = vpack.c.bf16 %v747, %v746
      %v754 = vpack.c.bf16 %v749, %v748
      %v755 = vpack.c.bf16 %v751, %v750
      %v756 = vpack.c.bf16 0.0, %v505
      %v757 = vsel %vm619, %v677, 0.0
      %v758 = vsel %vm620, %v679, 0.0
      %v759 = vsel %vm621, %v681, 0.0
      %v760 = vsel %vm622, %v683, 0.0
      %v761 = vsel %vm623, %v685, 0.0
      %v762 = vsel %vm624, %v687, 0.0
      %v763 = vsel %vm625, %v729, 0.0
      %v764 = vpack.c.bf16 %v758, %v757
      %v765 = vpack.c.bf16 %v760, %v759
      %v766 = vpack.c.bf16 %v762, %v761
      %v767 = vpack.c.bf16 0.0, %v763
      %772 = vrot.lane.b32.xlu0 %v667, 32
      %v773 = vpop.permute.xlu0 %772
      %774 = vrot.lane.b32.xlu0 %v668, 32
      %v775 = vpop.permute.xlu0 %774
      %776 = vrot.lane.b32.xlu0 %v669, 32
      %v777 = vpop.permute.xlu0 %776
      %778 = vrot.lane.b32.xlu0 %v670, 32
      %v779 = vpop.permute.xlu0 %778
      %784 = vrot.lane.b32.xlu0 %v705, 64
      %v785 = vpop.permute.xlu0 %784
      %786 = vrot.lane.b32.xlu0 %v706, 64
      %v787 = vpop.permute.xlu0 %786
      %788 = vrot.lane.b32.xlu0 %v707, 64
      %v789 = vpop.permute.xlu0 %788
      %790 = vrot.lane.b32.xlu0 %v708, 64
      %v791 = vpop.permute.xlu0 %790
      %796 = vrot.lane.b32.xlu0 %v720, 96
      %v797 = vpop.permute.xlu0 %796
      %798 = vrot.lane.b32.xlu0 %v721, 96
      %v799 = vpop.permute.xlu0 %798
      %800 = vrot.lane.b32.xlu0 %v722, 96
      %v801 = vpop.permute.xlu0 %800
      %802 = vrot.lane.b32.xlu0 %v723, 96
      %v803 = vpop.permute.xlu0 %802
      %808 = vrot.lane.b32.xlu0 %v738, 32
      %v809 = vpop.permute.xlu0 %808
      %810 = vrot.lane.b32.xlu0 %v739, 32
      %v811 = vpop.permute.xlu0 %810
      %812 = vrot.lane.b32.xlu0 %v740, 32
      %v813 = vpop.permute.xlu0 %812
      %814 = vrot.lane.b32.xlu0 %v741, 32
      %v815 = vpop.permute.xlu0 %814
      %820 = vrot.lane.b32.xlu0 %v752, 64
      %v821 = vpop.permute.xlu0 %820
      %822 = vrot.lane.b32.xlu0 %v753, 64
      %v823 = vpop.permute.xlu0 %822
      %824 = vrot.lane.b32.xlu0 %v754, 64
      %v825 = vpop.permute.xlu0 %824
      %826 = vrot.lane.b32.xlu0 %v755, 64
      %v827 = vpop.permute.xlu0 %826
      %829 = vrot.lane.b32.xlu0 %v668, 96
      %v830 = vpop.permute.xlu0 %829
      %831 = vrot.lane.b32.xlu0 %v669, 96
      %v832 = vpop.permute.xlu0 %831
      %833 = vrot.lane.b32.xlu0 %v670, 96
      %v834 = vpop.permute.xlu0 %833
      %835 = vrot.lane.b32.xlu0 %v756, 96
      %v836 = vpop.permute.xlu0 %835
      %vm837 = vcmask 261120
      %v840 = vsel %vm837, %v663, %v773
      %v843 = vsel %vm837, %v664, %v775
      %v846 = vsel %vm837, %v665, %v777
      %v849 = vsel %vm837, %v666, %v779
      %vm850 = vcmask 523264
      %v852 = vsel %vm850, %v840, %v785
      %v854 = vsel %vm850, %v843, %v787
      %v856 = vsel %vm850, %v846, %v789
      %v858 = vsel %vm850, %v849, %v791
      %vm859 = vcmask 785408
      %v861 = vsel %vm859, %v852, %v797
      %v864 = vsel %vm859, %v854, %v799
      %v867 = vsel %vm859, %v856, %v801
      %v870 = vsel %vm859, %v858, %v803
      %v874 = vsel %vm837, %v724, %v809
      %v877 = vsel %vm837, %v725, %v811
      %v880 = vsel %vm837, %v726, %v813
      %v883 = vsel %vm837, %v727, %v815
      %v885 = vsel %vm850, %v874, %v821
      %v887 = vsel %vm850, %v877, %v823
      %v889 = vsel %vm850, %v880, %v825
      %v891 = vsel %vm850, %v883, %v827
      %v893 = vsel %vm859, %v885, %v830
      %v896 = vsel %vm859, %v887, %v832
      %v899 = vsel %vm859, %v889, %v834
      %v902 = vsel %vm859, %v891, %v836
      %v904 = vld [vmem:[%s3] sm:$0xf]
      %v905 = vld [vmem:[%s3 + $0x4] sm:$0xf]
      %v906 = vld [vmem:[%s3 + $0x8] sm:$0xf]
      %v907 = vld [vmem:[%s3 + $0xc] sm:$0xf]
      %v908 = vld [vmem:[%s3 + $0x10] sm:$0xf]
      %v909 = vld [vmem:[%s3 + $0x14] sm:$0xf]
      %v910 = vld [vmem:[%s3 + $0x18] sm:$0xf]
      %v911 = vld [vmem:[%s3 + $0x1c] sm:$0xf]
      %v912 = vld [vmem:[%s3 + $0x20] sm:$0xf]
      %v913 = vld [vmem:[%s3 + $0x24] sm:$0xf]
      %v914 = vld [vmem:[%s3 + $0x28] sm:$0xf]
      %v915 = vld [vmem:[%s3 + $0x2c] sm:$0xf]
      %v916 = vld [vmem:[%s3 + $0x30] sm:$0xf]
      %v917 = vld [vmem:[%s3 + $0x34] sm:$0xf]
      %v918 = vld [vmem:[%s3 + $0x38] sm:$0xf]
      %v919 = vld [vmem:[%s3 + $0x3c] sm:$0xf]
      %v920 = vld [vmem:[%s3 + $0x40] sm:$0xf]
      %v921 = vld [vmem:[%s3 + $0x44] sm:$0xf]
      %v922 = vld [vmem:[%s3 + $0x48] sm:$0xf]
      %v923 = vld [vmem:[%s3 + $0x4c] sm:$0xf]
      %v924 = vld [vmem:[%s3 + $0x50] sm:$0xf]
      %v925 = vld [vmem:[%s3 + $0x54] sm:$0xf]
      %v926 = vld [vmem:[%s3 + $0x58] sm:$0xf]
      %v927 = vld [vmem:[%s3 + $0x5c] sm:$0xf]
      %v928 = vld [vmem:[%s3 + $0x60] sm:$0xf]
      %v929 = vld [vmem:[%s3 + $0x64] sm:$0xf]
      %v930 = vld [vmem:[%s3 + $0x68] sm:$0xf]
      %v931 = vld [vmem:[%s3 + $0x6c] sm:$0xf]
      %v932 = vld [vmem:[%s3 + $0x70] sm:$0xf]
      %v933 = vld [vmem:[%s3 + $0x74] sm:$0xf]
      %v934 = vld [vmem:[%s3 + $0x78] sm:$0xf]
      %v935 = vld [vmem:[%s3 + $0x7c] sm:$0xf]
      %v936 = vld [vmem:[%s3 + $0x80] sm:$0xf]
      %v937 = vld [vmem:[%s3 + $0x84] sm:$0xf]
      %v938 = vld [vmem:[%s3 + $0x88] sm:$0xf]
      %v939 = vld [vmem:[%s3 + $0x8c] sm:$0xf]
      %v976 = vunpack.c.l.b16 %v904
      %v977 = vunpack.c.l.b16 %v905
      %v978 = vunpack.c.l.b16 %v906
      %v979 = vunpack.c.l.b16 %v907
      %v980 = vunpack.c.l.b16 %v908
      %v981 = vunpack.c.l.b16 %v909
      %v982 = vunpack.c.l.b16 %v910
      %v983 = vunpack.c.l.b16 %v911
      %v984 = vunpack.c.l.b16 %v912
      %v985 = vunpack.c.l.b16 %v913
      %v986 = vunpack.c.l.b16 %v914
      %v987 = vunpack.c.l.b16 %v915
      %v988 = vunpack.c.l.b16 %v916
      %v989 = vunpack.c.l.b16 %v917
      %v990 = vunpack.c.l.b16 %v918
      %v991 = vunpack.c.l.b16 %v919
      %v992 = vunpack.c.l.b16 %v920
      %v993 = vunpack.c.l.b16 %v921
      %v994 = vunpack.c.l.b16 %v922
      %v995 = vunpack.c.l.b16 %v923
      %v996 = vunpack.c.l.b16 %v924
      %v997 = vunpack.c.l.b16 %v925
      %v998 = vunpack.c.l.b16 %v926
      %v999 = vunpack.c.l.b16 %v927
      %v1000 = vunpack.c.l.b16 %v928
      %v1001 = vunpack.c.l.b16 %v929
      %v1002 = vunpack.c.l.b16 %v930
      %v1003 = vunpack.c.l.b16 %v931
      %v1004 = vunpack.c.l.b16 %v932
      %v1005 = vunpack.c.l.b16 %v933
      %v1006 = vunpack.c.l.b16 %v934
      %v1007 = vunpack.c.l.b16 %v935
      %v1008 = vunpack.c.l.b16 %v936
      %v1009 = vunpack.c.l.b16 %v937
      %v1010 = vunpack.c.l.b16 %v938
      %v1011 = vunpack.c.l.b16 %v939
      %v1012 = vpack.c.b16 %v977, %v976
      %v1013 = vpack.c.b16 %v979, %v978
      %v1014 = vpack.c.b16 %v981, %v980
      %v1015 = vpack.c.b16 %v983, %v982
      %v1016 = vpack.c.b16 %v985, %v984
      %v1017 = vpack.c.b16 %v987, %v986
      %v1018 = vpack.c.b16 %v989, %v988
      %v1019 = vpack.c.b16 %v991, %v990
      %v1020 = vpack.c.b16 %v993, %v992
      %v1021 = vpack.c.b16 %v995, %v994
      %v1022 = vpack.c.b16 %v997, %v996
      %v1023 = vpack.c.b16 %v999, %v998
      %v1024 = vpack.c.b16 %v1001, %v1000
      %v1025 = vpack.c.b16 %v1003, %v1002
      %v1026 = vpack.c.b16 %v1005, %v1004
      %v1027 = vpack.c.b16 %v1007, %v1006
      %v1028 = vpack.c.b16 %v1009, %v1008
      %v1029 = vpack.c.b16 %v1011, %v1010
      %v1049 = vsel %vm837, %v764, 0
      %v1052 = vsel %vm837, %v765, 0
      %v1055 = vsel %vm837, %v766, 0
      %v1058 = vsel %vm837, %v767, 0
      %1060 = vmatprep.subr.bf16.mxu0 0
      %1061 = vmatpush1.bf16.msra.mxu0 %v1012
      %1062 = vmatprep.subr.bf16.mxu0 0
      %1063 = vmatpush1.bf16.msra.mxu0 %v1013
      %1064 = vmatprep.subr.bf16.mxu0 0
      %1065 = vmatpush1.bf16.msra.mxu0 %v1014
      %1066 = vmatprep.subr.bf16.mxu0 0
      %1067 = vmatpush1.bf16.msra.mxu0 %v1015
      %1068 = vmatprep.subr.bf16.mxu0 0
      %1069 = vmatpush1.bf16.msra.mxu0 %v1016
      %1070 = vmatprep.subr.bf16.mxu0 0
      %1071 = vmatpush1.bf16.msra.mxu0 %v1017
      %1072 = vmatprep.subr.bf16.mxu0 0
      %1073 = vmatpush1.bf16.msra.mxu0 %v1018
      %1074 = vmatprep.subr.bf16.mxu0 0
      %1075 = vmatpush1.bf16.msra.mxu0 %v1019
      %1076 = vmatprep.subr.bf16.mxu0 0
      %1077 = vmatpush1.bf16.msra.mxu0 %v1020
      %1078 = vmatprep.subr.bf16.mxu0 0
      %1079 = vmatpush1.bf16.msra.mxu0 %v1021
      %1080 = vmatprep.subr.bf16.mxu0 0
      %1081 = vmatpush1.bf16.msra.mxu0 %v1022
      %1082 = vmatprep.subr.bf16.mxu0 0
      %1083 = vmatpush1.bf16.msra.mxu0 %v1023
      %1084 = vmatprep.subr.bf16.mxu0 0
      %1085 = vmatpush1.bf16.msra.mxu0 %v1024
      %1086 = vmatprep.subr.bf16.mxu0 0
      %1087 = vmatpush1.bf16.msra.mxu0 %v1025
      %1088 = vmatprep.subr.bf16.mxu0 0
      %1089 = vmatpush1.bf16.msra.mxu0 %v1026
      %1090 = vmatprep.subr.bf16.mxu0 0
      %1091 = vmatpush1.bf16.msra.mxu0 %v1027
      %1092 = vmatprep.mubr.bf16.mxu0 %v893
      %1093 = vmatmul.mubr.bf16.gmra.mrb[0].mxu0 %v861
      %v1094 = vpop.f32.mrb[0].mxu0
      %v1095 = vadd.f32 0.0, %v1094
      %v1096 = vpop.f32.mrb[0].mxu0
      %v1097 = vpop.f32.mrb[0].mxu0
      %v1098 = vadd.f32 0.0, %v1097
      %v1099 = vpop.f32.mrb[0].mxu0
      %1100 = vmatprep.mubr.bf16.mxu0 %v896
      %1101 = vmatmul.mubr.bf16.gmra.mrb[0].mxu0 %v864
      %v1102 = vpop.f32.mrb[0].mxu0
      %v1103 = vadd.f32 0.0, %v1102
      %v1104 = vpop.f32.mrb[0].mxu0
      %v1105 = vpop.f32.mrb[0].mxu0
      %v1106 = vadd.f32 0.0, %v1105
      %v1107 = vpop.f32.mrb[0].mxu0
      %1108 = vmatprep.mubr.bf16.mxu0 %v899
      %1109 = vmatmul.mubr.bf16.gmra.mrb[0].mxu0 %v867
      %v1110 = vpop.f32.mrb[0].mxu0
      %v1111 = vadd.f32 0.0, %v1110
      %v1112 = vpop.f32.mrb[0].mxu0
      %v1113 = vpop.f32.mrb[0].mxu0
      %v1114 = vadd.f32 0.0, %v1113
      %v1115 = vpop.f32.mrb[0].mxu0
      %1116 = vmatprep.mubr.bf16.mxu0 %v902
      %1117 = vmatmul.mubr.bf16.gmra.mrb[0].mxu0 %v870
      %v1118 = vpop.f32.mrb[0].mxu0
      %v1119 = vadd.f32 0.0, %v1118
      %v1120 = vpop.f32.mrb[0].mxu0
      %v1121 = vpop.f32.mrb[0].mxu0
      %v1122 = vadd.f32 0.0, %v1121
      %v1123 = vpop.f32.mrb[0].mxu0
      %1124 = vdwg.mxu0
      %1125 = vmatprep.subr.bf16.mxu0 0
      %1126 = vmatpush1.bf16.msra.mxu0 %v1028
      %1127 = vmatprep.subr.bf16.mxu0 0
      %1128 = vmatpush1.bf16.msra.mxu0 %v1029
      %1129 = vmatprep.subr.bf16.mxu0 0
      %1130 = vmatpush1.bf16.msra.mxu0 0
      %1131 = vmatprep.subr.bf16.mxu0 0
      %1132 = vmatpush1.bf16.msra.mxu0 0
      %1133 = vmatprep.subr.bf16.mxu0 0
      %1134 = vmatpush1.bf16.msra.mxu0 0
      %1135 = vmatprep.subr.bf16.mxu0 0
      %1136 = vmatpush1.bf16.msra.mxu0 0
      %1137 = vmatprep.subr.bf16.mxu0 0
      %1138 = vmatpush1.bf16.msra.mxu0 0
      %1139 = vmatprep.subr.bf16.mxu0 0
      %1140 = vmatpush1.bf16.msra.mxu0 0
      %1141 = vmatprep.subr.bf16.mxu0 0
      %1142 = vmatpush1.bf16.msra.mxu0 0
      %1143 = vmatprep.subr.bf16.mxu0 0
      %1144 = vmatpush1.bf16.msra.mxu0 0
      %1145 = vmatprep.subr.bf16.mxu0 0
      %1146 = vmatpush1.bf16.msra.mxu0 0
      %1147 = vmatprep.subr.bf16.mxu0 0
      %1148 = vmatpush1.bf16.msra.mxu0 0
      %1149 = vmatprep.subr.bf16.mxu0 0
      %1150 = vmatpush1.bf16.msra.mxu0 0
      %1151 = vmatprep.subr.bf16.mxu0 0
      %1152 = vmatpush1.bf16.msra.mxu0 0
      %1153 = vmatprep.subr.bf16.mxu0 0
      %1154 = vmatpush1.bf16.msra.mxu0 0
      %1155 = vmatprep.subr.bf16.mxu0 0
      %1156 = vmatpush1.bf16.msra.mxu0 0
      %1157 = vmatprep.mubr.bf16.mxu0 0
      %1158 = vmatmul.mubr.bf16.gmra.mrb[0].mxu0 %v1049
      %v1159 = vpop.f32.mrb[0].mxu0
      %v1160 = vadd.f32 %v1095, %v1159
      %v1161 = vpop.f32.mrb[0].mxu0
      %v1162 = vpop.f32.mrb[0].mxu0
      %v1163 = vadd.f32 %v1098, %v1162
      %v1164 = vpop.f32.mrb[0].mxu0
      %1165 = vmatprep.mubr.bf16.mxu0 0
      %1166 = vmatmul.mubr.bf16.gmra.mrb[0].mxu0 %v1052
      %v1167 = vpop.f32.mrb[0].mxu0
      %v1168 = vadd.f32 %v1103, %v1167
      %v1169 = vpop.f32.mrb[0].mxu0
      %v1170 = vpop.f32.mrb[0].mxu0
      %v1171 = vadd.f32 %v1106, %v1170
      %v1172 = vpop.f32.mrb[0].mxu0
      %1173 = vmatprep.mubr.bf16.mxu0 0
      %1174 = vmatmul.mubr.bf16.gmra.mrb[0].mxu0 %v1055
      %v1175 = vpop.f32.mrb[0].mxu0
      %v1176 = vadd.f32 %v1111, %v1175
      %v1177 = vpop.f32.mrb[0].mxu0
      %v1178 = vpop.f32.mrb[0].mxu0
      %v1179 = vadd.f32 %v1114, %v1178
      %v1180 = vpop.f32.mrb[0].mxu0
      %1181 = vmatprep.mubr.bf16.mxu0 0
      %1182 = vmatmul.mubr.bf16.gmra.mrb[0].mxu0 %v1058
      %v1183 = vpop.f32.mrb[0].mxu0
      %v1184 = vadd.f32 %v1119, %v1183
      %v1185 = vpop.f32.mrb[0].mxu0
      %v1186 = vpop.f32.mrb[0].mxu0
      %v1187 = vadd.f32 %v1122, %v1186
      %v1188 = vpop.f32.mrb[0].mxu0
      %1189 = vdwg.mxu0
      %v1190 = vld [vmem:[%s4] sm:$0x1]
      %v1192 = vlaneseq
      %v1193 = vshrl.u32 %v1192, 7
      %v1194 = vsub.s32 0, %v1193
      %v1195 = vrot.slane %v1190, %v1194
      %v1197 = vmul.f32 %v1160, %v1195
      %v1198 = vmul.f32 %v1163, %v1195
      %v1199 = vmul.f32 %v1168, %v1195
      %v1200 = vmul.f32 %v1171, %v1195
      %v1201 = vmul.f32 %v1176, %v1195
      %v1202 = vmul.f32 %v1179, %v1195
      %v1203 = vmul.f32 %v1184, %v1195
      %v1204 = vmul.f32 %v1187, %v1195
      %v1205 = vld [vmem:[%s5] sm:$0x1]
      %v1207 = vlaneseq
      %v1208 = vshrl.u32 %v1207, 7
      %v1209 = vsub.s32 0, %v1208
      %v1210 = vrot.slane %v1205, %v1209
      %v1212 = vadd.f32 %v1197, %v1210
      %v1213 = vadd.f32 %v1198, %v1210
      %v1214 = vadd.f32 %v1199, %v1210
      %v1215 = vadd.f32 %v1200, %v1210
      %v1216 = vadd.f32 %v1201, %v1210
      %v1217 = vadd.f32 %v1202, %v1210
      %v1218 = vadd.f32 %v1203, %v1210
      %v1219 = vadd.f32 %v1204, %v1210
      %v1220 = vpack.c.bf16 %v1213, %v1212
      %v1221 = vpack.c.bf16 %v1215, %v1214
      %v1222 = vpack.c.bf16 %v1217, %v1216
      %v1223 = vpack.c.bf16 %v1219, %v1218
      %v1224 = vld [vmem:[%s6] sm:$0xf]
      %v1225 = vld [vmem:[%s6 + $0x4] sm:$0xf]
      %v1226 = vld [vmem:[%s6 + $0x8] sm:$0xf]
      %v1227 = vld [vmem:[%s6 + $0xc] sm:$0xf]
      %v1228 = vld [vmem:[%s7] sm:$0x1]
      %v1230 = vlaneseq
      %v1231 = vshrl.u32 %v1230, 7
      %v1232 = vsub.s32 0, %v1231
      %v1233 = vrot.slane %v1228, %v1232
      %v1239 = vunpack.c.l.b16 %v1224
      %v1240 = vunpack.c.l.b16 %v1225
      %v1241 = vunpack.c.l.b16 %v1226
      %v1242 = vunpack.c.l.b16 %v1227
      %v1243 = vpack.c.b16 %v1240, %v1239
      %v1244 = vpack.c.b16 %v1242, %v1241
      %v1248 = vsel %vm837, %v1220, 0
      %v1251 = vsel %vm837, %v1221, 0
      %v1254 = vsel %vm837, %v1222, 0
      %v1257 = vsel %vm837, %v1223, 0
      %1259 = vmatprep.subr.bf16.mxu0 0
      %1260 = vmatpush1.bf16.msra.mxu0 %v1243
      %1261 = vmatprep.subr.bf16.mxu0 0
      %1262 = vmatpush1.bf16.msra.mxu0 %v1244
      %1263 = vmatprep.subr.bf16.mxu0 0
      %1264 = vmatpush1.bf16.msra.mxu0 0
      %1265 = vmatprep.subr.bf16.mxu0 0
      %1266 = vmatpush1.bf16.msra.mxu0 0
      %1267 = vmatprep.subr.bf16.mxu0 0
      %1268 = vmatpush1.bf16.msra.mxu0 0
      %1269 = vmatprep.subr.bf16.mxu0 0
      %1270 = vmatpush1.bf16.msra.mxu0 0
      %1271 = vmatprep.subr.bf16.mxu0 0
      %1272 = vmatpush1.bf16.msra.mxu0 0
      %1273 = vmatprep.subr.bf16.mxu0 0
      %1274 = vmatpush1.bf16.msra.mxu0 0
      %1275 = vmatprep.subr.bf16.mxu0 0
      %1276 = vmatpush1.bf16.msra.mxu0 0
      %1277 = vmatprep.subr.bf16.mxu0 0
      %1278 = vmatpush1.bf16.msra.mxu0 0
      %1279 = vmatprep.subr.bf16.mxu0 0
      %1280 = vmatpush1.bf16.msra.mxu0 0
      %1281 = vmatprep.subr.bf16.mxu0 0
      %1282 = vmatpush1.bf16.msra.mxu0 0
      %1283 = vmatprep.subr.bf16.mxu0 0
      %1284 = vmatpush1.bf16.msra.mxu0 0
      %1285 = vmatprep.subr.bf16.mxu0 0
      %1286 = vmatpush1.bf16.msra.mxu0 0
      %1287 = vmatprep.subr.bf16.mxu0 0
      %1288 = vmatpush1.bf16.msra.mxu0 0
      %1289 = vmatprep.subr.bf16.mxu0 0
      %1290 = vmatpush1.bf16.msra.mxu0 0
      %1291 = vmatprep.mubr.bf16.mxu0 0
      %1292 = vmatmul.mubr.bf16.gmra.mrb[0].mxu0 %v1248
      %v1293 = vpop.f32.mrb[0].mxu0
      %v1294 = vadd.f32 %v1233, %v1293
      %v1295 = vpop.f32.mrb[0].mxu0
      %v1296 = vpop.f32.mrb[0].mxu0
      %v1297 = vadd.f32 %v1233, %v1296
      %v1298 = vpop.f32.mrb[0].mxu0
      %1299 = vmatprep.mubr.bf16.mxu0 0
      %1300 = vmatmul.mubr.bf16.gmra.mrb[0].mxu0 %v1251
      %v1301 = vpop.f32.mrb[0].mxu0
      %v1302 = vadd.f32 %v1233, %v1301
      %v1303 = vpop.f32.mrb[0].mxu0
      %v1304 = vpop.f32.mrb[0].mxu0
      %v1305 = vadd.f32 %v1233, %v1304
      %v1306 = vpop.f32.mrb[0].mxu0
      %1307 = vmatprep.mubr.bf16.mxu0 0
      %1308 = vmatmul.mubr.bf16.gmra.mrb[0].mxu0 %v1254
      %v1309 = vpop.f32.mrb[0].mxu0
      %v1310 = vadd.f32 %v1233, %v1309
      %v1311 = vpop.f32.mrb[0].mxu0
      %v1312 = vpop.f32.mrb[0].mxu0
      %v1313 = vadd.f32 %v1233, %v1312
      %v1314 = vpop.f32.mrb[0].mxu0
      %1315 = vmatprep.mubr.bf16.mxu0 0
      %1316 = vmatmul.mubr.bf16.gmra.mrb[0].mxu0 %v1257
      %v1317 = vpop.f32.mrb[0].mxu0
      %v1318 = vadd.f32 %v1233, %v1317
      %v1319 = vpop.f32.mrb[0].mxu0
      %v1320 = vpop.f32.mrb[0].mxu0
      %v1321 = vadd.f32 %v1233, %v1320
      %v1322 = vpop.f32.mrb[0].mxu0
      %1323 = vdwg.mxu0
      %v1324 = vmax.f32 %v1294, 0.0
      %v1325 = vmax.f32 %v1297, 0.0
      %v1326 = vmax.f32 %v1302, 0.0
      %v1327 = vmax.f32 %v1305, 0.0
      %v1328 = vmax.f32 %v1310, 0.0
      %v1329 = vmax.f32 %v1313, 0.0
      %v1330 = vmax.f32 %v1318, 0.0
      %v1331 = vmax.f32 %v1321, 0.0
      %v1332 = vpack.c.bf16 %v1325, %v1324
      %v1333 = vpack.c.bf16 %v1327, %v1326
      %v1334 = vpack.c.bf16 %v1329, %v1328
      %v1335 = vpack.c.bf16 %v1331, %v1330
      %v1336 = vld [vmem:[%s8] sm:$0xf]
      %v1337 = vld [vmem:[%s8 + $0x4] sm:$0xf]
      %v1338 = vld [vmem:[%s8 + $0x8] sm:$0xf]
      %v1339 = vld [vmem:[%s8 + $0xc] sm:$0xf]
      %v1344 = vunpack.c.l.b16 %v1336
      %v1345 = vunpack.c.l.b16 %v1337
      %v1346 = vunpack.c.l.b16 %v1338
      %v1347 = vunpack.c.l.b16 %v1339
      %v1348 = vpack.c.b16 %v1345, %v1344
      %v1349 = vpack.c.b16 %v1347, %v1346
      %v1353 = vsel %vm837, %v1332, 0
      %v1356 = vsel %vm837, %v1333, 0
      %v1359 = vsel %vm837, %v1334, 0
      %v1362 = vsel %vm837, %v1335, 0
      %1364 = vmatprep.subr.bf16.mxu0 0
      %1365 = vmatpush1.bf16.msra.mxu0 %v1348
      %1366 = vmatprep.subr.bf16.mxu0 0
      %1367 = vmatpush1.bf16.msra.mxu0 %v1349
      %1368 = vmatprep.subr.bf16.mxu0 0
      %1369 = vmatpush1.bf16.msra.mxu0 0
      %1370 = vmatprep.subr.bf16.mxu0 0
      %1371 = vmatpush1.bf16.msra.mxu0 0
      %1372 = vmatprep.subr.bf16.mxu0 0
      %1373 = vmatpush1.bf16.msra.mxu0 0
      %1374 = vmatprep.subr.bf16.mxu0 0
      %1375 = vmatpush1.bf16.msra.mxu0 0
      %1376 = vmatprep.subr.bf16.mxu0 0
      %1377 = vmatpush1.bf16.msra.mxu0 0
      %1378 = vmatprep.subr.bf16.mxu0 0
      %1379 = vmatpush1.bf16.msra.mxu0 0
      %1380 = vmatprep.subr.bf16.mxu0 0
      %1381 = vmatpush1.bf16.msra.mxu0 0
      %1382 = vmatprep.subr.bf16.mxu0 0
      %1383 = vmatpush1.bf16.msra.mxu0 0
      %1384 = vmatprep.subr.bf16.mxu0 0
      %1385 = vmatpush1.bf16.msra.mxu0 0
      %1386 = vmatprep.subr.bf16.mxu0 0
      %1387 = vmatpush1.bf16.msra.mxu0 0
      %1388 = vmatprep.subr.bf16.mxu0 0
      %1389 = vmatpush1.bf16.msra.mxu0 0
      %1390 = vmatprep.subr.bf16.mxu0 0
      %1391 = vmatpush1.bf16.msra.mxu0 0
      %1392 = vmatprep.subr.bf16.mxu0 0
      %1393 = vmatpush1.bf16.msra.mxu0 0
      %1394 = vmatprep.subr.bf16.mxu0 0
      %1395 = vmatpush1.bf16.msra.mxu0 0
      %1396 = vmatprep.mubr.bf16.mxu0 0
      %1397 = vmatmul.mubr.bf16.gmra.mrb[0].mxu0 %v1353
      %v1398 = vpop.f32.mrb[0].mxu0
      %v1399 = vadd.f32 0.0, %v1398
      %v1400 = vpop.f32.mrb[0].mxu0
      %v1401 = vpop.f32.mrb[0].mxu0
      %v1402 = vadd.f32 0.0, %v1401
      %v1403 = vpop.f32.mrb[0].mxu0
      %1404 = vmatprep.mubr.bf16.mxu0 0
      %1405 = vmatmul.mubr.bf16.gmra.mrb[0].mxu0 %v1356
      %v1406 = vpop.f32.mrb[0].mxu0
      %v1407 = vadd.f32 0.0, %v1406
      %v1408 = vpop.f32.mrb[0].mxu0
      %v1409 = vpop.f32.mrb[0].mxu0
      %v1410 = vadd.f32 0.0, %v1409
      %v1411 = vpop.f32.mrb[0].mxu0
      %1412 = vmatprep.mubr.bf16.mxu0 0
      %1413 = vmatmul.mubr.bf16.gmra.mrb[0].mxu0 %v1359
      %v1414 = vpop.f32.mrb[0].mxu0
      %v1415 = vadd.f32 0.0, %v1414
      %v1416 = vpop.f32.mrb[0].mxu0
      %v1417 = vpop.f32.mrb[0].mxu0
      %v1418 = vadd.f32 0.0, %v1417
      %v1419 = vpop.f32.mrb[0].mxu0
      %1420 = vmatprep.mubr.bf16.mxu0 0
      %1421 = vmatmul.mubr.bf16.gmra.mrb[0].mxu0 %v1362
      %v1422 = vpop.f32.mrb[0].mxu0
      %v1423 = vadd.f32 0.0, %v1422
      %v1424 = vpop.f32.mrb[0].mxu0
      %v1425 = vpop.f32.mrb[0].mxu0
      %v1426 = vadd.f32 0.0, %v1425
      %v1427 = vpop.f32.mrb[0].mxu0
      %1428 = vdwg.mxu0
      %v1429 = vadd.f32 %v1212, %v1399
      %v1430 = vadd.f32 %v1213, %v1402
      %v1431 = vadd.f32 %v1214, %v1407
      %v1432 = vadd.f32 %v1215, %v1410
      %v1433 = vadd.f32 %v1216, %v1415
      %v1434 = vadd.f32 %v1217, %v1418
      %v1435 = vadd.f32 %v1218, %v1423
      %v1436 = vadd.f32 %v1219, %v1426
      %v1437 = vld [vmem:[%s9] sm:$0x1]
      %v1439 = vlaneseq
      %v1440 = vshrl.u32 %v1439, 7
      %v1441 = vsub.s32 0, %v1440
      %v1442 = vrot.slane %v1437, %v1441
      %v1444 = vadd.f32 %v1429, %v1442
      %v1445 = vadd.f32 %v1430, %v1442
      %v1446 = vadd.f32 %v1431, %v1442
      %v1447 = vadd.f32 %v1432, %v1442
      %v1448 = vadd.f32 %v1433, %v1442
      %v1449 = vadd.f32 %v1434, %v1442
      %v1450 = vadd.f32 %v1435, %v1442
      %v1451 = vadd.f32 %v1436, %v1442
      %1452 = vst.msk [vmem:[%s379] sm:$0xff] %vm837, %v1444
      %1453 = vst.msk [vmem:[%s379 + $0x8] sm:$0xff] %vm837, %v1445
      %1454 = vst.msk [vmem:[%s379 + $0x10] sm:$0xff] %vm837, %v1446
      %1455 = vst.msk [vmem:[%s379 + $0x18] sm:$0xff] %vm837, %v1447
      %1456 = vst.msk [vmem:[%s379 + $0x20] sm:$0xff] %vm837, %v1448
      %1457 = vst.msk [vmem:[%s379 + $0x28] sm:$0xff] %vm837, %v1449
      %1458 = vst.msk [vmem:[%s379 + $0x30] sm:$0xff] %vm837, %v1450
      %1459 = vst.msk [vmem:[%s379 + $0x38] sm:$0xff] %vm837, %v1451
      %p1460 = scmp.lt.s32.totalorder %s21, 1
      %s1461 = scalar_select %p1460, %s21, 1
      %s1462 = smul.addr %s1461, 8
      %s1463 = smul.addr %s1462, 8
      %s1464 = scalar_lea.vmem %s10, %s1463
      // Predicated region
      $region61: #{aggregation_mul_forward.2} parent=59 // pred_check
        %p1465 = pneg %p259
      $region62: #{aggregation_mul_forward.2} parent=59 // pred_check_branch
        %1467 = sbr.rel (%p1465) target = $region64
      $region63: #{aggregation_mul_forward.2} parent=59 // pred_region
        _
      $region64: #{aggregation_mul_forward.2} parent=59 // pred_fallthru
        _
    $region60: #{aggregation_mul_forward.2} parent=5 // pred_fallthru
      _
    %p1468 = scmp.le.s32.totalorder 2, %s16
    // Predicated region
    $region65: #{aggregation_mul_forward.2} parent=5 // pred_check
      %p1469 = pneg %p1468
    $region66: #{aggregation_mul_forward.2} parent=5 // pred_check_branch
      %1471 = sbr.rel (%p1469) target = $region68
    $region67: #{aggregation_mul_forward.2} parent=5 // pred_region
      %s1472 = ssub.s32 %s16, 2
      // Predicated region
      $region69: #{aggregation_mul_forward.2} parent=67 // pred_check
        %p1473 = pneg %p265
      $region70: #{aggregation_mul_forward.2} parent=67 // pred_check_branch
        %1475 = sbr.rel (%p1473) target = $region72
      $region71: #{aggregation_mul_forward.2} parent=67 // pred_region
        %p1476 = scmp.lt.s32.totalorder %s22, 1
        %s1477 = scalar_select %p1476, %s22, 1
        %s1478 = smul.addr %s1477, 8
        %s1479 = smul.addr %s1478, 8
        %s1480 = scalar_lea.vmem %s10, %s1479
      $region72: #{aggregation_mul_forward.2} parent=67 // pred_fallthru
        _
    $region68: #{aggregation_mul_forward.2} parent=5 // pred_fallthru
      _
  $region6: #{aggregation_mul_forward.2} parent=0 // loop_footer
    %s20 = sadd.s32 1, %s16
  $region7: #{aggregation_mul_forward.2} parent=0 // loop_footer_branch
    %15 = sbr.rel target = $region3
  $region8: #{aggregation_mul_forward.2} parent=0 // loop_exit
    _

// kernel: aggregation_mul_forward.3
$region0: #{aggregation_mul_forward.3}
  #allocation0 [shape = 'u32[]', space=smem, size = 0x4, offset = 0x4, fixed_abs, tag = 'smem constant byte address 0x4 - core index']
  #allocation1 [shape = 'u32[144,128]{1,0:T(1,128)}', space=vmem, size = 0x12000, scoped, tag = 'internal scratch']
  %s0 = inlined_call_operand.vmem [shape: f32[2,64,32], index: 0, kind: input, shape index: {}]
  %s1 = inlined_call_operand.vmem [shape: f32[2,256,32], index: 1, kind: input, shape index: {}]
  %s2 = inlined_call_operand.vmem [shape: bf16[256,64], index: 2, kind: input, shape index: {}]
  %s3 = inlined_call_operand.vmem [shape: bf16[288,32], index: 3, kind: input, shape index: {}]
  %s4 = inlined_call_operand.vmem [shape: f32[1,32], index: 4, kind: input, shape index: {}]
  %s5 = inlined_call_operand.vmem [shape: f32[1,32], index: 5, kind: input, shape index: {}]
  %s6 = inlined_call_operand.vmem [shape: bf16[32,32], index: 6, kind: input, shape index: {}]
  %s7 = inlined_call_operand.vmem [shape: f32[1,32], index: 7, kind: input, shape index: {}]
  %s8 = inlined_call_operand.vmem [shape: bf16[32,32], index: 8, kind: input, shape index: {}]
  %s9 = inlined_call_operand.vmem [shape: f32[1,32], index: 9, kind: input, shape index: {}]
  %s10 = inlined_call_operand.hbm [shape: f32[2,256,32], index: 10, kind: output, shape index: {}]
  %s11 = sld [smem:[#allocation0]]
  $region73: #{aggregation_mul_forward.3} parent=0
    _
  %s13 = ssub.s32 1, %s11
  %s14 = scalar_select 0, %s13, %s11
  $region1: #{aggregation_mul_forward.3} parent=0
    #allocation2 [shape = 'u8[262144]{0}', space=vmem, size = 0x40000, scoped, tag = 'output window, operand 0']
    #allocation3 [shape = 's32[2]{0}', space=sflag, size = 0x8, scoped, tag = 'scoped memory for aggregation_mul_forward.3']
    %15 = vsyncpa [#allocation3], 0
    %s16 = scalar_lea.sflag [#allocation3], 1
    %17 = vsyncpa %s16, 0
    loop: start=0, step=1, limit=4
    $region2: #{aggregation_mul_forward.3} parent=1 // loop_pre_header
      _
    $region3: #{aggregation_mul_forward.3} parent=1 // loop_header
      %s19 = sphi 0, %s23
      %p20 = scmp.ge.s32.totalorder %s19, 4
      %s29 = sphi 0, %s31
      %s32 = sphi 0, %s29
      %s33 = sphi 0, %s32
      %s49 = sphi 0, %s33
      %s55 = sphi 0, %s57
      %s58 = sphi 0, %s55
      %s59 = sphi 0, %s58
      %s75 = sphi 0, %s59
      %s79 = sphi 0, %s79
      %s81 = sphi 0, %s79
      %s82 = sphi 0, %s81
      %s96 = sphi 0, %s82
      %s100 = sphi 0, %s100
      %s102 = sphi 0, %s100
      %s103 = sphi 0, %s102
      %s117 = sphi 0, %s103
      %s121 = sphi 0, %s121
      %s123 = sphi 0, %s121
      %s124 = sphi 0, %s123
      %s138 = sphi 0, %s124
      %s142 = sphi 0, %s142
      %s144 = sphi 0, %s142
      %s145 = sphi 0, %s144
      %s159 = sphi 0, %s145
      %s163 = sphi 0, %s163
      %s165 = sphi 0, %s163
      %s166 = sphi 0, %s165
      %s180 = sphi 0, %s166
      %s184 = sphi 0, %s184
      %s186 = sphi 0, %s184
      %s187 = sphi 0, %s186
      %s201 = sphi 0, %s187
      %s205 = sphi 0, %s205
      %s207 = sphi 0, %s205
      %s208 = sphi 0, %s207
      %s222 = sphi 0, %s208
      %s226 = sphi 0, %s226
      %s228 = sphi 0, %s226
      %s229 = sphi 0, %s228
      %s243 = sphi 0, %s229
      %s249 = sphi 0, %s251
      %s252 = sphi 0, %s249
      %s253 = sphi 0, %s252
      %s269 = sphi 0, %s253
    $region4: #{aggregation_mul_forward.3} parent=1 // loop_header_branch
      %22 = sbr.rel (%p20) target = $region8
    $region5: #{aggregation_mul_forward.3} parent=1 // loop_body
      %s24 = ssub.s32 %s19, 1
      %s25 = ssub.s32 %s19, 2
      %s26 = sadd.s32 %s19, 1
      %s27 = ssub.s32 %s19, %s26
      %p28 = scmp.eq.s32.totalorder %s27, 0
      %s30 = sadd.s32 %s29, 1
      %s31 = scalar_select %p28, %s29, %s30
      %p34 = pneg %p28
      %p35 = scmp.eq.s32.totalorder %s19, 1
      %p36 = por %p34, %p35
      %p37 = scmp.ne.s32.totalorder %s29, %s32
      %p38 = scmp.eq.s32.totalorder %s19, 0
      %p39 = por %p37, %p38
      %p40 = scmp.ne.s32.totalorder %s29, %s32
      %p41 = scmp.eq.s32.totalorder %s24, 1
      %p42 = por %p40, %p41
      %p43 = scmp.ne.s32.totalorder %s32, %s33
      %p44 = scmp.eq.s32.totalorder %s24, 0
      %p45 = por %p43, %p44
      %p46 = scmp.ne.s32.totalorder %s32, %s33
      %p47 = scmp.eq.s32.totalorder %s25, 1
      %p48 = por %p46, %p47
      %p50 = scmp.ne.s32.totalorder %s33, %s49
      %p51 = scmp.eq.s32.totalorder %s25, 0
      %p52 = por %p50, %p51
      %s53 = ssub.s32 %s19, %s26
      %p54 = scmp.eq.s32.totalorder %s53, 0
      %s56 = sadd.s32 %s55, 1
      %s57 = scalar_select %p54, %s55, %s56
      %p60 = pneg %p54
      %p61 = scmp.eq.s32.totalorder %s19, 1
      %p62 = por %p60, %p61
      %p63 = scmp.ne.s32.totalorder %s55, %s58
      %p64 = scmp.eq.s32.totalorder %s19, 0
      %p65 = por %p63, %p64
      %p66 = scmp.ne.s32.totalorder %s55, %s58
      %p67 = scmp.eq.s32.totalorder %s24, 1
      %p68 = por %p66, %p67
      %p69 = scmp.ne.s32.totalorder %s58, %s59
      %p70 = scmp.eq.s32.totalorder %s24, 0
      %p71 = por %p69, %p70
      %p72 = scmp.ne.s32.totalorder %s58, %s59
      %p73 = scmp.eq.s32.totalorder %s25, 1
      %p74 = por %p72, %p73
      %p76 = scmp.ne.s32.totalorder %s59, %s75
      %p77 = scmp.eq.s32.totalorder %s25, 0
      %p78 = por %p76, %p77
      %s80 = sadd.s32 %s79, 1
      %p83 = scmp.eq.s32.totalorder %s19, 1
      %p84 = scmp.ne.s32.totalorder %s79, %s81
      %p85 = scmp.eq.s32.totalorder %s19, 0
      %p86 = por %p84, %p85
      %p87 = scmp.ne.s32.totalorder %s79, %s81
      %p88 = scmp.eq.s32.totalorder %s24, 1
      %p89 = por %p87, %p88
      %p90 = scmp.ne.s32.totalorder %s81, %s82
      %p91 = scmp.eq.s32.totalorder %s24, 0
      %p92 = por %p90, %p91
      %p93 = scmp.ne.s32.totalorder %s81, %s82
      %p94 = scmp.eq.s32.totalorder %s25, 1
      %p95 = por %p93, %p94
      %p97 = scmp.ne.s32.totalorder %s82, %s96
      %p98 = scmp.eq.s32.totalorder %s25, 0
      %p99 = por %p97, %p98
      %s101 = sadd.s32 %s100, 1
      %p104 = scmp.eq.s32.totalorder %s19, 1
      %p105 = scmp.ne.s32.totalorder %s100, %s102
      %p106 = scmp.eq.s32.totalorder %s19, 0
      %p107 = por %p105, %p106
      %p108 = scmp.ne.s32.totalorder %s100, %s102
      %p109 = scmp.eq.s32.totalorder %s24, 1
      %p110 = por %p108, %p109
      %p111 = scmp.ne.s32.totalorder %s102, %s103
      %p112 = scmp.eq.s32.totalorder %s24, 0
      %p113 = por %p111, %p112
      %p114 = scmp.ne.s32.totalorder %s102, %s103
      %p115 = scmp.eq.s32.totalorder %s25, 1
      %p116 = por %p114, %p115
      %p118 = scmp.ne.s32.totalorder %s103, %s117
      %p119 = scmp.eq.s32.totalorder %s25, 0
      %p120 = por %p118, %p119
      %s122 = sadd.s32 %s121, 1
      %p125 = scmp.eq.s32.totalorder %s19, 1
      %p126 = scmp.ne.s32.totalorder %s121, %s123
      %p127 = scmp.eq.s32.totalorder %s19, 0
      %p128 = por %p126, %p127
      %p129 = scmp.ne.s32.totalorder %s121, %s123
      %p130 = scmp.eq.s32.totalorder %s24, 1
      %p131 = por %p129, %p130
      %p132 = scmp.ne.s32.totalorder %s123, %s124
      %p133 = scmp.eq.s32.totalorder %s24, 0
      %p134 = por %p132, %p133
      %p135 = scmp.ne.s32.totalorder %s123, %s124
      %p136 = scmp.eq.s32.totalorder %s25, 1
      %p137 = por %p135, %p136
      %p139 = scmp.ne.s32.totalorder %s124, %s138
      %p140 = scmp.eq.s32.totalorder %s25, 0
      %p141 = por %p139, %p140
      %s143 = sadd.s32 %s142, 1
      %p146 = scmp.eq.s32.totalorder %s19, 1
      %p147 = scmp.ne.s32.totalorder %s142, %s144
      %p148 = scmp.eq.s32.totalorder %s19, 0
      %p149 = por %p147, %p148
      %p150 = scmp.ne.s32.totalorder %s142, %s144
      %p151 = scmp.eq.s32.totalorder %s24, 1
      %p152 = por %p150, %p151
      %p153 = scmp.ne.s32.totalorder %s144, %s145
      %p154 = scmp.eq.s32.totalorder %s24, 0
      %p155 = por %p153, %p154
      %p156 = scmp.ne.s32.totalorder %s144, %s145
      %p157 = scmp.eq.s32.totalorder %s25, 1
      %p158 = por %p156, %p157
      %p160 = scmp.ne.s32.totalorder %s145, %s159
      %p161 = scmp.eq.s32.totalorder %s25, 0
      %p162 = por %p160, %p161
      %s164 = sadd.s32 %s163, 1
      %p167 = scmp.eq.s32.totalorder %s19, 1
      %p168 = scmp.ne.s32.totalorder %s163, %s165
      %p169 = scmp.eq.s32.totalorder %s19, 0
      %p170 = por %p168, %p169
      %p171 = scmp.ne.s32.totalorder %s163, %s165
      %p172 = scmp.eq.s32.totalorder %s24, 1
      %p173 = por %p171, %p172
      %p174 = scmp.ne.s32.totalorder %s165, %s166
      %p175 = scmp.eq.s32.totalorder %s24, 0
      %p176 = por %p174, %p175
      %p177 = scmp.ne.s32.totalorder %s165, %s166
      %p178 = scmp.eq.s32.totalorder %s25, 1
      %p179 = por %p177, %p178
      %p181 = scmp.ne.s32.totalorder %s166, %s180
      %p182 = scmp.eq.s32.totalorder %s25, 0
      %p183 = por %p181, %p182
      %s185 = sadd.s32 %s184, 1
      %p188 = scmp.eq.s32.totalorder %s19, 1
      %p189 = scmp.ne.s32.totalorder %s184, %s186
      %p190 = scmp.eq.s32.totalorder %s19, 0
      %p191 = por %p189, %p190
      %p192 = scmp.ne.s32.totalorder %s184, %s186
      %p193 = scmp.eq.s32.totalorder %s24, 1
      %p194 = por %p192, %p193
      %p195 = scmp.ne.s32.totalorder %s186, %s187
      %p196 = scmp.eq.s32.totalorder %s24, 0
      %p197 = por %p195, %p196
      %p198 = scmp.ne.s32.totalorder %s186, %s187
      %p199 = scmp.eq.s32.totalorder %s25, 1
      %p200 = por %p198, %p199
      %p202 = scmp.ne.s32.totalorder %s187, %s201
      %p203 = scmp.eq.s32.totalorder %s25, 0
      %p204 = por %p202, %p203
      %s206 = sadd.s32 %s205, 1
      %p209 = scmp.eq.s32.totalorder %s19, 1
      %p210 = scmp.ne.s32.totalorder %s205, %s207
      %p211 = scmp.eq.s32.totalorder %s19, 0
      %p212 = por %p210, %p211
      %p213 = scmp.ne.s32.totalorder %s205, %s207
      %p214 = scmp.eq.s32.totalorder %s24, 1
      %p215 = por %p213, %p214
      %p216 = scmp.ne.s32.totalorder %s207, %s208
      %p217 = scmp.eq.s32.totalorder %s24, 0
      %p218 = por %p216, %p217
      %p219 = scmp.ne.s32.totalorder %s207, %s208
      %p220 = scmp.eq.s32.totalorder %s25, 1
      %p221 = por %p219, %p220
      %p223 = scmp.ne.s32.totalorder %s208, %s222
      %p224 = scmp.eq.s32.totalorder %s25, 0
      %p225 = por %p223, %p224
      %s227 = sadd.s32 %s226, 1
      %p230 = scmp.eq.s32.totalorder %s19, 1
      %p231 = scmp.ne.s32.totalorder %s226, %s228
      %p232 = scmp.eq.s32.totalorder %s19, 0
      %p233 = por %p231, %p232
      %p234 = scmp.ne.s32.totalorder %s226, %s228
      %p235 = scmp.eq.s32.totalorder %s24, 1
      %p236 = por %p234, %p235
      %p237 = scmp.ne.s32.totalorder %s228, %s229
      %p238 = scmp.eq.s32.totalorder %s24, 0
      %p239 = por %p237, %p238
      %p240 = scmp.ne.s32.totalorder %s228, %s229
      %p241 = scmp.eq.s32.totalorder %s25, 1
      %p242 = por %p240, %p241
      %p244 = scmp.ne.s32.totalorder %s229, %s243
      %p245 = scmp.eq.s32.totalorder %s25, 0
      %p246 = por %p244, %p245
      %s247 = ssub.s32 %s19, %s26
      %p248 = scmp.eq.s32.totalorder %s247, 0
      %s250 = sadd.s32 %s249, 1
      %s251 = scalar_select %p248, %s249, %s250
      %p254 = pneg %p248
      %p255 = scmp.eq.s32.totalorder %s19, 1
      %p256 = por %p254, %p255
      %p257 = scmp.ne.s32.totalorder %s249, %s252
      %p258 = scmp.eq.s32.totalorder %s19, 0
      %p259 = por %p257, %p258
      %p260 = scmp.ne.s32.totalorder %s249, %s252
      %p261 = scmp.eq.s32.totalorder %s24, 1
      %p262 = por %p260, %p261
      %p263 = scmp.ne.s32.totalorder %s252, %s253
      %p264 = scmp.eq.s32.totalorder %s24, 0
      %p265 = por %p263, %p264
      %p266 = scmp.ne.s32.totalorder %s252, %s253
      %p267 = scmp.eq.s32.totalorder %s25, 1
      %p268 = por %p266, %p267
      %p270 = scmp.ne.s32.totalorder %s253, %s269
      %p271 = scmp.eq.s32.totalorder %s25, 0
      %p272 = por %p270, %p271
      %p273 = scmp.le.s32.totalorder 1, %s19
      %p274 = scmp.lt.s32.totalorder %s19, 3
      %p275 = pnand %p273, %p274
      %p276 = pneg %p275
      // Predicated region
      $region9: #{aggregation_mul_forward.3} parent=5 // pred_check
        _
      $region10: #{aggregation_mul_forward.3} parent=5 // pred_check_branch
        %278 = sbr.rel (%p275) target = $region12
      $region11: #{aggregation_mul_forward.3} parent=5 // pred_region
        %s279 = ssub.s32 %s19, 1
        // Predicated region
        $region13: #{aggregation_mul_forward.3} parent=11 // pred_check
          %p280 = pneg %p92
        $region14: #{aggregation_mul_forward.3} parent=11 // pred_check_branch
          %282 = sbr.rel (%p280) target = $region16
        $region15: #{aggregation_mul_forward.3} parent=11 // pred_region
          _
        $region16: #{aggregation_mul_forward.3} parent=11 // pred_fallthru
          _
        // Predicated region
        $region17: #{aggregation_mul_forward.3} parent=11 // pred_check
          %p283 = pneg %p113
        $region18: #{aggregation_mul_forward.3} parent=11 // pred_check_branch
          %285 = sbr.rel (%p283) target = $region20
        $region19: #{aggregation_mul_forward.3} parent=11 // pred_region
          _
        $region20: #{aggregation_mul_forward.3} parent=11 // pred_fallthru
          _
        // Predicated region
        $region21: #{aggregation_mul_forward.3} parent=11 // pred_check
          %p286 = pneg %p134
        $region22: #{aggregation_mul_forward.3} parent=11 // pred_check_branch
          %288 = sbr.rel (%p286) target = $region24
        $region23: #{aggregation_mul_forward.3} parent=11 // pred_region
          _
        $region24: #{aggregation_mul_forward.3} parent=11 // pred_fallthru
          _
        // Predicated region
        $region25: #{aggregation_mul_forward.3} parent=11 // pred_check
          %p289 = pneg %p155
        $region26: #{aggregation_mul_forward.3} parent=11 // pred_check_branch
          %291 = sbr.rel (%p289) target = $region28
        $region27: #{aggregation_mul_forward.3} parent=11 // pred_region
          _
        $region28: #{aggregation_mul_forward.3} parent=11 // pred_fallthru
          _
        // Predicated region
        $region29: #{aggregation_mul_forward.3} parent=11 // pred_check
          %p292 = pneg %p176
        $region30: #{aggregation_mul_forward.3} parent=11 // pred_check_branch
          %294 = sbr.rel (%p292) target = $region32
        $region31: #{aggregation_mul_forward.3} parent=11 // pred_region
          _
        $region32: #{aggregation_mul_forward.3} parent=11 // pred_fallthru
          _
        // Predicated region
        $region33: #{aggregation_mul_forward.3} parent=11 // pred_check
          %p295 = pneg %p197
        $region34: #{aggregation_mul_forward.3} parent=11 // pred_check_branch
          %297 = sbr.rel (%p295) target = $region36
        $region35: #{aggregation_mul_forward.3} parent=11 // pred_region
          _
        $region36: #{aggregation_mul_forward.3} parent=11 // pred_fallthru
          _
        // Predicated region
        $region37: #{aggregation_mul_forward.3} parent=11 // pred_check
          %p298 = pneg %p218
        $region38: #{aggregation_mul_forward.3} parent=11 // pred_check_branch
          %300 = sbr.rel (%p298) target = $region40
        $region39: #{aggregation_mul_forward.3} parent=11 // pred_region
          _
        $region40: #{aggregation_mul_forward.3} parent=11 // pred_fallthru
          _
        // Predicated region
        $region41: #{aggregation_mul_forward.3} parent=11 // pred_check
          %p301 = pneg %p239
        $region42: #{aggregation_mul_forward.3} parent=11 // pred_check_branch
          %303 = sbr.rel (%p301) target = $region44
        $region43: #{aggregation_mul_forward.3} parent=11 // pred_region
          _
        $region44: #{aggregation_mul_forward.3} parent=11 // pred_fallthru
          _
      $region12: #{aggregation_mul_forward.3} parent=5 // pred_fallthru
        _
      %p304 = scmp.lt.s32.totalorder %s19, 2
      // Predicated region
      $region45: #{aggregation_mul_forward.3} parent=5 // pred_check
        %p305 = pneg %p304
      $region46: #{aggregation_mul_forward.3} parent=5 // pred_check_branch
        %307 = sbr.rel (%p305) target = $region48
      $region47: #{aggregation_mul_forward.3} parent=5 // pred_region
        // Predicated region
        $region49: #{aggregation_mul_forward.3} parent=47 // pred_check
          %p308 = pneg %p39
        $region50: #{aggregation_mul_forward.3} parent=47 // pred_check_branch
          %310 = sbr.rel (%p308) target = $region52
        $region51: #{aggregation_mul_forward.3} parent=47 // pred_region
          %p311 = scmp.lt.s32.totalorder %s19, 1
          %s312 = scalar_select %p311, %s19, 1
          %s313 = smul.addr %s312, 8
          %s314 = smul.addr %s313, 8
          %s315 = scalar_lea.vmem %s0, %s314
        $region52: #{aggregation_mul_forward.3} parent=47 // pred_fallthru
          _
        // Predicated region
        $region53: #{aggregation_mul_forward.3} parent=47 // pred_check
          %p316 = pneg %p65
        $region54: #{aggregation_mul_forward.3} parent=47 // pred_check_branch
          %318 = sbr.rel (%p316) target = $region56
        $region55: #{aggregation_mul_forward.3} parent=47 // pred_region
          %p319 = scmp.lt.s32.totalorder %s19, 1
          %s320 = scalar_select %p319, %s19, 1
          %s321 = smul.addr %s320, 32
          %s322 = smul.addr %s321, 8
          %s323 = scalar_lea.vmem %s1, %s322
        $region56: #{aggregation_mul_forward.3} parent=47 // pred_fallthru
          _
      $region48: #{aggregation_mul_forward.3} parent=5 // pred_fallthru
        _
      %p324 = scmp.le.s32.totalorder 1, %s19
      %p325 = scmp.lt.s32.totalorder %s19, 3
      %p326 = pnand %p324, %p325
      %p327 = pneg %p326
      // Predicated region
      $region57: #{aggregation_mul_forward.3} parent=5 // pred_check
        _
      $region58: #{aggregation_mul_forward.3} parent=5 // pred_check_branch
        %329 = sbr.rel (%p326) target = $region60
      $region59: #{aggregation_mul_forward.3} parent=5 // pred_region
        %s330 = ssub.s32 %s19, 1
        %p331 = scmp.lt.s32.totalorder %s24, 1
        %s332 = scalar_select %p331, %s24, 1
        %s333 = smul.addr %s332, 8
        %s334 = smul.addr %s333, 8
        %s335 = scalar_lea.vmem %s0, %s334
        %p336 = pneg %p45
        %p337 = pneg %p42
        %p338 = scmp.lt.s32.totalorder %s24, 1
        %s339 = scalar_select %p338, %s24, 1
        %s340 = smul.addr %s339, 32
        %s341 = smul.addr %s340, 8
        %s342 = scalar_lea.vmem %s1, %s341
        %p343 = pneg %p71
        %p344 = pneg %p68
        %p345 = pneg %p92
        %p346 = pneg %p89
        %p347 = pneg %p113
        %p348 = pneg %p110
        %p349 = pneg %p134
        %p350 = pneg %p131
        %p351 = pneg %p155
        %p352 = pneg %p152
        %p353 = pneg %p176
        %p354 = pneg %p173
        %p355 = pneg %p197
        %p356 = pneg %p194
        %p357 = pneg %p218
        %p358 = pneg %p215
        %p359 = pneg %p239
        %p360 = pneg %p236
        %p361 = pneg %p265
        %p362 = pneg %p262
        %s363 = sand.u32 %s252, 1
        %s364 = scalar_lea.sflag [#allocation3], %s363
        %s365 = sand.u32 %s252, 1
        %s366 = smul.addr %s365, 256
        %s367 = scalar_lea.vmem [#allocation2], %s366
        %p368 = scmp.lt.s32.totalorder %s24, 1
        %s369 = scalar_select %p368, %s24, 1
        %s370 = smul.addr %s369, 8
        %s371 = smul.addr %s370, 8
        %s372 = scalar_lea.vmem %s0, %s371
        %p373 = scmp.lt.s32.totalorder %s24, 1
        %s374 = scalar_select %p373, %s24, 1
        %s375 = smul.addr %s374, 32
        %s376 = smul.addr %s375, 8
        %s377 = scalar_lea.vmem %s1, %s376
        %v379 = vld [vmem:[%s2] sm:$0xf]
        %v380 = vld [vmem:[%s2 + $0x4] sm:$0xf]
        %v381 = vld [vmem:[%s2 + $0x8] sm:$0xf]
        %v382 = vld [vmem:[%s2 + $0xc] sm:$0xf]
        %v383 = vld [vmem:[%s2 + $0x10] sm:$0xf]
        %v384 = vld [vmem:[%s2 + $0x14] sm:$0xf]
        %v385 = vld [vmem:[%s2 + $0x18] sm:$0xf]
        %v386 = vld [vmem:[%s2 + $0x1c] sm:$0xf]
        %v387 = vld [vmem:[%s2 + $0x20] sm:$0xf]
        %v388 = vld [vmem:[%s2 + $0x24] sm:$0xf]
        %v389 = vld [vmem:[%s2 + $0x28] sm:$0xf]
        %v390 = vld [vmem:[%s2 + $0x2c] sm:$0xf]
        %v391 = vld [vmem:[%s2 + $0x30] sm:$0xf]
        %v392 = vld [vmem:[%s2 + $0x34] sm:$0xf]
        %v393 = vld [vmem:[%s2 + $0x38] sm:$0xf]
        %v394 = vld [vmem:[%s2 + $0x3c] sm:$0xf]
        %v395 = vld [vmem:[%s2 + $0x40] sm:$0xf]
        %v396 = vld [vmem:[%s2 + $0x44] sm:$0xf]
        %v397 = vld [vmem:[%s2 + $0x48] sm:$0xf]
        %v398 = vld [vmem:[%s2 + $0x4c] sm:$0xf]
        %v399 = vld [vmem:[%s2 + $0x50] sm:$0xf]
        %v400 = vld [vmem:[%s2 + $0x54] sm:$0xf]
        %v401 = vld [vmem:[%s2 + $0x58] sm:$0xf]
        %v402 = vld [vmem:[%s2 + $0x5c] sm:$0xf]
        %v403 = vld [vmem:[%s2 + $0x60] sm:$0xf]
        %v404 = vld [vmem:[%s2 + $0x64] sm:$0xf]
        %v405 = vld [vmem:[%s2 + $0x68] sm:$0xf]
        %v406 = vld [vmem:[%s2 + $0x6c] sm:$0xf]
        %v407 = vld [vmem:[%s2 + $0x70] sm:$0xf]
        %v408 = vld [vmem:[%s2 + $0x74] sm:$0xf]
        %v409 = vld [vmem:[%s2 + $0x78] sm:$0xf]
        %v410 = vld [vmem:[%s2 + $0x7c] sm:$0xf]
        %v411 = vld [vmem:[%s372] sm:$0xff]
        %v412 = vld [vmem:[%s372 + $0x8] sm:$0xff]
        %v413 = vld [vmem:[%s372 + $0x10] sm:$0xff]
        %v414 = vld [vmem:[%s372 + $0x18] sm:$0xff]
        %v415 = vld [vmem:[%s372 + $0x20] sm:$0xff]
        %v416 = vld [vmem:[%s372 + $0x28] sm:$0xff]
        %v417 = vld [vmem:[%s372 + $0x30] sm:$0xff]
        %v418 = vld [vmem:[%s372 + $0x38] sm:$0xff]
        %v419 = vpack.c.bf16 %v412, %v411
        %v420 = vpack.c.bf16 %v414, %v413
        %v421 = vpack.c.bf16 %v416, %v415
        %v422 = vpack.c.bf16 %v418, %v417
        %v455 = vunpack.c.l.b16 %v379
        %v456 = vunpack.c.l.b16 %v380
        %v457 = vunpack.c.l.b16 %v381
        %v458 = vunpack.c.l.b16 %v382
        %v459 = vunpack.c.l.b16 %v383
        %v460 = vunpack.c.l.b16 %v384
        %v461 = vunpack.c.l.b16 %v385
        %v462 = vunpack.c.l.b16 %v386
        %v463 = vunpack.c.l.b16 %v387
        %v464 = vunpack.c.l.b16 %v388
        %v465 = vunpack.c.l.b16 %v389
        %v466 = vunpack.c.l.b16 %v390
        %v467 = vunpack.c.l.b16 %v391
        %v468 = vunpack.c.l.b16 %v392
        %v469 = vunpack.c.l.b16 %v393
        %v470 = vunpack.c.l.b16 %v394
        %v471 = vunpack.c.l.b16 %v395
        %v472 = vunpack.c.l.b16 %v396
        %v473 = vunpack.c.l.b16 %v397
        %v474 = vunpack.c.l.b16 %v398
        %v475 = vunpack.c.l.b16 %v399
        %v476 = vunpack.c.l.b16 %v400
        %v477 = vunpack.c.l.b16 %v401
        %v478 = vunpack.c.l.b16 %v402
        %v479 = vunpack.c.l.b16 %v403
        %v480 = vunpack.c.l.b16 %v404
        %v481 = vunpack.c.l.b16 %v405
        %v482 = vunpack.c.l.b16 %v406
        %v483 = vunpack.c.l.b16 %v407
        %v484 = vunpack.c.l.b16 %v408
        %v485 = vunpack.c.l.b16 %v409
        %v486 = vunpack.c.l.b16 %v410
        %v487 = vpack.c.b16 %v456, %v455
        %v488 = vpack.c.b16 %v458, %v457
        %v489 = vpack.c.b16 %v460, %v459
        %v490 = vpack.c.b16 %v462, %v461
        %v491 = vpack.c.b16 %v464, %v463
        %v492 = vpack.c.b16 %v466, %v465
        %v493 = vpack.c.b16 %v468, %v467
        %v494 = vpack.c.b16 %v470, %v469
        %v495 = vpack.c.b16 %v472, %v471
        %v496 = vpack.c.b16 %v474, %v473
        %v497 = vpack.c.b16 %v476, %v475
        %v498 = vpack.c.b16 %v478, %v477
        %v499 = vpack.c.b16 %v480, %v479
        %v500 = vpack.c.b16 %v482, %v481
        %v501 = vpack.c.b16 %v484, %v483
        %v502 = vpack.c.b16 %v486, %v485
        %vm503 = vcmask 523264
        %v505 = vsel %vm503, %v487, 0
        %v508 = vsel %vm503, %v488, 0
        %v511 = vsel %vm503, %v489, 0
        %v514 = vsel %vm503, %v490, 0
        %v517 = vsel %vm503, %v491, 0
        %v520 = vsel %vm503, %v492, 0
        %v523 = vsel %vm503, %v493, 0
        %v526 = vsel %vm503, %v494, 0
        %v529 = vsel %vm503, %v495, 0
        %v532 = vsel %vm503, %v496, 0
        %v535 = vsel %vm503, %v497, 0
        %v538 = vsel %vm503, %v498, 0
        %v541 = vsel %vm503, %v499, 0
        %v544 = vsel %vm503, %v500, 0
        %v547 = vsel %vm503, %v501, 0
        %v550 = vsel %vm503, %v502, 0
        %552 = vmatprep.subr.bf16.mxu0 0
        %553 = vmatpush1.bf16.msra.mxu0 %v419
        %554 = vmatprep.subr.bf16.mxu0 0
        %555 = vmatpush1.bf16.msra.mxu0 %v420
        %556 = vmatprep.subr.bf16.mxu0 0
        %557 = vmatpush1.bf16.msra.mxu0 %v421
        %558 = vmatprep.subr.bf16.mxu0 0
        %559 = vmatpush1.bf16.msra.mxu0 %v422
        %560 = vmatprep.subr.bf16.mxu0 0
        %561 = vmatpush1.bf16.msra.mxu0 0
        %562 = vmatprep.subr.bf16.mxu0 0
        %563 = vmatpush1.bf16.msra.mxu0 0
        %564 = vmatprep.subr.bf16.mxu0 0
        %565 = vmatpush1.bf16.msra.mxu0 0
        %566 = vmatprep.subr.bf16.mxu0 0
        %567 = vmatpush1.bf16.msra.mxu0 0
        %568 = vmatprep.subr.bf16.mxu0 0
        %569 = vmatpush1.bf16.msra.mxu0 0
        %570 = vmatprep.subr.bf16.mxu0 0
        %571 = vmatpush1.bf16.msra.mxu0 0
        %572 = vmatprep.subr.bf16.mxu0 0
        %573 = vmatpush1.bf16.msra.mxu0 0
        %574 = vmatprep.subr.bf16.mxu0 0
        %575 = vmatpush1.bf16.msra.mxu0 0
        %576 = vmatprep.subr.bf16.mxu0 0
        %577 = vmatpush1.bf16.msra.mxu0 0
        %578 = vmatprep.subr.bf16.mxu0 0
        %579 = vmatpush1.bf16.msra.mxu0 0
        %580 = vmatprep.subr.bf16.mxu0 0
        %581 = vmatpush1.bf16.msra.mxu0 0
        %582 = vmatprep.subr.bf16.mxu0 0
        %583 = vmatpush1.bf16.msra.mxu0 0
        %584 = vmatprep.mubr.bf16.mxu0 0
        %585 = vmatmul.mubr.bf16.gmra.mrb[0].mxu0 %v505
        %v586 = vpop.f32.mrb[0].mxu0
        %v587 = vadd.f32 0.0, %v586
        %v588 = vpop.f32.mrb[0].mxu0
        %v589 = vpop.f32.mrb[0].mxu0
        %v590 = vadd.f32 0.0, %v589
        %v591 = vpop.f32.mrb[0].mxu0
        %592 = vmatprep.mubr.bf16.mxu0 0
        %593 = vmatmul.mubr.bf16.gmra.mrb[0].mxu0 %v508
        %v594 = vpop.f32.mrb[0].mxu0
        %v595 = vadd.f32 0.0, %v594
        %v596 = vpop.f32.mrb[0].mxu0
        %v597 = vpop.f32.mrb[0].mxu0
        %v598 = vadd.f32 0.0, %v597
        %v599 = vpop.f32.mrb[0].mxu0
        %600 = vmatprep.mubr.bf16.mxu0 0
        %601 = vmatmul.mubr.bf16.gmra.mrb[0].mxu0 %v511
        %v602 = vpop.f32.mrb[0].mxu0
        %v603 = vadd.f32 0.0, %v602
        %v604 = vpop.f32.mrb[0].mxu0
        %v605 = vpop.f32.mrb[0].mxu0
        %v606 = vadd.f32 0.0, %v605
        %v607 = vpop.f32.mrb[0].mxu0
        %608 = vmatprep.mubr.bf16.mxu0 0
        %609 = vmatmul.mubr.bf16.gmra.mrb[0].mxu0 %v514
        %v610 = vpop.f32.mrb[0].mxu0
        %v611 = vadd.f32 0.0, %v610
        %v612 = vpop.f32.mrb[0].mxu0
        %v613 = vpop.f32.mrb[0].mxu0
        %v614 = vadd.f32 0.0, %v613
        %v615 = vpop.f32.mrb[0].mxu0
        %616 = vmatprep.mubr.bf16.mxu0 0
        %617 = vmatmul.mubr.bf16.gmra.mrb[0].mxu0 %v517
        %v618 = vpop.f32.mrb[0].mxu0
        %v619 = vadd.f32 0.0, %v618
        %v620 = vpop.f32.mrb[0].mxu0
        %v621 = vpop.f32.mrb[0].mxu0
        %v622 = vadd.f32 0.0, %v621
        %v623 = vpop.f32.mrb[0].mxu0
        %624 = vmatprep.mubr.bf16.mxu0 0
        %625 = vmatmul.mubr.bf16.gmra.mrb[0].mxu0 %v520
        %v626 = vpop.f32.mrb[0].mxu0
        %v627 = vadd.f32 0.0, %v626
        %v628 = vpop.f32.mrb[0].mxu0
        %v629 = vpop.f32.mrb[0].mxu0
        %v630 = vadd.f32 0.0, %v629
        %v631 = vpop.f32.mrb[0].mxu0
        %632 = vmatprep.mubr.bf16.mxu0 0
        %633 = vmatmul.mubr.bf16.gmra.mrb[0].mxu0 %v523
        %v634 = vpop.f32.mrb[0].mxu0
        %v635 = vadd.f32 0.0, %v634
        %v636 = vpop.f32.mrb[0].mxu0
        %v637 = vpop.f32.mrb[0].mxu0
        %v638 = vadd.f32 0.0, %v637
        %v639 = vpop.f32.mrb[0].mxu0
        %640 = vmatprep.mubr.bf16.mxu0 0
        %641 = vmatmul.mubr.bf16.gmra.mrb[0].mxu0 %v526
        %v642 = vpop.f32.mrb[0].mxu0
        %v643 = vadd.f32 0.0, %v642
        %v644 = vpop.f32.mrb[0].mxu0
        %v645 = vpop.f32.mrb[0].mxu0
        %v646 = vadd.f32 0.0, %v645
        %v647 = vpop.f32.mrb[0].mxu0
        %648 = vmatprep.mubr.bf16.mxu0 0
        %649 = vmatmul.mubr.bf16.gmra.mrb[0].mxu0 %v529
        %v650 = vpop.f32.mrb[0].mxu0
        %v651 = vadd.f32 0.0, %v650
        %v652 = vpop.f32.mrb[0].mxu0
        %v653 = vpop.f32.mrb[0].mxu0
        %v654 = vadd.f32 0.0, %v653
        %v655 = vpop.f32.mrb[0].mxu0
        %656 = vmatprep.mubr.bf16.mxu0 0
        %657 = vmatmul.mubr.bf16.gmra.mrb[0].mxu0 %v532
        %v658 = vpop.f32.mrb[0].mxu0
        %v659 = vadd.f32 0.0, %v658
        %v660 = vpop.f32.mrb[0].mxu0
        %v661 = vpop.f32.mrb[0].mxu0
        %v662 = vadd.f32 0.0, %v661
        %v663 = vpop.f32.mrb[0].mxu0
        %664 = vmatprep.mubr.bf16.mxu0 0
        %665 = vmatmul.mubr.bf16.gmra.mrb[0].mxu0 %v535
        %v666 = vpop.f32.mrb[0].mxu0
        %v667 = vadd.f32 0.0, %v666
        %v668 = vpop.f32.mrb[0].mxu0
        %v669 = vpop.f32.mrb[0].mxu0
        %v670 = vadd.f32 0.0, %v669
        %v671 = vpop.f32.mrb[0].mxu0
        %672 = vmatprep.mubr.bf16.mxu0 0
        %673 = vmatmul.mubr.bf16.gmra.mrb[0].mxu0 %v538
        %v674 = vpop.f32.mrb[0].mxu0
        %v675 = vadd.f32 0.0, %v674
        %v676 = vpop.f32.mrb[0].mxu0
        %v677 = vpop.f32.mrb[0].mxu0
        %v678 = vadd.f32 0.0, %v677
        %v679 = vpop.f32.mrb[0].mxu0
        %680 = vmatprep.mubr.bf16.mxu0 0
        %681 = vmatmul.mubr.bf16.gmra.mrb[0].mxu0 %v541
        %v682 = vpop.f32.mrb[0].mxu0
        %v683 = vadd.f32 0.0, %v682
        %v684 = vpop.f32.mrb[0].mxu0
        %v685 = vpop.f32.mrb[0].mxu0
        %v686 = vadd.f32 0.0, %v685
        %v687 = vpop.f32.mrb[0].mxu0
        %688 = vmatprep.mubr.bf16.mxu0 0
        %689 = vmatmul.mubr.bf16.gmra.mrb[0].mxu0 %v544
        %v690 = vpop.f32.mrb[0].mxu0
        %v691 = vadd.f32 0.0, %v690
        %v692 = vpop.f32.mrb[0].mxu0
        %v693 = vpop.f32.mrb[0].mxu0
        %v694 = vadd.f32 0.0, %v693
        %v695 = vpop.f32.mrb[0].mxu0
        %696 = vmatprep.mubr.bf16.mxu0 0
        %697 = vmatmul.mubr.bf16.gmra.mrb[0].mxu0 %v547
        %v698 = vpop.f32.mrb[0].mxu0
        %v699 = vadd.f32 0.0, %v698
        %v700 = vpop.f32.mrb[0].mxu0
        %v701 = vpop.f32.mrb[0].mxu0
        %v702 = vadd.f32 0.0, %v701
        %v703 = vpop.f32.mrb[0].mxu0
        %704 = vmatprep.mubr.bf16.mxu0 0
        %705 = vmatmul.mubr.bf16.gmra.mrb[0].mxu0 %v550
        %v706 = vpop.f32.mrb[0].mxu0
        %v707 = vadd.f32 0.0, %v706
        %v708 = vpop.f32.mrb[0].mxu0
        %v709 = vpop.f32.mrb[0].mxu0
        %v710 = vadd.f32 0.0, %v709
        %v711 = vpop.f32.mrb[0].mxu0
        %712 = vdwg.mxu0
        %v713 = vld [vmem:[%s377] sm:$0xff]
        %v714 = vld [vmem:[%s377 + $0x8] sm:$0xff]
        %v715 = vld [vmem:[%s377 + $0x10] sm:$0xff]
        %v716 = vld [vmem:[%s377 + $0x18] sm:$0xff]
        %v717 = vld [vmem:[%s377 + $0x20] sm:$0xff]
        %v718 = vld [vmem:[%s377 + $0x28] sm:$0xff]
        %v719 = vld [vmem:[%s377 + $0x30] sm:$0xff]
        %v720 = vld [vmem:[%s377 + $0x38] sm:$0xff]
        %v721 = vld [vmem:[%s377 + $0x40] sm:$0xff]
        %v722 = vld [vmem:[%s377 + $0x48] sm:$0xff]
        %v723 = vld [vmem:[%s377 + $0x50] sm:$0xff]
        %v724 = vld [vmem:[%s377 + $0x58] sm:$0xff]
        %v725 = vld [vmem:[%s377 + $0x60] sm:$0xff]
        %v726 = vld [vmem:[%s377 + $0x68] sm:$0xff]
        %v727 = vld [vmem:[%s377 + $0x70] sm:$0xff]
        %v728 = vld [vmem:[%s377 + $0x78] sm:$0xff]
        %v729 = vld [vmem:[%s377 + $0x80] sm:$0xff]
        %v730 = vld [vmem:[%s377 + $0x88] sm:$0xff]
        %v731 = vld [vmem:[%s377 + $0x90] sm:$0xff]
        %v732 = vld [vmem:[%s377 + $0x98] sm:$0xff]
        %v733 = vld [vmem:[%s377 + $0xa0] sm:$0xff]
        %v734 = vld [vmem:[%s377 + $0xa8] sm:$0xff]
        %v735 = vld [vmem:[%s377 + $0xb0] sm:$0xff]
        %v736 = vld [vmem:[%s377 + $0xb8] sm:$0xff]
        %v737 = vld [vmem:[%s377 + $0xc0] sm:$0xff]
        %v738 = vld [vmem:[%s377 + $0xc8] sm:$0xff]
        %v739 = vld [vmem:[%s377 + $0xd0] sm:$0xff]
        %v740 = vld [vmem:[%s377 + $0xd8] sm:$0xff]
        %v741 = vld [vmem:[%s377 + $0xe0] sm:$0xff]
        %v742 = vld [vmem:[%s377 + $0xe8] sm:$0xff]
        %v743 = vld [vmem:[%s377 + $0xf0] sm:$0xff]
        %v744 = vld [vmem:[%s377 + $0xf8] sm:$0xff]
        %v745 = vmul.f32 %v713, %v587
        %v746 = vmul.f32 %v714, %v590
        %v747 = vmul.f32 %v715, %v595
        %v748 = vmul.f32 %v716, %v598
        %v749 = vmul.f32 %v717, %v603
        %v750 = vmul.f32 %v718, %v606
        %v751 = vmul.f32 %v719, %v611
        %v752 = vmul.f32 %v720, %v614
        %v753 = vmul.f32 %v721, %v619
        %v754 = vmul.f32 %v722, %v622
        %v755 = vmul.f32 %v723, %v627
        %v756 = vmul.f32 %v724, %v630
        %v757 = vmul.f32 %v725, %v635
        %v758 = vmul.f32 %v726, %v638
        %v759 = vmul.f32 %v727, %v643
        %v760 = vmul.f32 %v728, %v646
        %v761 = vmul.f32 %v729, %v651
        %v762 = vmul.f32 %v730, %v654
        %v763 = vmul.f32 %v731, %v659
        %v764 = vmul.f32 %v732, %v662
        %v765 = vmul.f32 %v733, %v667
        %v766 = vmul.f32 %v734, %v670
        %v767 = vmul.f32 %v735, %v675
        %v768 = vmul.f32 %v736, %v678
        %v769 = vmul.f32 %v737, %v683
        %v770 = vmul.f32 %v738, %v686
        %v771 = vmul.f32 %v739, %v691
        %v772 = vmul.f32 %v740, %v694
        %v773 = vmul.f32 %v741, %v699
        %v774 = vmul.f32 %v742, %v702
        %v775 = vmul.f32 %v743, %v707
        %v776 = vmul.f32 %v744, %v710
        %v777 = vlaneseq
        %v778 = vshrl.u32 %v777, 7
        %v779 = vadd.s32 %v778, 8
        %v780 = vadd.s32 %v778, 16
        %v781 = vadd.s32 %v778, 24
        %v782 = vadd.s32 %v778, 32
        %v783 = vadd.s32 %v778, 40
        %v784 = vadd.s32 %v778, 48
        %v785 = vadd.s32 %v778, 56
        %v786 = vadd.s32 %v778, 64
        %v787 = vadd.s32 %v778, 72
        %v788 = vadd.s32 %v778, 80
        %v789 = vadd.s32 %v778, 88
        %v790 = vadd.s32 %v778, 96
        %v791 = vadd.s32 %v778, 104
        %v792 = vadd.s32 %v778, 112
        %v793 = vadd.s32 %v778, 120
        %v794 = vadd.s32 %v778, 128
        %v795 = vadd.s32 %v778, 136
        %v796 = vadd.s32 %v778, 144
        %v797 = vadd.s32 %v778, 152
        %v798 = vadd.s32 %v778, 160
        %v799 = vadd.s32 %v778, 168
        %v800 = vadd.s32 %v778, 176
        %v801 = vadd.s32 %v778, 184
        %v802 = vadd.s32 %v778, 192
        %v803 = vadd.s32 %v778, 200
        %v804 = vadd.s32 %v778, 208
        %v805 = vadd.s32 %v778, 216
        %v806 = vadd.s32 %v778, 224
        %v807 = vadd.s32 %v778, 232
        %v808 = vadd.s32 %v778, 240
        %v809 = vadd.s32 %v778, 248
        %vm810 = vcmp.lt.s32.totalorder %v778, 0
        %v811 = vsub.s32 0, %v778
        %v812 = vsel %vm810, %v811, %v778
        %v813 = vshrl.u32 %v812, 4
        %v814 = vand.u32 %v812, 15
        %v815 = vsub.s32 0, %v814
        %v816 = vsel %vm810, %v815, %v814
        %vm817 = vcmp.lt.s32.totalorder %v779, 0
        %v818 = vsub.s32 0, %v779
        %v819 = vsel %vm817, %v818, %v779
        %v820 = vshrl.u32 %v819, 4
        %v821 = vand.u32 %v819, 15
        %v822 = vsub.s32 0, %v821
        %v823 = vsel %vm817, %v822, %v821
        %vm824 = vcmp.lt.s32.totalorder %v780, 0
        %v825 = vsub.s32 0, %v780
        %v826 = vsel %vm824, %v825, %v780
        %v827 = vshrl.u32 %v826, 4
        %v828 = vand.u32 %v826, 15
        %v829 = vsub.s32 0, %v828
        %v830 = vsel %vm824, %v829, %v828
        %vm831 = vcmp.lt.s32.totalorder %v781, 0
        %v832 = vsub.s32 0, %v781
        %v833 = vsel %vm831, %v832, %v781
        %v834 = vshrl.u32 %v833, 4
        %v835 = vand.u32 %v833, 15
        %v836 = vsub.s32 0, %v835
        %v837 = vsel %vm831, %v836, %v835
        %vm838 = vcmp.lt.s32.totalorder %v782, 0
        %v839 = vsub.s32 0, %v782
        %v840 = vsel %vm838, %v839, %v782
        %v841 = vshrl.u32 %v840, 4
        %v842 = vand.u32 %v840, 15
        %v843 = vsub.s32 0, %v842
        %v844 = vsel %vm838, %v843, %v842
        %vm845 = vcmp.lt.s32.totalorder %v783, 0
        %v846 = vsub.s32 0, %v783
        %v847 = vsel %vm845, %v846, %v783
        %v848 = vshrl.u32 %v847, 4
        %v849 = vand.u32 %v847, 15
        %v850 = vsub.s32 0, %v849
        %v851 = vsel %vm845, %v850, %v849
        %vm852 = vcmp.lt.s32.totalorder %v784, 0
        %v853 = vsub.s32 0, %v784
        %v854 = vsel %vm852, %v853, %v784
        %v855 = vshrl.u32 %v854, 4
        %v856 = vand.u32 %v854, 15
        %v857 = vsub.s32 0, %v856
        %v858 = vsel %vm852, %v857, %v856
        %vm859 = vcmp.lt.s32.totalorder %v785, 0
        %v860 = vsub.s32 0, %v785
        %v861 = vsel %vm859, %v860, %v785
        %v862 = vshrl.u32 %v861, 4
        %v863 = vand.u32 %v861, 15
        %v864 = vsub.s32 0, %v863
        %v865 = vsel %vm859, %v864, %v863
        %vm866 = vcmp.lt.s32.totalorder %v786, 0
        %v867 = vsub.s32 0, %v786
        %v868 = vsel %vm866, %v867, %v786
        %v869 = vshrl.u32 %v868, 4
        %v870 = vand.u32 %v868, 15
        %v871 = vsub.s32 0, %v870
        %v872 = vsel %vm866, %v871, %v870
        %vm873 = vcmp.lt.s32.totalorder %v787, 0
        %v874 = vsub.s32 0, %v787
        %v875 = vsel %vm873, %v874, %v787
        %v876 = vshrl.u32 %v875, 4
        %v877 = vand.u32 %v875, 15
        %v878 = vsub.s32 0, %v877
        %v879 = vsel %vm873, %v878, %v877
        %vm880 = vcmp.lt.s32.totalorder %v788, 0
        %v881 = vsub.s32 0, %v788
        %v882 = vsel %vm880, %v881, %v788
        %v883 = vshrl.u32 %v882, 4
        %v884 = vand.u32 %v882, 15
        %v885 = vsub.s32 0, %v884
        %v886 = vsel %vm880, %v885, %v884
        %vm887 = vcmp.lt.s32.totalorder %v789, 0
        %v888 = vsub.s32 0, %v789
        %v889 = vsel %vm887, %v888, %v789
        %v890 = vshrl.u32 %v889, 4
        %v891 = vand.u32 %v889, 15
        %v892 = vsub.s32 0, %v891
        %v893 = vsel %vm887, %v892, %v891
        %vm894 = vcmp.lt.s32.totalorder %v790, 0
        %v895 = vsub.s32 0, %v790
        %v896 = vsel %vm894, %v895, %v790
        %v897 = vshrl.u32 %v896, 4
        %v898 = vand.u32 %v896, 15
        %v899 = vsub.s32 0, %v898
        %v900 = vsel %vm894, %v899, %v898
        %vm901 = vcmp.lt.s32.totalorder %v791, 0
        %v902 = vsub.s32 0, %v791
        %v903 = vsel %vm901, %v902, %v791
        %v904 = vshrl.u32 %v903, 4
        %v905 = vand.u32 %v903, 15
        %v906 = vsub.s32 0, %v905
        %v907 = vsel %vm901, %v906, %v905
        %vm908 = vcmp.lt.s32.totalorder %v792, 0
        %v909 = vsub.s32 0, %v792
        %v910 = vsel %vm908, %v909, %v792
        %v911 = vshrl.u32 %v910, 4
        %v912 = vand.u32 %v910, 15
        %v913 = vsub.s32 0, %v912
        %v914 = vsel %vm908, %v913, %v912
        %vm915 = vcmp.lt.s32.totalorder %v793, 0
        %v916 = vsub.s32 0, %v793
        %v917 = vsel %vm915, %v916, %v793
        %v918 = vshrl.u32 %v917, 4
        %v919 = vand.u32 %v917, 15
        %v920 = vsub.s32 0, %v919
        %v921 = vsel %vm915, %v920, %v919
        %vm922 = vcmp.lt.s32.totalorder %v794, 0
        %v923 = vsub.s32 0, %v794
        %v924 = vsel %vm922, %v923, %v794
        %v925 = vshrl.u32 %v924, 4
        %v926 = vand.u32 %v924, 15
        %v927 = vsub.s32 0, %v926
        %v928 = vsel %vm922, %v927, %v926
        %vm929 = vcmp.lt.s32.totalorder %v795, 0
        %v930 = vsub.s32 0, %v795
        %v931 = vsel %vm929, %v930, %v795
        %v932 = vshrl.u32 %v931, 4
        %v933 = vand.u32 %v931, 15
        %v934 = vsub.s32 0, %v933
        %v935 = vsel %vm929, %v934, %v933
        %vm936 = vcmp.lt.s32.totalorder %v796, 0
        %v937 = vsub.s32 0, %v796
        %v938 = vsel %vm936, %v937, %v796
        %v939 = vshrl.u32 %v938, 4
        %v940 = vand.u32 %v938, 15
        %v941 = vsub.s32 0, %v940
        %v942 = vsel %vm936, %v941, %v940
        %vm943 = vcmp.lt.s32.totalorder %v797, 0
        %v944 = vsub.s32 0, %v797
        %v945 = vsel %vm943, %v944, %v797
        %v946 = vshrl.u32 %v945, 4
        %v947 = vand.u32 %v945, 15
        %v948 = vsub.s32 0, %v947
        %v949 = vsel %vm943, %v948, %v947
        %vm950 = vcmp.lt.s32.totalorder %v798, 0
        %v951 = vsub.s32 0, %v798
        %v952 = vsel %vm950, %v951, %v798
        %v953 = vshrl.u32 %v952, 4
        %v954 = vand.u32 %v952, 15
        %v955 = vsub.s32 0, %v954
        %v956 = vsel %vm950, %v955, %v954
        %vm957 = vcmp.lt.s32.totalorder %v799, 0
        %v958 = vsub.s32 0, %v799
        %v959 = vsel %vm957, %v958, %v799
        %v960 = vshrl.u32 %v959, 4
        %v961 = vand.u32 %v959, 15
        %v962 = vsub.s32 0, %v961
        %v963 = vsel %vm957, %v962, %v961
        %vm964 = vcmp.lt.s32.totalorder %v800, 0
        %v965 = vsub.s32 0, %v800
        %v966 = vsel %vm964, %v965, %v800
        %v967 = vshrl.u32 %v966, 4
        %v968 = vand.u32 %v966, 15
        %v969 = vsub.s32 0, %v968
        %v970 = vsel %vm964, %v969, %v968
        %vm971 = vcmp.lt.s32.totalorder %v801, 0
        %v972 = vsub.s32 0, %v801
        %v973 = vsel %vm971, %v972, %v801
        %v974 = vshrl.u32 %v973, 4
        %v975 = vand.u32 %v973, 15
        %v976 = vsub.s32 0, %v975
        %v977 = vsel %vm971, %v976, %v975
        %vm978 = vcmp.lt.s32.totalorder %v802, 0
        %v979 = vsub.s32 0, %v802
        %v980 = vsel %vm978, %v979, %v802
        %v981 = vshrl.u32 %v980, 4
        %v982 = vand.u32 %v980, 15
        %v983 = vsub.s32 0, %v982
        %v984 = vsel %vm978, %v983, %v982
        %vm985 = vcmp.lt.s32.totalorder %v803, 0
        %v986 = vsub.s32 0, %v803
        %v987 = vsel %vm985, %v986, %v803
        %v988 = vshrl.u32 %v987, 4
        %v989 = vand.u32 %v987, 15
        %v990 = vsub.s32 0, %v989
        %v991 = vsel %vm985, %v990, %v989
        %vm992 = vcmp.lt.s32.totalorder %v804, 0
        %v993 = vsub.s32 0, %v804
        %v994 = vsel %vm992, %v993, %v804
        %v995 = vshrl.u32 %v994, 4
        %v996 = vand.u32 %v994, 15
        %v997 = vsub.s32 0, %v996
        %v998 = vsel %vm992, %v997, %v996
        %vm999 = vcmp.lt.s32.totalorder %v805, 0
        %v1000 = vsub.s32 0, %v805
        %v1001 = vsel %vm999, %v1000, %v805
        %v1002 = vshrl.u32 %v1001, 4
        %v1003 = vand.u32 %v1001, 15
        %v1004 = vsub.s32 0, %v1003
        %v1005 = vsel %vm999, %v1004, %v1003
        %vm1006 = vcmp.lt.s32.totalorder %v806, 0
        %v1007 = vsub.s32 0, %v806
        %v1008 = vsel %vm1006, %v1007, %v806
        %v1009 = vshrl.u32 %v1008, 4
        %v1010 = vand.u32 %v1008, 15
        %v1011 = vsub.s32 0, %v1010
        %v1012 = vsel %vm1006, %v1011, %v1010
        %vm1013 = vcmp.lt.s32.totalorder %v807, 0
        %v1014 = vsub.s32 0, %v807
        %v1015 = vsel %vm1013, %v1014, %v807
        %v1016 = vshrl.u32 %v1015, 4
        %v1017 = vand.u32 %v1015, 15
        %v1018 = vsub.s32 0, %v1017
        %v1019 = vsel %vm1013, %v1018, %v1017
        %vm1020 = vcmp.lt.s32.totalorder %v808, 0
        %v1021 = vsub.s32 0, %v808
        %v1022 = vsel %vm1020, %v1021, %v808
        %v1023 = vshrl.u32 %v1022, 4
        %v1024 = vand.u32 %v1022, 15
        %v1025 = vsub.s32 0, %v1024
        %v1026 = vsel %vm1020, %v1025, %v1024
        %vm1027 = vcmp.lt.s32.totalorder %v809, 0
        %v1028 = vsub.s32 0, %v809
        %v1029 = vsel %vm1027, %v1028, %v809
        %v1030 = vshrl.u32 %v1029, 4
        %v1031 = vand.u32 %v1029, 15
        %v1032 = vsub.s32 0, %v1031
        %v1033 = vsel %vm1027, %v1032, %v1031
        %vm1034 = vcmp.ne.s32.totalorder %v816, 0
        %vm1035 = vcmp.ne.s32.totalorder %v823, 0
        %vm1036 = vcmp.ne.s32.totalorder %v830, 0
        %vm1037 = vcmp.ne.s32.totalorder %v837, 0
        %vm1038 = vcmp.ne.s32.totalorder %v844, 0
        %vm1039 = vcmp.ne.s32.totalorder %v851, 0
        %vm1040 = vcmp.ne.s32.totalorder %v858, 0
        %vm1041 = vcmp.ne.s32.totalorder %v865, 0
        %vm1042 = vcmp.ne.s32.totalorder %v872, 0
        %vm1043 = vcmp.ne.s32.totalorder %v879, 0
        %vm1044 = vcmp.ne.s32.totalorder %v886, 0
        %vm1045 = vcmp.ne.s32.totalorder %v893, 0
        %vm1046 = vcmp.ne.s32.totalorder %v900, 0
        %vm1047 = vcmp.ne.s32.totalorder %v907, 0
        %vm1048 = vcmp.ne.s32.totalorder %v914, 0
        %vm1049 = vcmp.ne.s32.totalorder %v921, 0
        %vm1050 = vcmp.ne.s32.totalorder %v928, 0
        %vm1051 = vcmp.ne.s32.totalorder %v935, 0
        %vm1052 = vcmp.ne.s32.totalorder %v942, 0
        %vm1053 = vcmp.ne.s32.totalorder %v949, 0
        %vm1054 = vcmp.ne.s32.totalorder %v956, 0
        %vm1055 = vcmp.ne.s32.totalorder %v963, 0
        %vm1056 = vcmp.ne.s32.totalorder %v970, 0
        %vm1057 = vcmp.ne.s32.totalorder %v977, 0
        %vm1058 = vcmp.ne.s32.totalorder %v984, 0
        %vm1059 = vcmp.ne.s32.totalorder %v991, 0
        %vm1060 = vcmp.ne.s32.totalorder %v998, 0
        %vm1061 = vcmp.ne.s32.totalorder %v1005, 0
        %vm1062 = vcmp.ne.s32.totalorder %v1012, 0
        %vm1063 = vcmp.ne.s32.totalorder %v1019, 0
        %vm1064 = vcmp.ne.s32.totalorder %v1026, 0
        %vm1065 = vcmp.ne.s32.totalorder %v1033, 0
        %vm1066 = vcmp.lt.s32.totalorder %v816, 0
        %vm1067 = vcmp.lt.s32.totalorder %v823, 0
        %vm1068 = vcmp.lt.s32.totalorder %v830, 0
        %vm1069 = vcmp.lt.s32.totalorder %v837, 0
        %vm1070 = vcmp.lt.s32.totalorder %v844, 0
        %vm1071 = vcmp.lt.s32.totalorder %v851, 0
        %vm1072 = vcmp.lt.s32.totalorder %v858, 0
        %vm1073 = vcmp.lt.s32.totalorder %v865, 0
        %vm1074 = vcmp.lt.s32.totalorder %v872, 0
        %vm1075 = vcmp.lt.s32.totalorder %v879, 0
        %vm1076 = vcmp.lt.s32.totalorder %v886, 0
        %vm1077 = vcmp.lt.s32.totalorder %v893, 0
        %vm1078 = vcmp.lt.s32.totalorder %v900, 0
        %vm1079 = vcmp.lt.s32.totalorder %v907, 0
        %vm1080 = vcmp.lt.s32.totalorder %v914, 0
        %vm1081 = vcmp.lt.s32.totalorder %v921, 0
        %vm1082 = vcmp.lt.s32.totalorder %v928, 0
        %vm1083 = vcmp.lt.s32.totalorder %v935, 0
        %vm1084 = vcmp.lt.s32.totalorder %v942, 0
        %vm1085 = vcmp.lt.s32.totalorder %v949, 0
        %vm1086 = vcmp.lt.s32.totalorder %v956, 0
        %vm1087 = vcmp.lt.s32.totalorder %v963, 0
        %vm1088 = vcmp.lt.s32.totalorder %v970, 0
        %vm1089 = vcmp.lt.s32.totalorder %v977, 0
        %vm1090 = vcmp.lt.s32.totalorder %v984, 0
        %vm1091 = vcmp.lt.s32.totalorder %v991, 0
        %vm1092 = vcmp.lt.s32.totalorder %v998, 0
        %vm1093 = vcmp.lt.s32.totalorder %v1005, 0
        %vm1094 = vcmp.lt.s32.totalorder %v1012, 0
        %vm1095 = vcmp.lt.s32.totalorder %v1019, 0
        %vm1096 = vcmp.lt.s32.totalorder %v1026, 0
        %vm1097 = vcmp.lt.s32.totalorder %v1033, 0
        %vm1098 = vmand %vm1066, %vm1034
        %vm1099 = vmand %vm1067, %vm1035
        %vm1100 = vmand %vm1068, %vm1036
        %vm1101 = vmand %vm1069, %vm1037
        %vm1102 = vmand %vm1070, %vm1038
        %vm1103 = vmand %vm1071, %vm1039
        %vm1104 = vmand %vm1072, %vm1040
        %vm1105 = vmand %vm1073, %vm1041
        %vm1106 = vmand %vm1074, %vm1042
        %vm1107 = vmand %vm1075, %vm1043
        %vm1108 = vmand %vm1076, %vm1044
        %vm1109 = vmand %vm1077, %vm1045
        %vm1110 = vmand %vm1078, %vm1046
        %vm1111 = vmand %vm1079, %vm1047
        %vm1112 = vmand %vm1080, %vm1048
        %vm1113 = vmand %vm1081, %vm1049
        %vm1114 = vmand %vm1082, %vm1050
        %vm1115 = vmand %vm1083, %vm1051
        %vm1116 = vmand %vm1084, %vm1052
        %vm1117 = vmand %vm1085, %vm1053
        %vm1118 = vmand %vm1086, %vm1054
        %vm1119 = vmand %vm1087, %vm1055
        %vm1120 = vmand %vm1088, %vm1056
        %vm1121 = vmand %vm1089, %vm1057
        %vm1122 = vmand %vm1090, %vm1058
        %vm1123 = vmand %vm1091, %vm1059
        %vm1124 = vmand %vm1092, %vm1060
        %vm1125 = vmand %vm1093, %vm1061
        %vm1126 = vmand %vm1094, %vm1062
        %vm1127 = vmand %vm1095, %vm1063
        %vm1128 = vmand %vm1096, %vm1064
        %vm1129 = vmand %vm1097, %vm1065
        %v1130 = vadd.s32 %v816, 16
        %v1131 = vadd.s32 %v823, 16
        %v1132 = vadd.s32 %v830, 16
        %v1133 = vadd.s32 %v837, 16
        %v1134 = vadd.s32 %v844, 16
        %v1135 = vadd.s32 %v851, 16
        %v1136 = vadd.s32 %v858, 16
        %v1137 = vadd.s32 %v865, 16
        %v1138 = vadd.s32 %v872, 16
        %v1139 = vadd.s32 %v879, 16
        %v1140 = vadd.s32 %v886, 16
        %v1141 = vadd.s32 %v893, 16
        %v1142 = vadd.s32 %v900, 16
        %v1143 = vadd.s32 %v907, 16
        %v1144 = vadd.s32 %v914, 16
        %v1145 = vadd.s32 %v921, 16
        %v1146 = vadd.s32 %v928, 16
        %v1147 = vadd.s32 %v935, 16
        %v1148 = vadd.s32 %v942, 16
        %v1149 = vadd.s32 %v949, 16
        %v1150 = vadd.s32 %v956, 16
        %v1151 = vadd.s32 %v963, 16
        %v1152 = vadd.s32 %v970, 16
        %v1153 = vadd.s32 %v977, 16
        %v1154 = vadd.s32 %v984, 16
        %v1155 = vadd.s32 %v991, 16
        %v1156 = vadd.s32 %v998, 16
        %v1157 = vadd.s32 %v1005, 16
        %v1158 = vadd.s32 %v1012, 16
        %v1159 = vadd.s32 %v1019, 16
        %v1160 = vadd.s32 %v1026, 16
        %v1161 = vadd.s32 %v1033, 16
        %v1162 = vsel %vm1098, %v1130, %v816
        %v1163 = vsel %vm1099, %v1131, %v823
        %v1164 = vsel %vm1100, %v1132, %v830
        %v1165 = vsel %vm1101, %v1133, %v837
        %v1166 = vsel %vm1102, %v1134, %v844
        %v1167 = vsel %vm1103, %v1135, %v851
        %v1168 = vsel %vm1104, %v1136, %v858
        %v1169 = vsel %vm1105, %v1137, %v865
        %v1170 = vsel %vm1106, %v1138, %v872
        %v1171 = vsel %vm1107, %v1139, %v879
        %v1172 = vsel %vm1108, %v1140, %v886
        %v1173 = vsel %vm1109, %v1141, %v893
        %v1174 = vsel %vm1110, %v1142, %v900
        %v1175 = vsel %vm1111, %v1143, %v907
        %v1176 = vsel %vm1112, %v1144, %v914
        %v1177 = vsel %vm1113, %v1145, %v921
        %v1178 = vsel %vm1114, %v1146, %v928
        %v1179 = vsel %vm1115, %v1147, %v935
        %v1180 = vsel %vm1116, %v1148, %v942
        %v1181 = vsel %vm1117, %v1149, %v949
        %v1182 = vsel %vm1118, %v1150, %v956
        %v1183 = vsel %vm1119, %v1151, %v963
        %v1184 = vsel %vm1120, %v1152, %v970
        %v1185 = vsel %vm1121, %v1153, %v977
        %v1186 = vsel %vm1122, %v1154, %v984
        %v1187 = vsel %vm1123, %v1155, %v991
        %v1188 = vsel %vm1124, %v1156, %v998
        %v1189 = vsel %vm1125, %v1157, %v1005
        %v1190 = vsel %vm1126, %v1158, %v1012
        %v1191 = vsel %vm1127, %v1159, %v1019
        %v1192 = vsel %vm1128, %v1160, %v1026
        %v1193 = vsel %vm1129, %v1161, %v1033
        %vm1194 = vcmp.ge.s32.totalorder %v1162, 1
        %vm1195 = vcmp.ge.s32.totalorder %v1163, 1
        %vm1196 = vcmp.ge.s32.totalorder %v1164, 1
        %vm1197 = vcmp.ge.s32.totalorder %v1165, 1
        %vm1198 = vcmp.ge.s32.totalorder %v1166, 1
        %vm1199 = vcmp.ge.s32.totalorder %v1167, 1
        %vm1200 = vcmp.ge.s32.totalorder %v1168, 1
        %vm1201 = vcmp.ge.s32.totalorder %v1169, 1
        %vm1202 = vcmp.ge.s32.totalorder %v1170, 1
        %vm1203 = vcmp.ge.s32.totalorder %v1171, 1
        %vm1204 = vcmp.ge.s32.totalorder %v1172, 1
        %vm1205 = vcmp.ge.s32.totalorder %v1173, 1
        %vm1206 = vcmp.ge.s32.totalorder %v1174, 1
        %vm1207 = vcmp.ge.s32.totalorder %v1175, 1
        %vm1208 = vcmp.ge.s32.totalorder %v1176, 1
        %vm1209 = vcmp.ge.s32.totalorder %v1177, 1
        %vm1210 = vcmp.ge.s32.totalorder %v1178, 1
        %vm1211 = vcmp.ge.s32.totalorder %v1179, 1
        %vm1212 = vcmp.ge.s32.totalorder %v1180, 1
        %vm1213 = vcmp.ge.s32.totalorder %v1181, 1
        %vm1214 = vcmp.ge.s32.totalorder %v1182, 1
        %vm1215 = vcmp.ge.s32.totalorder %v1183, 1
        %vm1216 = vcmp.ge.s32.totalorder %v1184, 1
        %vm1217 = vcmp.ge.s32.totalorder %v1185, 1
        %vm1218 = vcmp.ge.s32.totalorder %v1186, 1
        %vm1219 = vcmp.ge.s32.totalorder %v1187, 1
        %vm1220 = vcmp.ge.s32.totalorder %v1188, 1
        %vm1221 = vcmp.ge.s32.totalorder %v1189, 1
        %vm1222 = vcmp.ge.s32.totalorder %v1190, 1
        %vm1223 = vcmp.ge.s32.totalorder %v1191, 1
        %vm1224 = vcmp.ge.s32.totalorder %v1192, 1
        %vm1225 = vcmp.ge.s32.totalorder %v1193, 1
        %vm1226 = vcmp.le.s32.totalorder %v1162, 14
        %vm1227 = vcmp.le.s32.totalorder %v1163, 14
        %vm1228 = vcmp.le.s32.totalorder %v1164, 14
        %vm1229 = vcmp.le.s32.totalorder %v1165, 14
        %vm1230 = vcmp.le.s32.totalorder %v1166, 14
        %vm1231 = vcmp.le.s32.totalorder %v1167, 14
        %vm1232 = vcmp.le.s32.totalorder %v1168, 14
        %vm1233 = vcmp.le.s32.totalorder %v1169, 14
        %vm1234 = vcmp.le.s32.totalorder %v1170, 14
        %vm1235 = vcmp.le.s32.totalorder %v1171, 14
        %vm1236 = vcmp.le.s32.totalorder %v1172, 14
        %vm1237 = vcmp.le.s32.totalorder %v1173, 14
        %vm1238 = vcmp.le.s32.totalorder %v1174, 14
        %vm1239 = vcmp.le.s32.totalorder %v1175, 14
        %vm1240 = vcmp.le.s32.totalorder %v1176, 14
        %vm1241 = vcmp.le.s32.totalorder %v1177, 14
        %vm1242 = vcmp.le.s32.totalorder %v1178, 14
        %vm1243 = vcmp.le.s32.totalorder %v1179, 14
        %vm1244 = vcmp.le.s32.totalorder %v1180, 14
        %vm1245 = vcmp.le.s32.totalorder %v1181, 14
        %vm1246 = vcmp.le.s32.totalorder %v1182, 14
        %vm1247 = vcmp.le.s32.totalorder %v1183, 14
        %vm1248 = vcmp.le.s32.totalorder %v1184, 14
        %vm1249 = vcmp.le.s32.totalorder %v1185, 14
        %vm1250 = vcmp.le.s32.totalorder %v1186, 14
        %vm1251 = vcmp.le.s32.totalorder %v1187, 14
        %vm1252 = vcmp.le.s32.totalorder %v1188, 14
        %vm1253 = vcmp.le.s32.totalorder %v1189, 14
        %vm1254 = vcmp.le.s32.totalorder %v1190, 14
        %vm1255 = vcmp.le.s32.totalorder %v1191, 14
        %vm1256 = vcmp.le.s32.totalorder %v1192, 14
        %vm1257 = vcmp.le.s32.totalorder %v1193, 14
        %vm1288 = vcmask 1040384
        %v1289 = vrot.slane %v745, 7
        %v1290 = vrot.slane %v746, 7
        %v1291 = vsel %vm1288, %v1289, %v1290
        %v1292 = vrot.slane %v747, 7
        %v1293 = vsel %vm1288, %v1290, %v1292
        %v1294 = vrot.slane %v748, 7
        %v1295 = vsel %vm1288, %v1292, %v1294
        %v1296 = vrot.slane %v749, 7
        %v1297 = vsel %vm1288, %v1294, %v1296
        %v1298 = vrot.slane %v750, 7
        %v1299 = vsel %vm1288, %v1296, %v1298
        %v1300 = vrot.slane %v751, 7
        %v1301 = vsel %vm1288, %v1298, %v1300
        %v1302 = vrot.slane %v752, 7
        %v1303 = vsel %vm1288, %v1300, %v1302
        %v1304 = vrot.slane %v753, 7
        %v1305 = vsel %vm1288, %v1302, %v1304
        %v1306 = vrot.slane %v754, 7
        %v1307 = vsel %vm1288, %v1304, %v1306
        %v1308 = vrot.slane %v755, 7
        %v1309 = vsel %vm1288, %v1306, %v1308
        %v1310 = vrot.slane %v756, 7
        %v1311 = vsel %vm1288, %v1308, %v1310
        %v1312 = vrot.slane %v757, 7
        %v1313 = vsel %vm1288, %v1310, %v1312
        %v1314 = vrot.slane %v758, 7
        %v1315 = vsel %vm1288, %v1312, %v1314
        %v1316 = vrot.slane %v759, 7
        %v1317 = vsel %vm1288, %v1314, %v1316
        %v1318 = vrot.slane %v760, 7
        %v1319 = vsel %vm1288, %v1316, %v1318
        %v1320 = vrot.slane %v761, 7
        %v1321 = vsel %vm1288, %v1318, %v1320
        %v1322 = vrot.slane %v762, 7
        %v1323 = vsel %vm1288, %v1320, %v1322
        %v1324 = vrot.slane %v763, 7
        %v1325 = vsel %vm1288, %v1322, %v1324
        %v1326 = vrot.slane %v764, 7
        %v1327 = vsel %vm1288, %v1324, %v1326
        %v1328 = vrot.slane %v765, 7
        %v1329 = vsel %vm1288, %v1326, %v1328
        %v1330 = vrot.slane %v766, 7
        %v1331 = vsel %vm1288, %v1328, %v1330
        %v1332 = vrot.slane %v767, 7
        %v1333 = vsel %vm1288, %v1330, %v1332
        %v1334 = vrot.slane %v768, 7
        %v1335 = vsel %vm1288, %v1332, %v1334
        %v1336 = vrot.slane %v769, 7
        %v1337 = vsel %vm1288, %v1334, %v1336
        %v1338 = vrot.slane %v770, 7
        %v1339 = vsel %vm1288, %v1336, %v1338
        %v1340 = vrot.slane %v771, 7
        %v1341 = vsel %vm1288, %v1338, %v1340
        %v1342 = vrot.slane %v772, 7
        %v1343 = vsel %vm1288, %v1340, %v1342
        %v1344 = vrot.slane %v773, 7
        %v1345 = vsel %vm1288, %v1342, %v1344
        %v1346 = vrot.slane %v774, 7
        %v1347 = vsel %vm1288, %v1344, %v1346
        %v1378 = vsel %vm1288, 0.0, %v1289
        %v1379 = vsel %vm1196, %v1378, 0.0
        %v1380 = vsel %vm1197, %v1291, 0.0
        %v1381 = vsel %vm1198, %v1293, 0.0
        %v1382 = vsel %vm1199, %v1295, 0.0
        %v1383 = vsel %vm1200, %v1297, 0.0
        %v1384 = vsel %vm1201, %v1299, 0.0
        %v1385 = vsel %vm1202, %v1301, 0.0
        %v1386 = vsel %vm1203, %v1303, 0.0
        %v1387 = vsel %vm1204, %v1305, 0.0
        %v1388 = vsel %vm1205, %v1307, 0.0
        %v1389 = vsel %vm1206, %v1309, 0.0
        %v1390 = vsel %vm1207, %v1311, 0.0
        %v1391 = vsel %vm1208, %v1313, 0.0
        %v1392 = vsel %vm1209, %v1315, 0.0
        %v1393 = vsel %vm1210, %v1317, 0.0
        %v1394 = vsel %vm1211, %v1319, 0.0
        %v1395 = vsel %vm1212, %v1321, 0.0
        %v1396 = vsel %vm1213, %v1323, 0.0
        %v1397 = vsel %vm1214, %v1325, 0.0
        %v1398 = vsel %vm1215, %v1327, 0.0
        %v1399 = vsel %vm1216, %v1329, 0.0
        %v1400 = vsel %vm1217, %v1331, 0.0
        %v1401 = vsel %vm1218, %v1333, 0.0
        %v1402 = vsel %vm1219, %v1335, 0.0
        %v1403 = vsel %vm1220, %v1337, 0.0
        %v1404 = vsel %vm1221, %v1339, 0.0
        %v1405 = vsel %vm1222, %v1341, 0.0
        %v1406 = vsel %vm1223, %v1343, 0.0
        %v1407 = vsel %vm1224, %v1345, 0.0
        %v1408 = vsel %vm1225, %v1347, 0.0
        %v1409 = vpack.c.bf16 0.0, 0.0
        %v1410 = vpack.c.bf16 %v1380, %v1379
        %v1411 = vpack.c.bf16 %v1382, %v1381
        %v1412 = vpack.c.bf16 %v1384, %v1383
        %v1413 = vpack.c.bf16 %v1386, %v1385
        %v1414 = vpack.c.bf16 %v1388, %v1387
        %v1415 = vpack.c.bf16 %v1390, %v1389
        %v1416 = vpack.c.bf16 %v1392, %v1391
        %v1417 = vpack.c.bf16 %v1394, %v1393
        %v1418 = vpack.c.bf16 %v1396, %v1395
        %v1419 = vpack.c.bf16 %v1398, %v1397
        %v1420 = vpack.c.bf16 %v1400, %v1399
        %v1421 = vpack.c.bf16 %v1402, %v1401
        %v1422 = vpack.c.bf16 %v1404, %v1403
        %v1423 = vpack.c.bf16 %v1406, %v1405
        %v1424 = vpack.c.bf16 %v1408, %v1407
        %v1425 = vpack.c.bf16 %v746, %v745
        %v1426 = vpack.c.bf16 %v748, %v747
        %v1427 = vpack.c.bf16 %v750, %v749
        %v1428 = vpack.c.bf16 %v752, %v751
        %v1429 = vpack.c.bf16 %v754, %v753
        %v1430 = vpack.c.bf16 %v756, %v755
        %v1431 = vpack.c.bf16 %v758, %v757
        %v1432 = vpack.c.bf16 %v760, %v759
        %v1433 = vpack.c.bf16 %v762, %v761
        %v1434 = vpack.c.bf16 %v764, %v763
        %v1435 = vpack.c.bf16 %v766, %v765
        %v1436 = vpack.c.bf16 %v768, %v767
        %v1437 = vpack.c.bf16 %v770, %v769
        %v1438 = vpack.c.bf16 %v772, %v771
        %v1439 = vpack.c.bf16 %v774, %v773
        %vm1441 = vcmask 1046528
        %v1442 = vrot.slane %v745, 1
        %v1443 = vrot.slane %v746, 1
        %v1444 = vsel %vm1441, %v1442, %v1443
        %v1445 = vrot.slane %v747, 1
        %v1446 = vsel %vm1441, %v1443, %v1445
        %v1447 = vrot.slane %v748, 1
        %v1448 = vsel %vm1441, %v1445, %v1447
        %v1449 = vrot.slane %v749, 1
        %v1450 = vsel %vm1441, %v1447, %v1449
        %v1451 = vrot.slane %v750, 1
        %v1452 = vsel %vm1441, %v1449, %v1451
        %v1453 = vrot.slane %v751, 1
        %v1454 = vsel %vm1441, %v1451, %v1453
        %v1455 = vrot.slane %v752, 1
        %v1456 = vsel %vm1441, %v1453, %v1455
        %v1457 = vrot.slane %v753, 1
        %v1458 = vsel %vm1441, %v1455, %v1457
        %v1459 = vrot.slane %v754, 1
        %v1460 = vsel %vm1441, %v1457, %v1459
        %v1461 = vrot.slane %v755, 1
        %v1462 = vsel %vm1441, %v1459, %v1461
        %v1463 = vrot.slane %v756, 1
        %v1464 = vsel %vm1441, %v1461, %v1463
        %v1465 = vrot.slane %v757, 1
        %v1466 = vsel %vm1441, %v1463, %v1465
        %v1467 = vrot.slane %v758, 1
        %v1468 = vsel %vm1441, %v1465, %v1467
        %v1469 = vrot.slane %v759, 1
        %v1470 = vsel %vm1441, %v1467, %v1469
        %v1471 = vrot.slane %v760, 1
        %v1472 = vsel %vm1441, %v1469, %v1471
        %v1473 = vrot.slane %v761, 1
        %v1474 = vsel %vm1441, %v1471, %v1473
        %v1475 = vrot.slane %v762, 1
        %v1476 = vsel %vm1441, %v1473, %v1475
        %v1477 = vrot.slane %v763, 1
        %v1478 = vsel %vm1441, %v1475, %v1477
        %v1479 = vrot.slane %v764, 1
        %v1480 = vsel %vm1441, %v1477, %v1479
        %v1481 = vrot.slane %v765, 1
        %v1482 = vsel %vm1441, %v1479, %v1481
        %v1483 = vrot.slane %v766, 1
        %v1484 = vsel %vm1441, %v1481, %v1483
        %v1485 = vrot.slane %v767, 1
        %v1486 = vsel %vm1441, %v1483, %v1485
        %v1487 = vrot.slane %v768, 1
        %v1488 = vsel %vm1441, %v1485, %v1487
        %v1489 = vrot.slane %v769, 1
        %v1490 = vsel %vm1441, %v1487, %v1489
        %v1491 = vrot.slane %v770, 1
        %v1492 = vsel %vm1441, %v1489, %v1491
        %v1493 = vrot.slane %v771, 1
        %v1494 = vsel %vm1441, %v1491, %v1493
        %v1495 = vrot.slane %v772, 1
        %v1496 = vsel %vm1441, %v1493, %v1495
        %v1497 = vrot.slane %v773, 1
        %v1498 = vsel %vm1441, %v1495, %v1497
        %v1499 = vrot.slane %v774, 1
        %v1500 = vsel %vm1441, %v1497, %v1499
        %v1501 = vrot.slane %v775, 1
        %v1502 = vsel %vm1441, %v1499, %v1501
        %v1534 = vsel %vm1441, 0.0, %v1442
        %v1535 = vsel %vm1227, %v1534, 0.0
        %v1536 = vsel %vm1228, %v1444, 0.0
        %v1537 = vsel %vm1229, %v1446, 0.0
        %v1538 = vsel %vm1230, %v1448, 0.0
        %v1539 = vsel %vm1231, %v1450, 0.0
        %v1540 = vsel %vm1232, %v1452, 0.0
        %v1541 = vsel %vm1233, %v1454, 0.0
        %v1542 = vsel %vm1234, %v1456, 0.0
        %v1543 = vsel %vm1235, %v1458, 0.0
        %v1544 = vsel %vm1236, %v1460, 0.0
        %v1545 = vsel %vm1237, %v1462, 0.0
        %v1546 = vsel %vm1238, %v1464, 0.0
        %v1547 = vsel %vm1239, %v1466, 0.0
        %v1548 = vsel %vm1240, %v1468, 0.0
        %v1549 = vsel %vm1241, %v1470, 0.0
        %v1550 = vsel %vm1242, %v1472, 0.0
        %v1551 = vsel %vm1243, %v1474, 0.0
        %v1552 = vsel %vm1244, %v1476, 0.0
        %v1553 = vsel %vm1245, %v1478, 0.0
        %v1554 = vsel %vm1246, %v1480, 0.0
        %v1555 = vsel %vm1247, %v1482, 0.0
        %v1556 = vsel %vm1248, %v1484, 0.0
        %v1557 = vsel %vm1249, %v1486, 0.0
        %v1558 = vsel %vm1250, %v1488, 0.0
        %v1559 = vsel %vm1251, %v1490, 0.0
        %v1560 = vsel %vm1252, %v1492, 0.0
        %v1561 = vsel %vm1253, %v1494, 0.0
        %v1562 = vsel %vm1254, %v1496, 0.0
        %v1563 = vsel %vm1255, %v1498, 0.0
        %v1564 = vsel %vm1256, %v1500, 0.0
        %v1565 = vsel %vm1257, %v1502, 0.0
        %v1566 = vpack.c.bf16 %v1535, 0.0
        %v1567 = vpack.c.bf16 %v1537, %v1536
        %v1568 = vpack.c.bf16 %v1539, %v1538
        %v1569 = vpack.c.bf16 %v1541, %v1540
        %v1570 = vpack.c.bf16 %v1543, %v1542
        %v1571 = vpack.c.bf16 %v1545, %v1544
        %v1572 = vpack.c.bf16 %v1547, %v1546
        %v1573 = vpack.c.bf16 %v1549, %v1548
        %v1574 = vpack.c.bf16 %v1551, %v1550
        %v1575 = vpack.c.bf16 %v1553, %v1552
        %v1576 = vpack.c.bf16 %v1555, %v1554
        %v1577 = vpack.c.bf16 %v1557, %v1556
        %v1578 = vpack.c.bf16 %v1559, %v1558
        %v1579 = vpack.c.bf16 %v1561, %v1560
        %v1580 = vpack.c.bf16 %v1563, %v1562
        %v1581 = vpack.c.bf16 %v1565, %v1564
        %v1583 = vrot.slane %v775, 7
        %v1584 = vsel %vm1288, %v1346, %v1583
        %v1585 = vrot.slane %v776, 7
        %v1586 = vsel %vm1288, %v1583, %v1585
        %v1589 = vsel %vm1194, %v1378, 0.0
        %v1590 = vsel %vm1195, %v1291, 0.0
        %v1591 = vsel %vm1196, %v1293, 0.0
        %v1592 = vsel %vm1197, %v1295, 0.0
        %v1593 = vsel %vm1198, %v1297, 0.0
        %v1594 = vsel %vm1199, %v1299, 0.0
        %v1595 = vsel %vm1200, %v1301, 0.0
        %v1596 = vsel %vm1201, %v1303, 0.0
        %v1597 = vsel %vm1202, %v1305, 0.0
        %v1598 = vsel %vm1203, %v1307, 0.0
        %v1599 = vsel %vm1204, %v1309, 0.0
        %v1600 = vsel %vm1205, %v1311, 0.0
        %v1601 = vsel %vm1206, %v1313, 0.0
        %v1602 = vsel %vm1207, %v1315, 0.0
        %v1603 = vsel %vm1208, %v1317, 0.0
        %v1604 = vsel %vm1209, %v1319, 0.0
        %v1605 = vsel %vm1210, %v1321, 0.0
        %v1606 = vsel %vm1211, %v1323, 0.0
        %v1607 = vsel %vm1212, %v1325, 0.0
        %v1608 = vsel %vm1213, %v1327, 0.0
        %v1609 = vsel %vm1214, %v1329, 0.0
        %v1610 = vsel %vm1215, %v1331, 0.0
        %v1611 = vsel %vm1216, %v1333, 0.0
        %v1612 = vsel %vm1217, %v1335, 0.0
        %v1613 = vsel %vm1218, %v1337, 0.0
        %v1614 = vsel %vm1219, %v1339, 0.0
        %v1615 = vsel %vm1220, %v1341, 0.0
        %v1616 = vsel %vm1221, %v1343, 0.0
        %v1617 = vsel %vm1222, %v1345, 0.0
        %v1618 = vsel %vm1223, %v1347, 0.0
        %v1619 = vsel %vm1224, %v1584, 0.0
        %v1620 = vsel %vm1225, %v1586, 0.0
        %v1621 = vpack.c.bf16 %v1590, %v1589
        %v1622 = vpack.c.bf16 %v1592, %v1591
        %v1623 = vpack.c.bf16 %v1594, %v1593
        %v1624 = vpack.c.bf16 %v1596, %v1595
        %v1625 = vpack.c.bf16 %v1598, %v1597
        %v1626 = vpack.c.bf16 %v1600, %v1599
        %v1627 = vpack.c.bf16 %v1602, %v1601
        %v1628 = vpack.c.bf16 %v1604, %v1603
        %v1629 = vpack.c.bf16 %v1606, %v1605
        %v1630 = vpack.c.bf16 %v1608, %v1607
        %v1631 = vpack.c.bf16 %v1610, %v1609
        %v1632 = vpack.c.bf16 %v1612, %v1611
        %v1633 = vpack.c.bf16 %v1614, %v1613
        %v1634 = vpack.c.bf16 %v1616, %v1615
        %v1635 = vpack.c.bf16 %v1618, %v1617
        %v1636 = vpack.c.bf16 %v1620, %v1619
        %v1637 = vpack.c.bf16 %v776, %v775
        %v1638 = vrot.slane %v776, 1
        %v1639 = vsel %vm1441, %v1501, %v1638
        %v1642 = vsel %vm1441, %v1638, 0.0
        %v1643 = vsel %vm1226, %v1444, 0.0
        %v1644 = vsel %vm1227, %v1446, 0.0
        %v1645 = vsel %vm1228, %v1448, 0.0
        %v1646 = vsel %vm1229, %v1450, 0.0
        %v1647 = vsel %vm1230, %v1452, 0.0
        %v1648 = vsel %vm1231, %v1454, 0.0
        %v1649 = vsel %vm1232, %v1456, 0.0
        %v1650 = vsel %vm1233, %v1458, 0.0
        %v1651 = vsel %vm1234, %v1460, 0.0
        %v1652 = vsel %vm1235, %v1462, 0.0
        %v1653 = vsel %vm1236, %v1464, 0.0
        %v1654 = vsel %vm1237, %v1466, 0.0
        %v1655 = vsel %vm1238, %v1468, 0.0
        %v1656 = vsel %vm1239, %v1470, 0.0
        %v1657 = vsel %vm1240, %v1472, 0.0
        %v1658 = vsel %vm1241, %v1474, 0.0
        %v1659 = vsel %vm1242, %v1476, 0.0
        %v1660 = vsel %vm1243, %v1478, 0.0
        %v1661 = vsel %vm1244, %v1480, 0.0
        %v1662 = vsel %vm1245, %v1482, 0.0
        %v1663 = vsel %vm1246, %v1484, 0.0
        %v1664 = vsel %vm1247, %v1486, 0.0
        %v1665 = vsel %vm1248, %v1488, 0.0
        %v1666 = vsel %vm1249, %v1490, 0.0
        %v1667 = vsel %vm1250, %v1492, 0.0
        %v1668 = vsel %vm1251, %v1494, 0.0
        %v1669 = vsel %vm1252, %v1496, 0.0
        %v1670 = vsel %vm1253, %v1498, 0.0
        %v1671 = vsel %vm1254, %v1500, 0.0
        %v1672 = vsel %vm1255, %v1502, 0.0
        %v1673 = vsel %vm1256, %v1639, 0.0
        %v1674 = vsel %vm1257, %v1642, 0.0
        %v1675 = vpack.c.bf16 %v1644, %v1643
        %v1676 = vpack.c.bf16 %v1646, %v1645
        %v1677 = vpack.c.bf16 %v1648, %v1647
        %v1678 = vpack.c.bf16 %v1650, %v1649
        %v1679 = vpack.c.bf16 %v1652, %v1651
        %v1680 = vpack.c.bf16 %v1654, %v1653
        %v1681 = vpack.c.bf16 %v1656, %v1655
        %v1682 = vpack.c.bf16 %v1658, %v1657
        %v1683 = vpack.c.bf16 %v1660, %v1659
        %v1684 = vpack.c.bf16 %v1662, %v1661
        %v1685 = vpack.c.bf16 %v1664, %v1663
        %v1686 = vpack.c.bf16 %v1666, %v1665
        %v1687 = vpack.c.bf16 %v1668, %v1667
        %v1688 = vpack.c.bf16 %v1670, %v1669
        %v1689 = vpack.c.bf16 %v1672, %v1671
        %v1690 = vpack.c.bf16 %v1674, %v1673
        %v1692 = vsel %vm1288, %v1585, 0.0
        %v1693 = vsel %vm1194, %v1293, 0.0
        %v1694 = vsel %vm1195, %v1295, 0.0
        %v1695 = vsel %vm1196, %v1297, 0.0
        %v1696 = vsel %vm1197, %v1299, 0.0
        %v1697 = vsel %vm1198, %v1301, 0.0
        %v1698 = vsel %vm1199, %v1303, 0.0
        %v1699 = vsel %vm1200, %v1305, 0.0
        %v1700 = vsel %vm1201, %v1307, 0.0
        %v1701 = vsel %vm1202, %v1309, 0.0
        %v1702 = vsel %vm1203, %v1311, 0.0
        %v1703 = vsel %vm1204, %v1313, 0.0
        %v1704 = vsel %vm1205, %v1315, 0.0
        %v1705 = vsel %vm1206, %v1317, 0.0
        %v1706 = vsel %vm1207, %v1319, 0.0
        %v1707 = vsel %vm1208, %v1321, 0.0
        %v1708 = vsel %vm1209, %v1323, 0.0
        %v1709 = vsel %vm1210, %v1325, 0.0
        %v1710 = vsel %vm1211, %v1327, 0.0
        %v1711 = vsel %vm1212, %v1329, 0.0
        %v1712 = vsel %vm1213, %v1331, 0.0
        %v1713 = vsel %vm1214, %v1333, 0.0
        %v1714 = vsel %vm1215, %v1335, 0.0
        %v1715 = vsel %vm1216, %v1337, 0.0
        %v1716 = vsel %vm1217, %v1339, 0.0
        %v1717 = vsel %vm1218, %v1341, 0.0
        %v1718 = vsel %vm1219, %v1343, 0.0
        %v1719 = vsel %vm1220, %v1345, 0.0
        %v1720 = vsel %vm1221, %v1347, 0.0
        %v1721 = vsel %vm1222, %v1584, 0.0
        %v1722 = vsel %vm1223, %v1586, 0.0
        %v1723 = vsel %vm1224, %v1692, 0.0
        %v1724 = vpack.c.bf16 %v1694, %v1693
        %v1725 = vpack.c.bf16 %v1696, %v1695
        %v1726 = vpack.c.bf16 %v1698, %v1697
        %v1727 = vpack.c.bf16 %v1700, %v1699
        %v1728 = vpack.c.bf16 %v1702, %v1701
        %v1729 = vpack.c.bf16 %v1704, %v1703
        %v1730 = vpack.c.bf16 %v1706, %v1705
        %v1731 = vpack.c.bf16 %v1708, %v1707
        %v1732 = vpack.c.bf16 %v1710, %v1709
        %v1733 = vpack.c.bf16 %v1712, %v1711
        %v1734 = vpack.c.bf16 %v1714, %v1713
        %v1735 = vpack.c.bf16 %v1716, %v1715
        %v1736 = vpack.c.bf16 %v1718, %v1717
        %v1737 = vpack.c.bf16 %v1720, %v1719
        %v1738 = vpack.c.bf16 %v1722, %v1721
        %v1739 = vpack.c.bf16 0.0, %v1723
        %v1740 = vsel %vm1226, %v1448, 0.0
        %v1741 = vsel %vm1227, %v1450, 0.0
        %v1742 = vsel %vm1228, %v1452, 0.0
        %v1743 = vsel %vm1229, %v1454, 0.0
        %v1744 = vsel %vm1230, %v1456, 0.0
        %v1745 = vsel %vm1231, %v1458, 0.0
        %v1746 = vsel %vm1232, %v1460, 0.0
        %v1747 = vsel %vm1233, %v1462, 0.0
        %v1748 = vsel %vm1234, %v1464, 0.0
        %v1749 = vsel %vm1235, %v1466, 0.0
        %v1750 = vsel %vm1236, %v1468, 0.0
        %v1751 = vsel %vm1237, %v1470, 0.0
        %v1752 = vsel %vm1238, %v1472, 0.0
        %v1753 = vsel %vm1239, %v1474, 0.0
        %v1754 = vsel %vm1240, %v1476, 0.0
        %v1755 = vsel %vm1241, %v1478, 0.0
        %v1756 = vsel %vm1242, %v1480, 0.0
        %v1757 = vsel %vm1243, %v1482, 0.0
        %v1758 = vsel %vm1244, %v1484, 0.0
        %v1759 = vsel %vm1245, %v1486, 0.0
        %v1760 = vsel %vm1246, %v1488, 0.0
        %v1761 = vsel %vm1247, %v1490, 0.0
        %v1762 = vsel %vm1248, %v1492, 0.0
        %v1763 = vsel %vm1249, %v1494, 0.0
        %v1764 = vsel %vm1250, %v1496, 0.0
        %v1765 = vsel %vm1251, %v1498, 0.0
        %v1766 = vsel %vm1252, %v1500, 0.0
        %v1767 = vsel %vm1253, %v1502, 0.0
        %v1768 = vsel %vm1254, %v1639, 0.0
        %v1769 = vsel %vm1255, %v1642, 0.0
        %v1770 = vpack.c.bf16 %v1741, %v1740
        %v1771 = vpack.c.bf16 %v1743, %v1742
        %v1772 = vpack.c.bf16 %v1745, %v1744
        %v1773 = vpack.c.bf16 %v1747, %v1746
        %v1774 = vpack.c.bf16 %v1749, %v1748
        %v1775 = vpack.c.bf16 %v1751, %v1750
        %v1776 = vpack.c.bf16 %v1753, %v1752
        %v1777 = vpack.c.bf16 %v1755, %v1754
        %v1778 = vpack.c.bf16 %v1757, %v1756
        %v1779 = vpack.c.bf16 %v1759, %v1758
        %v1780 = vpack.c.bf16 %v1761, %v1760
        %v1781 = vpack.c.bf16 %v1763, %v1762
        %v1782 = vpack.c.bf16 %v1765, %v1764
        %v1783 = vpack.c.bf16 %v1767, %v1766
        %v1784 = vpack.c.bf16 %v1769, %v1768
        %1801 = vrot.lane.b32.xlu0 %v1409, 32
        %v1802 = vpop.permute.xlu0 %1801
        %1803 = vrot.lane.b32.xlu0 %v1425, 32
        %v1804 = vpop.permute.xlu0 %1803
        %1805 = vrot.lane.b32.xlu0 %v1426, 32
        %v1806 = vpop.permute.xlu0 %1805
        %1807 = vrot.lane.b32.xlu0 %v1427, 32
        %v1808 = vpop.permute.xlu0 %1807
        %1809 = vrot.lane.b32.xlu0 %v1428, 32
        %v1810 = vpop.permute.xlu0 %1809
        %1811 = vrot.lane.b32.xlu0 %v1429, 32
        %v1812 = vpop.permute.xlu0 %1811
        %1813 = vrot.lane.b32.xlu0 %v1430, 32
        %v1814 = vpop.permute.xlu0 %1813
        %1815 = vrot.lane.b32.xlu0 %v1431, 32
        %v1816 = vpop.permute.xlu0 %1815
        %1817 = vrot.lane.b32.xlu0 %v1432, 32
        %v1818 = vpop.permute.xlu0 %1817
        %1819 = vrot.lane.b32.xlu0 %v1433, 32
        %v1820 = vpop.permute.xlu0 %1819
        %1821 = vrot.lane.b32.xlu0 %v1434, 32
        %v1822 = vpop.permute.xlu0 %1821
        %1823 = vrot.lane.b32.xlu0 %v1435, 32
        %v1824 = vpop.permute.xlu0 %1823
        %1825 = vrot.lane.b32.xlu0 %v1436, 32
        %v1826 = vpop.permute.xlu0 %1825
        %1827 = vrot.lane.b32.xlu0 %v1437, 32
        %v1828 = vpop.permute.xlu0 %1827
        %1829 = vrot.lane.b32.xlu0 %v1438, 32
        %v1830 = vpop.permute.xlu0 %1829
        %1831 = vrot.lane.b32.xlu0 %v1439, 32
        %v1832 = vpop.permute.xlu0 %1831
        %1849 = vrot.lane.b32.xlu0 %v1566, 64
        %v1850 = vpop.permute.xlu0 %1849
        %1851 = vrot.lane.b32.xlu0 %v1567, 64
        %v1852 = vpop.permute.xlu0 %1851
        %1853 = vrot.lane.b32.xlu0 %v1568, 64
        %v1854 = vpop.permute.xlu0 %1853
        %1855 = vrot.lane.b32.xlu0 %v1569, 64
        %v1856 = vpop.permute.xlu0 %1855
        %1857 = vrot.lane.b32.xlu0 %v1570, 64
        %v1858 = vpop.permute.xlu0 %1857
        %1859 = vrot.lane.b32.xlu0 %v1571, 64
        %v1860 = vpop.permute.xlu0 %1859
        %1861 = vrot.lane.b32.xlu0 %v1572, 64
        %v1862 = vpop.permute.xlu0 %1861
        %1863 = vrot.lane.b32.xlu0 %v1573, 64
        %v1864 = vpop.permute.xlu0 %1863
        %1865 = vrot.lane.b32.xlu0 %v1574, 64
        %v1866 = vpop.permute.xlu0 %1865
        %1867 = vrot.lane.b32.xlu0 %v1575, 64
        %v1868 = vpop.permute.xlu0 %1867
        %1869 = vrot.lane.b32.xlu0 %v1576, 64
        %v1870 = vpop.permute.xlu0 %1869
        %1871 = vrot.lane.b32.xlu0 %v1577, 64
        %v1872 = vpop.permute.xlu0 %1871
        %1873 = vrot.lane.b32.xlu0 %v1578, 64
        %v1874 = vpop.permute.xlu0 %1873
        %1875 = vrot.lane.b32.xlu0 %v1579, 64
        %v1876 = vpop.permute.xlu0 %1875
        %1877 = vrot.lane.b32.xlu0 %v1580, 64
        %v1878 = vpop.permute.xlu0 %1877
        %1879 = vrot.lane.b32.xlu0 %v1581, 64
        %v1880 = vpop.permute.xlu0 %1879
        %1897 = vrot.lane.b32.xlu0 %v1621, 96
        %v1898 = vpop.permute.xlu0 %1897
        %1899 = vrot.lane.b32.xlu0 %v1622, 96
        %v1900 = vpop.permute.xlu0 %1899
        %1901 = vrot.lane.b32.xlu0 %v1623, 96
        %v1902 = vpop.permute.xlu0 %1901
        %1903 = vrot.lane.b32.xlu0 %v1624, 96
        %v1904 = vpop.permute.xlu0 %1903
        %1905 = vrot.lane.b32.xlu0 %v1625, 96
        %v1906 = vpop.permute.xlu0 %1905
        %1907 = vrot.lane.b32.xlu0 %v1626, 96
        %v1908 = vpop.permute.xlu0 %1907
        %1909 = vrot.lane.b32.xlu0 %v1627, 96
        %v1910 = vpop.permute.xlu0 %1909
        %1911 = vrot.lane.b32.xlu0 %v1628, 96
        %v1912 = vpop.permute.xlu0 %1911
        %1913 = vrot.lane.b32.xlu0 %v1629, 96
        %v1914 = vpop.permute.xlu0 %1913
        %1915 = vrot.lane.b32.xlu0 %v1630, 96
        %v1916 = vpop.permute.xlu0 %1915
        %1917 = vrot.lane.b32.xlu0 %v1631, 96
        %v1918 = vpop.permute.xlu0 %1917
        %1919 = vrot.lane.b32.xlu0 %v1632, 96
        %v1920 = vpop.permute.xlu0 %1919
        %1921 = vrot.lane.b32.xlu0 %v1633, 96
        %v1922 = vpop.permute.xlu0 %1921
        %1923 = vrot.lane.b32.xlu0 %v1634, 96
        %v1924 = vpop.permute.xlu0 %1923
        %1925 = vrot.lane.b32.xlu0 %v1635, 96
        %v1926 = vpop.permute.xlu0 %1925
        %1927 = vrot.lane.b32.xlu0 %v1636, 96
        %v1928 = vpop.permute.xlu0 %1927
        %1945 = vrot.lane.b32.xlu0 %v1675, 32
        %v1946 = vpop.permute.xlu0 %1945
        %1947 = vrot.lane.b32.xlu0 %v1676, 32
        %v1948 = vpop.permute.xlu0 %1947
        %1949 = vrot.lane.b32.xlu0 %v1677, 32
        %v1950 = vpop.permute.xlu0 %1949
        %1951 = vrot.lane.b32.xlu0 %v1678, 32
        %v1952 = vpop.permute.xlu0 %1951
        %1953 = vrot.lane.b32.xlu0 %v1679, 32
        %v1954 = vpop.permute.xlu0 %1953
        %1955 = vrot.lane.b32.xlu0 %v1680, 32
        %v1956 = vpop.permute.xlu0 %1955
        %1957 = vrot.lane.b32.xlu0 %v1681, 32
        %v1958 = vpop.permute.xlu0 %1957
        %1959 = vrot.lane.b32.xlu0 %v1682, 32
        %v1960 = vpop.permute.xlu0 %1959
        %1961 = vrot.lane.b32.xlu0 %v1683, 32
        %v1962 = vpop.permute.xlu0 %1961
        %1963 = vrot.lane.b32.xlu0 %v1684, 32
        %v1964 = vpop.permute.xlu0 %1963
        %1965 = vrot.lane.b32.xlu0 %v1685, 32
        %v1966 = vpop.permute.xlu0 %1965
        %1967 = vrot.lane.b32.xlu0 %v1686, 32
        %v1968 = vpop.permute.xlu0 %1967
        %1969 = vrot.lane.b32.xlu0 %v1687, 32
        %v1970 = vpop.permute.xlu0 %1969
        %1971 = vrot.lane.b32.xlu0 %v1688, 32
        %v1972 = vpop.permute.xlu0 %1971
        %1973 = vrot.lane.b32.xlu0 %v1689, 32
        %v1974 = vpop.permute.xlu0 %1973
        %1975 = vrot.lane.b32.xlu0 %v1690, 32
        %v1976 = vpop.permute.xlu0 %1975
        %1993 = vrot.lane.b32.xlu0 %v1724, 64
        %v1994 = vpop.permute.xlu0 %1993
        %1995 = vrot.lane.b32.xlu0 %v1725, 64
        %v1996 = vpop.permute.xlu0 %1995
        %1997 = vrot.lane.b32.xlu0 %v1726, 64
        %v1998 = vpop.permute.xlu0 %1997
        %1999 = vrot.lane.b32.xlu0 %v1727, 64
        %v2000 = vpop.permute.xlu0 %1999
        %2001 = vrot.lane.b32.xlu0 %v1728, 64
        %v2002 = vpop.permute.xlu0 %2001
        %2003 = vrot.lane.b32.xlu0 %v1729, 64
        %v2004 = vpop.permute.xlu0 %2003
        %2005 = vrot.lane.b32.xlu0 %v1730, 64
        %v2006 = vpop.permute.xlu0 %2005
        %2007 = vrot.lane.b32.xlu0 %v1731, 64
        %v2008 = vpop.permute.xlu0 %2007
        %2009 = vrot.lane.b32.xlu0 %v1732, 64
        %v2010 = vpop.permute.xlu0 %2009
        %2011 = vrot.lane.b32.xlu0 %v1733, 64
        %v2012 = vpop.permute.xlu0 %2011
        %2013 = vrot.lane.b32.xlu0 %v1734, 64
        %v2014 = vpop.permute.xlu0 %2013
        %2015 = vrot.lane.b32.xlu0 %v1735, 64
        %v2016 = vpop.permute.xlu0 %2015
        %2017 = vrot.lane.b32.xlu0 %v1736, 64
        %v2018 = vpop.permute.xlu0 %2017
        %2019 = vrot.lane.b32.xlu0 %v1737, 64
        %v2020 = vpop.permute.xlu0 %2019
        %2021 = vrot.lane.b32.xlu0 %v1738, 64
        %v2022 = vpop.permute.xlu0 %2021
        %2023 = vrot.lane.b32.xlu0 %v1739, 64
        %v2024 = vpop.permute.xlu0 %2023
        %2026 = vrot.lane.b32.xlu0 %v1426, 96
        %v2027 = vpop.permute.xlu0 %2026
        %2028 = vrot.lane.b32.xlu0 %v1427, 96
        %v2029 = vpop.permute.xlu0 %2028
        %2030 = vrot.lane.b32.xlu0 %v1428, 96
        %v2031 = vpop.permute.xlu0 %2030
        %2032 = vrot.lane.b32.xlu0 %v1429, 96
        %v2033 = vpop.permute.xlu0 %2032
        %2034 = vrot.lane.b32.xlu0 %v1430, 96
        %v2035 = vpop.permute.xlu0 %2034
        %2036 = vrot.lane.b32.xlu0 %v1431, 96
        %v2037 = vpop.permute.xlu0 %2036
        %2038 = vrot.lane.b32.xlu0 %v1432, 96
        %v2039 = vpop.permute.xlu0 %2038
        %2040 = vrot.lane.b32.xlu0 %v1433, 96
        %v2041 = vpop.permute.xlu0 %2040
        %2042 = vrot.lane.b32.xlu0 %v1434, 96
        %v2043 = vpop.permute.xlu0 %2042
        %2044 = vrot.lane.b32.xlu0 %v1435, 96
        %v2045 = vpop.permute.xlu0 %2044
        %2046 = vrot.lane.b32.xlu0 %v1436, 96
        %v2047 = vpop.permute.xlu0 %2046
        %2048 = vrot.lane.b32.xlu0 %v1437, 96
        %v2049 = vpop.permute.xlu0 %2048
        %2050 = vrot.lane.b32.xlu0 %v1438, 96
        %v2051 = vpop.permute.xlu0 %2050
        %2052 = vrot.lane.b32.xlu0 %v1439, 96
        %v2053 = vpop.permute.xlu0 %2052
        %2054 = vrot.lane.b32.xlu0 %v1637, 96
        %v2055 = vpop.permute.xlu0 %2054
        %2056 = vrot.lane.b32.xlu0 %v1409, 96
        %v2057 = vpop.permute.xlu0 %2056
        %vm2058 = vcmask 261120
        %v2061 = vsel %vm2058, %v1409, %v1802
        %v2064 = vsel %vm2058, %v1410, %v1804
        %v2067 = vsel %vm2058, %v1411, %v1806
        %v2070 = vsel %vm2058, %v1412, %v1808
        %v2073 = vsel %vm2058, %v1413, %v1810
        %v2076 = vsel %vm2058, %v1414, %v1812
        %v2079 = vsel %vm2058, %v1415, %v1814
        %v2082 = vsel %vm2058, %v1416, %v1816
        %v2085 = vsel %vm2058, %v1417, %v1818
        %v2088 = vsel %vm2058, %v1418, %v1820
        %v2091 = vsel %vm2058, %v1419, %v1822
        %v2094 = vsel %vm2058, %v1420, %v1824
        %v2097 = vsel %vm2058, %v1421, %v1826
        %v2100 = vsel %vm2058, %v1422, %v1828
        %v2103 = vsel %vm2058, %v1423, %v1830
        %v2106 = vsel %vm2058, %v1424, %v1832
        %v2108 = vsel %vm503, %v2061, %v1850
        %v2110 = vsel %vm503, %v2064, %v1852
        %v2112 = vsel %vm503, %v2067, %v1854
        %v2114 = vsel %vm503, %v2070, %v1856
        %v2116 = vsel %vm503, %v2073, %v1858
        %v2118 = vsel %vm503, %v2076, %v1860
        %v2120 = vsel %vm503, %v2079, %v1862
        %v2122 = vsel %vm503, %v2082, %v1864
        %v2124 = vsel %vm503, %v2085, %v1866
        %v2126 = vsel %vm503, %v2088, %v1868
        %v2128 = vsel %vm503, %v2091, %v1870
        %v2130 = vsel %vm503, %v2094, %v1872
        %v2132 = vsel %vm503, %v2097, %v1874
        %v2134 = vsel %vm503, %v2100, %v1876
        %v2136 = vsel %vm503, %v2103, %v1878
        %v2138 = vsel %vm503, %v2106, %v1880
        %vm2139 = vcmask 785408
        %v2141 = vsel %vm2139, %v2108, %v1898
        %v2144 = vsel %vm2139, %v2110, %v1900
        %v2147 = vsel %vm2139, %v2112, %v1902
        %v2150 = vsel %vm2139, %v2114, %v1904
        %v2153 = vsel %vm2139, %v2116, %v1906
        %v2156 = vsel %vm2139, %v2118, %v1908
        %v2159 = vsel %vm2139, %v2120, %v1910
        %v2162 = vsel %vm2139, %v2122, %v1912
        %v2165 = vsel %vm2139, %v2124, %v1914
        %v2168 = vsel %vm2139, %v2126, %v1916
        %v2171 = vsel %vm2139, %v2128, %v1918
        %v2174 = vsel %vm2139, %v2130, %v1920
        %v2177 = vsel %vm2139, %v2132, %v1922
        %v2180 = vsel %vm2139, %v2134, %v1924
        %v2183 = vsel %vm2139, %v2136, %v1926
        %v2186 = vsel %vm2139, %v2138, %v1928
        %v2190 = vsel %vm2058, %v1425, %v1946
        %v2193 = vsel %vm2058, %v1426, %v1948
        %v2196 = vsel %vm2058, %v1427, %v1950
        %v2199 = vsel %vm2058, %v1428, %v1952
        %v2202 = vsel %vm2058, %v1429, %v1954
        %v2205 = vsel %vm2058, %v1430, %v1956
        %v2208 = vsel %vm2058, %v1431, %v1958
        %v2211 = vsel %vm2058, %v1432, %v1960
        %v2214 = vsel %vm2058, %v1433, %v1962
        %v2217 = vsel %vm2058, %v1434, %v1964
        %v2220 = vsel %vm2058, %v1435, %v1966
        %v2223 = vsel %vm2058, %v1436, %v1968
        %v2226 = vsel %vm2058, %v1437, %v1970
        %v2229 = vsel %vm2058, %v1438, %v1972
        %v2232 = vsel %vm2058, %v1439, %v1974
        %v2235 = vsel %vm2058, %v1637, %v1976
        %v2237 = vsel %vm503, %v2190, %v1994
        %v2239 = vsel %vm503, %v2193, %v1996
        %v2241 = vsel %vm503, %v2196, %v1998
        %v2243 = vsel %vm503, %v2199, %v2000
        %v2245 = vsel %vm503, %v2202, %v2002
        %v2247 = vsel %vm503, %v2205, %v2004
        %v2249 = vsel %vm503, %v2208, %v2006
        %v2251 = vsel %vm503, %v2211, %v2008
        %v2253 = vsel %vm503, %v2214, %v2010
        %v2255 = vsel %vm503, %v2217, %v2012
        %v2257 = vsel %vm503, %v2220, %v2014
        %v2259 = vsel %vm503, %v2223, %v2016
        %v2261 = vsel %vm503, %v2226, %v2018
        %v2263 = vsel %vm503, %v2229, %v2020
        %v2265 = vsel %vm503, %v2232, %v2022
        %v2267 = vsel %vm503, %v2235, %v2024
        %v2269 = vsel %vm2139, %v2237, %v2027
        %v2272 = vsel %vm2139, %v2239, %v2029
        %v2275 = vsel %vm2139, %v2241, %v2031
        %v2278 = vsel %vm2139, %v2243, %v2033
        %v2281 = vsel %vm2139, %v2245, %v2035
        %v2284 = vsel %vm2139, %v2247, %v2037
        %v2287 = vsel %vm2139, %v2249, %v2039
        %v2290 = vsel %vm2139, %v2251, %v2041
        %v2293 = vsel %vm2139, %v2253, %v2043
        %v2296 = vsel %vm2139, %v2255, %v2045
        %v2299 = vsel %vm2139, %v2257, %v2047
        %v2302 = vsel %vm2139, %v2259, %v2049
        %v2305 = vsel %vm2139, %v2261, %v2051
        %v2308 = vsel %vm2139, %v2263, %v2053
        %v2311 = vsel %vm2139, %v2265, %v2055
        %v2314 = vsel %vm2139, %v2267, %v2057
        %v2316 = vld [vmem:[%s3] sm:$0xf]
        %v2317 = vld [vmem:[%s3 + $0x4] sm:$0xf]
        %v2318 = vld [vmem:[%s3 + $0x8] sm:$0xf]
        %v2319 = vld [vmem:[%s3 + $0xc] sm:$0xf]
        %v2320 = vld [vmem:[%s3 + $0x10] sm:$0xf]
        %v2321 = vld [vmem:[%s3 + $0x14] sm:$0xf]
        %v2322 = vld [vmem:[%s3 + $0x18] sm:$0xf]
        %v2323 = vld [vmem:[%s3 + $0x1c] sm:$0xf]
        %v2324 = vld [vmem:[%s3 + $0x20] sm:$0xf]
        %v2325 = vld [vmem:[%s3 + $0x24] sm:$0xf]
        %v2326 = vld [vmem:[%s3 + $0x28] sm:$0xf]
        %v2327 = vld [vmem:[%s3 + $0x2c] sm:$0xf]
        %v2328 = vld [vmem:[%s3 + $0x30] sm:$0xf]
        %v2329 = vld [vmem:[%s3 + $0x34] sm:$0xf]
        %v2330 = vld [vmem:[%s3 + $0x38] sm:$0xf]
        %v2331 = vld [vmem:[%s3 + $0x3c] sm:$0xf]
        %v2332 = vld [vmem:[%s3 + $0x40] sm:$0xf]
        %v2333 = vld [vmem:[%s3 + $0x44] sm:$0xf]
        %v2334 = vld [vmem:[%s3 + $0x48] sm:$0xf]
        %v2335 = vld [vmem:[%s3 + $0x4c] sm:$0xf]
        %v2336 = vld [vmem:[%s3 + $0x50] sm:$0xf]
        %v2337 = vld [vmem:[%s3 + $0x54] sm:$0xf]
        %v2338 = vld [vmem:[%s3 + $0x58] sm:$0xf]
        %v2339 = vld [vmem:[%s3 + $0x5c] sm:$0xf]
        %v2340 = vld [vmem:[%s3 + $0x60] sm:$0xf]
        %v2341 = vld [vmem:[%s3 + $0x64] sm:$0xf]
        %v2342 = vld [vmem:[%s3 + $0x68] sm:$0xf]
        %v2343 = vld [vmem:[%s3 + $0x6c] sm:$0xf]
        %v2344 = vld [vmem:[%s3 + $0x70] sm:$0xf]
        %v2345 = vld [vmem:[%s3 + $0x74] sm:$0xf]
        %v2346 = vld [vmem:[%s3 + $0x78] sm:$0xf]
        %v2347 = vld [vmem:[%s3 + $0x7c] sm:$0xf]
        %v2348 = vld [vmem:[%s3 + $0x80] sm:$0xf]
        %v2349 = vld [vmem:[%s3 + $0x84] sm:$0xf]
        %v2350 = vld [vmem:[%s3 + $0x88] sm:$0xf]
        %v2351 = vld [vmem:[%s3 + $0x8c] sm:$0xf]
        %v2388 = vunpack.c.l.b16 %v2316
        %v2389 = vunpack.c.l.b16 %v2317
        %v2390 = vunpack.c.l.b16 %v2318
        %v2391 = vunpack.c.l.b16 %v2319
        %v2392 = vunpack.c.l.b16 %v2320
        %v2393 = vunpack.c.l.b16 %v2321
        %v2394 = vunpack.c.l.b16 %v2322
        %v2395 = vunpack.c.l.b16 %v2323
        %v2396 = vunpack.c.l.b16 %v2324
        %v2397 = vunpack.c.l.b16 %v2325
        %v2398 = vunpack.c.l.b16 %v2326
        %v2399 = vunpack.c.l.b16 %v2327
        %v2400 = vunpack.c.l.b16 %v2328
        %v2401 = vunpack.c.l.b16 %v2329
        %v2402 = vunpack.c.l.b16 %v2330
        %v2403 = vunpack.c.l.b16 %v2331
        %v2404 = vunpack.c.l.b16 %v2332
        %v2405 = vunpack.c.l.b16 %v2333
        %v2406 = vunpack.c.l.b16 %v2334
        %v2407 = vunpack.c.l.b16 %v2335
        %v2408 = vunpack.c.l.b16 %v2336
        %v2409 = vunpack.c.l.b16 %v2337
        %v2410 = vunpack.c.l.b16 %v2338
        %v2411 = vunpack.c.l.b16 %v2339
        %v2412 = vunpack.c.l.b16 %v2340
        %v2413 = vunpack.c.l.b16 %v2341
        %v2414 = vunpack.c.l.b16 %v2342
        %v2415 = vunpack.c.l.b16 %v2343
        %v2416 = vunpack.c.l.b16 %v2344
        %v2417 = vunpack.c.l.b16 %v2345
        %v2418 = vunpack.c.l.b16 %v2346
        %v2419 = vunpack.c.l.b16 %v2347
        %v2420 = vunpack.c.l.b16 %v2348
        %v2421 = vunpack.c.l.b16 %v2349
        %v2422 = vunpack.c.l.b16 %v2350
        %v2423 = vunpack.c.l.b16 %v2351
        %v2424 = vpack.c.b16 %v2389, %v2388
        %v2425 = vpack.c.b16 %v2391, %v2390
        %v2426 = vpack.c.b16 %v2393, %v2392
        %v2427 = vpack.c.b16 %v2395, %v2394
        %v2428 = vpack.c.b16 %v2397, %v2396
        %v2429 = vpack.c.b16 %v2399, %v2398
        %v2430 = vpack.c.b16 %v2401, %v2400
        %v2431 = vpack.c.b16 %v2403, %v2402
        %v2432 = vpack.c.b16 %v2405, %v2404
        %v2433 = vpack.c.b16 %v2407, %v2406
        %v2434 = vpack.c.b16 %v2409, %v2408
        %v2435 = vpack.c.b16 %v2411, %v2410
        %v2436 = vpack.c.b16 %v2413, %v2412
        %v2437 = vpack.c.b16 %v2415, %v2414
        %v2438 = vpack.c.b16 %v2417, %v2416
        %v2439 = vpack.c.b16 %v2419, %v2418
        %v2440 = vpack.c.b16 %v2421, %v2420
        %v2441 = vpack.c.b16 %v2423, %v2422
        %v2461 = vsel %vm2058, %v1770, 0
        %v2464 = vsel %vm2058, %v1771, 0
        %v2467 = vsel %vm2058, %v1772, 0
        %v2470 = vsel %vm2058, %v1773, 0
        %v2473 = vsel %vm2058, %v1774, 0
        %v2476 = vsel %vm2058, %v1775, 0
        %v2479 = vsel %vm2058, %v1776, 0
        %v2482 = vsel %vm2058, %v1777, 0
        %v2485 = vsel %vm2058, %v1778, 0
        %v2488 = vsel %vm2058, %v1779, 0
        %v2491 = vsel %vm2058, %v1780, 0
        %v2494 = vsel %vm2058, %v1781, 0
        %v2497 = vsel %vm2058, %v1782, 0
        %v2500 = vsel %vm2058, %v1783, 0
        %v2503 = vsel %vm2058, %v1784, 0
        %v2505 = vsel %vm2058, %v1409, 0
        %2507 = vmatprep.subr.bf16.mxu0 0
        %2508 = vmatpush1.bf16.msra.mxu0 %v2424
        %2509 = vmatprep.subr.bf16.mxu0 0
        %2510 = vmatpush1.bf16.msra.mxu0 %v2425
        %2511 = vmatprep.subr.bf16.mxu0 0
        %2512 = vmatpush1.bf16.msra.mxu0 %v2426
        %2513 = vmatprep.subr.bf16.mxu0 0
        %2514 = vmatpush1.bf16.msra.mxu0 %v2427
        %2515 = vmatprep.subr.bf16.mxu0 0
        %2516 = vmatpush1.bf16.msra.mxu0 %v2428
        %2517 = vmatprep.subr.bf16.mxu0 0
        %2518 = vmatpush1.bf16.msra.mxu0 %v2429
        %2519 = vmatprep.subr.bf16.mxu0 0
        %2520 = vmatpush1.bf16.msra.mxu0 %v2430
        %2521 = vmatprep.subr.bf16.mxu0 0
        %2522 = vmatpush1.bf16.msra.mxu0 %v2431
        %2523 = vmatprep.subr.bf16.mxu0 0
        %2524 = vmatpush1.bf16.msra.mxu0 %v2432
        %2525 = vmatprep.subr.bf16.mxu0 0
        %2526 = vmatpush1.bf16.msra.mxu0 %v2433
        %2527 = vmatprep.subr.bf16.mxu0 0
        %2528 = vmatpush1.bf16.msra.mxu0 %v2434
        %2529 = vmatprep.subr.bf16.mxu0 0
        %2530 = vmatpush1.bf16.msra.mxu0 %v2435
        %2531 = vmatprep.subr.bf16.mxu0 0
        %2532 = vmatpush1.bf16.msra.mxu0 %v2436
        %2533 = vmatprep.subr.bf16.mxu0 0
        %2534 = vmatpush1.bf16.msra.mxu0 %v2437
        %2535 = vmatprep.subr.bf16.mxu0 0
        %2536 = vmatpush1.bf16.msra.mxu0 %v2438
        %2537 = vmatprep.subr.bf16.mxu0 0
        %2538 = vmatpush1.bf16.msra.mxu0 %v2439
        %2539 = vmatprep.mubr.bf16.mxu0 %v2269
        %2540 = vmatmul.mubr.bf16.gmra.mrb[0].mxu0 %v2141
        %v2541 = vpop.f32.mrb[0].mxu0
        %v2542 = vadd.f32 0.0, %v2541
        %v2543 = vpop.f32.mrb[0].mxu0
        %v2544 = vpop.f32.mrb[0].mxu0
        %v2545 = vadd.f32 0.0, %v2544
        %v2546 = vpop.f32.mrb[0].mxu0
        %2547 = vmatprep.mubr.bf16.mxu0 %v2272
        %2548 = vmatmul.mubr.bf16.gmra.mrb[0].mxu0 %v2144
        %v2549 = vpop.f32.mrb[0].mxu0
        %v2550 = vadd.f32 0.0, %v2549
        %v2551 = vpop.f32.mrb[0].mxu0
        %v2552 = vpop.f32.mrb[0].mxu0
        %v2553 = vadd.f32 0.0, %v2552
        %v2554 = vpop.f32.mrb[0].mxu0
        %2555 = vmatprep.mubr.bf16.mxu0 %v2275
        %2556 = vmatmul.mubr.bf16.gmra.mrb[0].mxu0 %v2147
        %v2557 = vpop.f32.mrb[0].mxu0
        %v2558 = vadd.f32 0.0, %v2557
        %v2559 = vpop.f32.mrb[0].mxu0
        %v2560 = vpop.f32.mrb[0].mxu0
        %v2561 = vadd.f32 0.0, %v2560
        %v2562 = vpop.f32.mrb[0].mxu0
        %2563 = vmatprep.mubr.bf16.mxu0 %v2278
        %2564 = vmatmul.mubr.bf16.gmra.mrb[0].mxu0 %v2150
        %v2565 = vpop.f32.mrb[0].mxu0
        %v2566 = vadd.f32 0.0, %v2565
        %v2567 = vpop.f32.mrb[0].mxu0
        %v2568 = vpop.f32.mrb[0].mxu0
        %v2569 = vadd.f32 0.0, %v2568
        %v2570 = vpop.f32.mrb[0].mxu0
        %2571 = vmatprep.mubr.bf16.mxu0 %v2281
        %2572 = vmatmul.mubr.bf16.gmra.mrb[0].mxu0 %v2153
        %v2573 = vpop.f32.mrb[0].mxu0
        %v2574 = vadd.f32 0.0, %v2573
        %v2575 = vpop.f32.mrb[0].mxu0
        %v2576 = vpop.f32.mrb[0].mxu0
        %v2577 = vadd.f32 0.0, %v2576
        %v2578 = vpop.f32.mrb[0].mxu0
        %2579 = vmatprep.mubr.bf16.mxu0 %v2284
        %2580 = vmatmul.mubr.bf16.gmra.mrb[0].mxu0 %v2156
        %v2581 = vpop.f32.mrb[0].mxu0
        %v2582 = vadd.f32 0.0, %v2581
        %v2583 = vpop.f32.mrb[0].mxu0
        %v2584 = vpop.f32.mrb[0].mxu0
        %v2585 = vadd.f32 0.0, %v2584
        %v2586 = vpop.f32.mrb[0].mxu0
        %2587 = vmatprep.mubr.bf16.mxu0 %v2287
        %2588 = vmatmul.mubr.bf16.gmra.mrb[0].mxu0 %v2159
        %v2589 = vpop.f32.mrb[0].mxu0
        %v2590 = vadd.f32 0.0, %v2589
        %v2591 = vpop.f32.mrb[0].mxu0
        %v2592 = vpop.f32.mrb[0].mxu0
        %v2593 = vadd.f32 0.0, %v2592
        %v2594 = vpop.f32.mrb[0].mxu0
        %2595 = vmatprep.mubr.bf16.mxu0 %v2290
        %2596 = vmatmul.mubr.bf16.gmra.mrb[0].mxu0 %v2162
        %v2597 = vpop.f32.mrb[0].mxu0
        %v2598 = vadd.f32 0.0, %v2597
        %v2599 = vpop.f32.mrb[0].mxu0
        %v2600 = vpop.f32.mrb[0].mxu0
        %v2601 = vadd.f32 0.0, %v2600
        %v2602 = vpop.f32.mrb[0].mxu0
        %2603 = vmatprep.mubr.bf16.mxu0 %v2293
        %2604 = vmatmul.mubr.bf16.gmra.mrb[0].mxu0 %v2165
        %v2605 = vpop.f32.mrb[0].mxu0
        %v2606 = vadd.f32 0.0, %v2605
        %v2607 = vpop.f32.mrb[0].mxu0
        %v2608 = vpop.f32.mrb[0].mxu0
        %v2609 = vadd.f32 0.0, %v2608
        %v2610 = vpop.f32.mrb[0].mxu0
        %2611 = vmatprep.mubr.bf16.mxu0 %v2296
        %2612 = vmatmul.mubr.bf16.gmra.mrb[0].mxu0 %v2168
        %v2613 = vpop.f32.mrb[0].mxu0
        %v2614 = vadd.f32 0.0, %v2613
        %v2615 = vpop.f32.mrb[0].mxu0
        %v2616 = vpop.f32.mrb[0].mxu0
        %v2617 = vadd.f32 0.0, %v2616
        %v2618 = vpop.f32.mrb[0].mxu0
        %2619 = vmatprep.mubr.bf16.mxu0 %v2299
        %2620 = vmatmul.mubr.bf16.gmra.mrb[0].mxu0 %v2171
        %v2621 = vpop.f32.mrb[0].mxu0
        %v2622 = vadd.f32 0.0, %v2621
        %v2623 = vpop.f32.mrb[0].mxu0
        %v2624 = vpop.f32.mrb[0].mxu0
        %v2625 = vadd.f32 0.0, %v2624
        %v2626 = vpop.f32.mrb[0].mxu0
        %2627 = vmatprep.mubr.bf16.mxu0 %v2302
        %2628 = vmatmul.mubr.bf16.gmra.mrb[0].mxu0 %v2174
        %v2629 = vpop.f32.mrb[0].mxu0
        %v2630 = vadd.f32 0.0, %v2629
        %v2631 = vpop.f32.mrb[0].mxu0
        %v2632 = vpop.f32.mrb[0].mxu0
        %v2633 = vadd.f32 0.0, %v2632
        %v2634 = vpop.f32.mrb[0].mxu0
        %2635 = vmatprep.mubr.bf16.mxu0 %v2305
        %2636 = vmatmul.mubr.bf16.gmra.mrb[0].mxu0 %v2177
        %v2637 = vpop.f32.mrb[0].mxu0
        %v2638 = vadd.f32 0.0, %v2637
        %v2639 = vpop.f32.mrb[0].mxu0
        %v2640 = vpop.f32.mrb[0].mxu0
        %v2641 = vadd.f32 0.0, %v2640
        %v2642 = vpop.f32.mrb[0].mxu0
        %2643 = vmatprep.mubr.bf16.mxu0 %v2308
        %2644 = vmatmul.mubr.bf16.gmra.mrb[0].mxu0 %v2180
        %v2645 = vpop.f32.mrb[0].mxu0
        %v2646 = vadd.f32 0.0, %v2645
        %v2647 = vpop.f32.mrb[0].mxu0
        %v2648 = vpop.f32.mrb[0].mxu0
        %v2649 = vadd.f32 0.0, %v2648
        %v2650 = vpop.f32.mrb[0].mxu0
        %2651 = vmatprep.mubr.bf16.mxu0 %v2311
        %2652 = vmatmul.mubr.bf16.gmra.mrb[0].mxu0 %v2183
        %v2653 = vpop.f32.mrb[0].mxu0
        %v2654 = vadd.f32 0.0, %v2653
        %v2655 = vpop.f32.mrb[0].mxu0
        %v2656 = vpop.f32.mrb[0].mxu0
        %v2657 = vadd.f32 0.0, %v2656
        %v2658 = vpop.f32.mrb[0].mxu0
        %2659 = vmatprep.mubr.bf16.mxu0 %v2314
        %2660 = vmatmul.mubr.bf16.gmra.mrb[0].mxu0 %v2186
        %v2661 = vpop.f32.mrb[0].mxu0
        %v2662 = vadd.f32 0.0, %v2661
        %v2663 = vpop.f32.mrb[0].mxu0
        %v2664 = vpop.f32.mrb[0].mxu0
        %v2665 = vadd.f32 0.0, %v2664
        %v2666 = vpop.f32.mrb[0].mxu0
        %2667 = vdwg.mxu0
        %2668 = vmatprep.subr.bf16.mxu0 0
        %2669 = vmatpush1.bf16.msra.mxu0 %v2440
        %2670 = vmatprep.subr.bf16.mxu0 0
        %2671 = vmatpush1.bf16.msra.mxu0 %v2441
        %2672 = vmatprep.subr.bf16.mxu0 0
        %2673 = vmatpush1.bf16.msra.mxu0 0
        %2674 = vmatprep.subr.bf16.mxu0 0
        %2675 = vmatpush1.bf16.msra.mxu0 0
        %2676 = vmatprep.subr.bf16.mxu0 0
        %2677 = vmatpush1.bf16.msra.mxu0 0
        %2678 = vmatprep.subr.bf16.mxu0 0
        %2679 = vmatpush1.bf16.msra.mxu0 0
        %2680 = vmatprep.subr.bf16.mxu0 0
        %2681 = vmatpush1.bf16.msra.mxu0 0
        %2682 = vmatprep.subr.bf16.mxu0 0
        %2683 = vmatpush1.bf16.msra.mxu0 0
        %2684 = vmatprep.subr.bf16.mxu0 0
        %2685 = vmatpush1.bf16.msra.mxu0 0
        %2686 = vmatprep.subr.bf16.mxu0 0
        %2687 = vmatpush1.bf16.msra.mxu0 0
        %2688 = vmatprep.subr.bf16.mxu0 0
        %2689 = vmatpush1.bf16.msra.mxu0 0
        %2690 = vmatprep.subr.bf16.mxu0 0
        %2691 = vmatpush1.bf16.msra.mxu0 0
        %2692 = vmatprep.subr.bf16.mxu0 0
        %2693 = vmatpush1.bf16.msra.mxu0 0
        %2694 = vmatprep.subr.bf16.mxu0 0
        %2695 = vmatpush1.bf16.msra.mxu0 0
        %2696 = vmatprep.subr.bf16.mxu0 0
        %2697 = vmatpush1.bf16.msra.mxu0 0
        %2698 = vmatprep.subr.bf16.mxu0 0
        %2699 = vmatpush1.bf16.msra.mxu0 0
        %2700 = vmatprep.mubr.bf16.mxu0 0
        %2701 = vmatmul.mubr.bf16.gmra.mrb[0].mxu0 %v2461
        %v2702 = vpop.f32.mrb[0].mxu0
        %v2703 = vadd.f32 %v2542, %v2702
        %v2704 = vpop.f32.mrb[0].mxu0
        %v2705 = vpop.f32.mrb[0].mxu0
        %v2706 = vadd.f32 %v2545, %v2705
        %v2707 = vpop.f32.mrb[0].mxu0
        %2708 = vmatprep.mubr.bf16.mxu0 0
        %2709 = vmatmul.mubr.bf16.gmra.mrb[0].mxu0 %v2464
        %v2710 = vpop.f32.mrb[0].mxu0
        %v2711 = vadd.f32 %v2550, %v2710
        %v2712 = vpop.f32.mrb[0].mxu0
        %v2713 = vpop.f32.mrb[0].mxu0
        %v2714 = vadd.f32 %v2553, %v2713
        %v2715 = vpop.f32.mrb[0].mxu0
        %2716 = vmatprep.mubr.bf16.mxu0 0
        %2717 = vmatmul.mubr.bf16.gmra.mrb[0].mxu0 %v2467
        %v2718 = vpop.f32.mrb[0].mxu0
        %v2719 = vadd.f32 %v2558, %v2718
        %v2720 = vpop.f32.mrb[0].mxu0
        %v2721 = vpop.f32.mrb[0].mxu0
        %v2722 = vadd.f32 %v2561, %v2721
        %v2723 = vpop.f32.mrb[0].mxu0
        %2724 = vmatprep.mubr.bf16.mxu0 0
        %2725 = vmatmul.mubr.bf16.gmra.mrb[0].mxu0 %v2470
        %v2726 = vpop.f32.mrb[0].mxu0
        %v2727 = vadd.f32 %v2566, %v2726
        %v2728 = vpop.f32.mrb[0].mxu0
        %v2729 = vpop.f32.mrb[0].mxu0
        %v2730 = vadd.f32 %v2569, %v2729
        %v2731 = vpop.f32.mrb[0].mxu0
        %2732 = vmatprep.mubr.bf16.mxu0 0
        %2733 = vmatmul.mubr.bf16.gmra.mrb[0].mxu0 %v2473
        %v2734 = vpop.f32.mrb[0].mxu0
        %v2735 = vadd.f32 %v2574, %v2734
        %v2736 = vpop.f32.mrb[0].mxu0
        %v2737 = vpop.f32.mrb[0].mxu0
        %v2738 = vadd.f32 %v2577, %v2737
        %v2739 = vpop.f32.mrb[0].mxu0
        %2740 = vmatprep.mubr.bf16.mxu0 0
        %2741 = vmatmul.mubr.bf16.gmra.mrb[0].mxu0 %v2476
        %v2742 = vpop.f32.mrb[0].mxu0
        %v2743 = vadd.f32 %v2582, %v2742
        %v2744 = vpop.f32.mrb[0].mxu0
        %v2745 = vpop.f32.mrb[0].mxu0
        %v2746 = vadd.f32 %v2585, %v2745
        %v2747 = vpop.f32.mrb[0].mxu0
        %2748 = vmatprep.mubr.bf16.mxu0 0
        %2749 = vmatmul.mubr.bf16.gmra.mrb[0].mxu0 %v2479
        %v2750 = vpop.f32.mrb[0].mxu0
        %v2751 = vadd.f32 %v2590, %v2750
        %v2752 = vpop.f32.mrb[0].mxu0
        %v2753 = vpop.f32.mrb[0].mxu0
        %v2754 = vadd.f32 %v2593, %v2753
        %v2755 = vpop.f32.mrb[0].mxu0
        %2756 = vmatprep.mubr.bf16.mxu0 0
        %2757 = vmatmul.mubr.bf16.gmra.mrb[0].mxu0 %v2482
        %v2758 = vpop.f32.mrb[0].mxu0
        %v2759 = vadd.f32 %v2598, %v2758
        %v2760 = vpop.f32.mrb[0].mxu0
        %v2761 = vpop.f32.mrb[0].mxu0
        %v2762 = vadd.f32 %v2601, %v2761
        %v2763 = vpop.f32.mrb[0].mxu0
        %2764 = vmatprep.mubr.bf16.mxu0 0
        %2765 = vmatmul.mubr.bf16.gmra.mrb[0].mxu0 %v2485
        %v2766 = vpop.f32.mrb[0].mxu0
        %v2767 = vadd.f32 %v2606, %v2766
        %v2768 = vpop.f32.mrb[0].mxu0
        %v2769 = vpop.f32.mrb[0].mxu0
        %v2770 = vadd.f32 %v2609, %v2769
        %v2771 = vpop.f32.mrb[0].mxu0
        %2772 = vmatprep.mubr.bf16.mxu0 0
        %2773 = vmatmul.mubr.bf16.gmra.mrb[0].mxu0 %v2488
        %v2774 = vpop.f32.mrb[0].mxu0
        %v2775 = vadd.f32 %v2614, %v2774
        %v2776 = vpop.f32.mrb[0].mxu0
        %v2777 = vpop.f32.mrb[0].mxu0
        %v2778 = vadd.f32 %v2617, %v2777
        %v2779 = vpop.f32.mrb[0].mxu0
        %2780 = vmatprep.mubr.bf16.mxu0 0
        %2781 = vmatmul.mubr.bf16.gmra.mrb[0].mxu0 %v2491
        %v2782 = vpop.f32.mrb[0].mxu0
        %v2783 = vadd.f32 %v2622, %v2782
        %v2784 = vpop.f32.mrb[0].mxu0
        %v2785 = vpop.f32.mrb[0].mxu0
        %v2786 = vadd.f32 %v2625, %v2785
        %v2787 = vpop.f32.mrb[0].mxu0
        %2788 = vmatprep.mubr.bf16.mxu0 0
        %2789 = vmatmul.mubr.bf16.gmra.mrb[0].mxu0 %v2494
        %v2790 = vpop.f32.mrb[0].mxu0
        %v2791 = vadd.f32 %v2630, %v2790
        %v2792 = vpop.f32.mrb[0].mxu0
        %v2793 = vpop.f32.mrb[0].mxu0
        %v2794 = vadd.f32 %v2633, %v2793
        %v2795 = vpop.f32.mrb[0].mxu0
        %2796 = vmatprep.mubr.bf16.mxu0 0
        %2797 = vmatmul.mubr.bf16.gmra.mrb[0].mxu0 %v2497
        %v2798 = vpop.f32.mrb[0].mxu0
        %v2799 = vadd.f32 %v2638, %v2798
        %v2800 = vpop.f32.mrb[0].mxu0
        %v2801 = vpop.f32.mrb[0].mxu0
        %v2802 = vadd.f32 %v2641, %v2801
        %v2803 = vpop.f32.mrb[0].mxu0
        %2804 = vmatprep.mubr.bf16.mxu0 0
        %2805 = vmatmul.mubr.bf16.gmra.mrb[0].mxu0 %v2500
        %v2806 = vpop.f32.mrb[0].mxu0
        %v2807 = vadd.f32 %v2646, %v2806
        %v2808 = vpop.f32.mrb[0].mxu0
        %v2809 = vpop.f32.mrb[0].mxu0
        %v2810 = vadd.f32 %v2649, %v2809
        %v2811 = vpop.f32.mrb[0].mxu0
        %2812 = vmatprep.mubr.bf16.mxu0 0
        %2813 = vmatmul.mubr.bf16.gmra.mrb[0].mxu0 %v2503
        %v2814 = vpop.f32.mrb[0].mxu0
        %v2815 = vadd.f32 %v2654, %v2814
        %v2816 = vpop.f32.mrb[0].mxu0
        %v2817 = vpop.f32.mrb[0].mxu0
        %v2818 = vadd.f32 %v2657, %v2817
        %v2819 = vpop.f32.mrb[0].mxu0
        %2820 = vmatprep.mubr.bf16.mxu0 0
        %2821 = vmatmul.mubr.bf16.gmra.mrb[0].mxu0 %v2505
        %v2822 = vpop.f32.mrb[0].mxu0
        %v2823 = vadd.f32 %v2662, %v2822
        %v2824 = vpop.f32.mrb[0].mxu0
        %v2825 = vpop.f32.mrb[0].mxu0
        %v2826 = vadd.f32 %v2665, %v2825
        %v2827 = vpop.f32.mrb[0].mxu0
        %2828 = vdwg.mxu0
        %v2829 = vld [vmem:[%s4] sm:$0x1]
        %v2831 = vlaneseq
        %v2832 = vshrl.u32 %v2831, 7
        %v2833 = vsub.s32 0, %v2832
        %v2834 = vrot.slane %v2829, %v2833
        %v2836 = vmul.f32 %v2703, %v2834
        %v2837 = vmul.f32 %v2706, %v2834
        %v2838 = vmul.f32 %v2711, %v2834
        %v2839 = vmul.f32 %v2714, %v2834
        %v2840 = vmul.f32 %v2719, %v2834
        %v2841 = vmul.f32 %v2722, %v2834
        %v2842 = vmul.f32 %v2727, %v2834
        %v2843 = vmul.f32 %v2730, %v2834
        %v2844 = vmul.f32 %v2735, %v2834
        %v2845 = vmul.f32 %v2738, %v2834
        %v2846 = vmul.f32 %v2743, %v2834
        %v2847 = vmul.f32 %v2746, %v2834
        %v2848 = vmul.f32 %v2751, %v2834
        %v2849 = vmul.f32 %v2754, %v2834
        %v2850 = vmul.f32 %v2759, %v2834
        %v2851 = vmul.f32 %v2762, %v2834
        %v2852 = vmul.f32 %v2767, %v2834
        %v2853 = vmul.f32 %v2770, %v2834
        %v2854 = vmul.f32 %v2775, %v2834
        %v2855 = vmul.f32 %v2778, %v2834
        %v2856 = vmul.f32 %v2783, %v2834
        %v2857 = vmul.f32 %v2786, %v2834
        %v2858 = vmul.f32 %v2791, %v2834
        %v2859 = vmul.f32 %v2794, %v2834
        %v2860 = vmul.f32 %v2799, %v2834
        %v2861 = vmul.f32 %v2802, %v2834
        %v2862 = vmul.f32 %v2807, %v2834
        %v2863 = vmul.f32 %v2810, %v2834
        %v2864 = vmul.f32 %v2815, %v2834
        %v2865 = vmul.f32 %v2818, %v2834
        %v2866 = vmul.f32 %v2823, %v2834
        %v2867 = vmul.f32 %v2826, %v2834
        %v2868 = vld [vmem:[%s5] sm:$0x1]
        %v2870 = vlaneseq
        %v2871 = vshrl.u32 %v2870, 7
        %v2872 = vsub.s32 0, %v2871
        %v2873 = vrot.slane %v2868, %v2872
        %v2875 = vadd.f32 %v2836, %v2873
        %v2876 = vadd.f32 %v2837, %v2873
        %v2877 = vadd.f32 %v2838, %v2873
        %v2878 = vadd.f32 %v2839, %v2873
        %v2879 = vadd.f32 %v2840, %v2873
        %v2880 = vadd.f32 %v2841, %v2873
        %v2881 = vadd.f32 %v2842, %v2873
        %v2882 = vadd.f32 %v2843, %v2873
        %v2883 = vadd.f32 %v2844, %v2873
        %v2884 = vadd.f32 %v2845, %v2873
        %v2885 = vadd.f32 %v2846, %v2873
        %v2886 = vadd.f32 %v2847, %v2873
        %v2887 = vadd.f32 %v2848, %v2873
        %v2888 = vadd.f32 %v2849, %v2873
        %v2889 = vadd.f32 %v2850, %v2873
        %v2890 = vadd.f32 %v2851, %v2873
        %v2891 = vadd.f32 %v2852, %v2873
        %v2892 = vadd.f32 %v2853, %v2873
        %v2893 = vadd.f32 %v2854, %v2873
        %v2894 = vadd.f32 %v2855, %v2873
        %v2895 = vadd.f32 %v2856, %v2873
        %v2896 = vadd.f32 %v2857, %v2873
        %v2897 = vadd.f32 %v2858, %v2873
        %v2898 = vadd.f32 %v2859, %v2873
        %v2899 = vadd.f32 %v2860, %v2873
        %v2900 = vadd.f32 %v2861, %v2873
        %v2901 = vadd.f32 %v2862, %v2873
        %v2902 = vadd.f32 %v2863, %v2873
        %v2903 = vadd.f32 %v2864, %v2873
        %v2904 = vadd.f32 %v2865, %v2873
        %v2905 = vadd.f32 %v2866, %v2873
        %v2906 = vadd.f32 %v2867, %v2873
        %v2907 = vpack.c.bf16 %v2876, %v2875
        %v2908 = vpack.c.bf16 %v2878, %v2877
        %v2909 = vpack.c.bf16 %v2880, %v2879
        %v2910 = vpack.c.bf16 %v2882, %v2881
        %v2911 = vpack.c.bf16 %v2884, %v2883
        %v2912 = vpack.c.bf16 %v2886, %v2885
        %v2913 = vpack.c.bf16 %v2888, %v2887
        %v2914 = vpack.c.bf16 %v2890, %v2889
        %v2915 = vpack.c.bf16 %v2892, %v2891
        %v2916 = vpack.c.bf16 %v2894, %v2893
        %v2917 = vpack.c.bf16 %v2896, %v2895
        %v2918 = vpack.c.bf16 %v2898, %v2897
        %v2919 = vpack.c.bf16 %v2900, %v2899
        %v2920 = vpack.c.bf16 %v2902, %v2901
        %v2921 = vpack.c.bf16 %v2904, %v2903
        %v2922 = vpack.c.bf16 %v2906, %v2905
        %v2923 = vld [vmem:[%s6] sm:$0xf]
        %v2924 = vld [vmem:[%s6 + $0x4] sm:$0xf]
        %v2925 = vld [vmem:[%s6 + $0x8] sm:$0xf]
        %v2926 = vld [vmem:[%s6 + $0xc] sm:$0xf]
        %v2927 = vld [vmem:[%s7] sm:$0x1]
        %v2929 = vlaneseq
        %v2930 = vshrl.u32 %v2929, 7
        %v2931 = vsub.s32 0, %v2930
        %v2932 = vrot.slane %v2927, %v2931
        %v2938 = vunpack.c.l.b16 %v2923
        %v2939 = vunpack.c.l.b16 %v2924
        %v2940 = vunpack.c.l.b16 %v2925
        %v2941 = vunpack.c.l.b16 %v2926
        %v2942 = vpack.c.b16 %v2939, %v2938
        %v2943 = vpack.c.b16 %v2941, %v2940
        %v2947 = vsel %vm2058, %v2907, 0
        %v2950 = vsel %vm2058, %v2908, 0
        %v2953 = vsel %vm2058, %v2909, 0
        %v2956 = vsel %vm2058, %v2910, 0
        %v2959 = vsel %vm2058, %v2911, 0
        %v2962 = vsel %vm2058, %v2912, 0
        %v2965 = vsel %vm2058, %v2913, 0
        %v2968 = vsel %vm2058, %v2914, 0
        %v2971 = vsel %vm2058, %v2915, 0
        %v2974 = vsel %vm2058, %v2916, 0
        %v2977 = vsel %vm2058, %v2917, 0
        %v2980 = vsel %vm2058, %v2918, 0
        %v2983 = vsel %vm2058, %v2919, 0
        %v2986 = vsel %vm2058, %v2920, 0
        %v2989 = vsel %vm2058, %v2921, 0
        %v2992 = vsel %vm2058, %v2922, 0
        %2994 = vmatprep.subr.bf16.mxu0 0
        %2995 = vmatpush1.bf16.msra.mxu0 %v2942
        %2996 = vmatprep.subr.bf16.mxu0 0
        %2997 = vmatpush1.bf16.msra.mxu0 %v2943
        %2998 = vmatprep.subr.bf16.mxu0 0
        %2999 = vmatpush1.bf16.msra.mxu0 0
        %3000 = vmatprep.subr.bf16.mxu0 0
        %3001 = vmatpush1.bf16.msra.mxu0 0
        %3002 = vmatprep.subr.bf16.mxu0 0
        %3003 = vmatpush1.bf16.msra.mxu0 0
        %3004 = vmatprep.subr.bf16.mxu0 0
        %3005 = vmatpush1.bf16.msra.mxu0 0
        %3006 = vmatprep.subr.bf16.mxu0 0
        %3007 = vmatpush1.bf16.msra.mxu0 0
        %3008 = vmatprep.subr.bf16.mxu0 0
        %3009 = vmatpush1.bf16.msra.mxu0 0
        %3010 = vmatprep.subr.bf16.mxu0 0
        %3011 = vmatpush1.bf16.msra.mxu0 0
        %3012 = vmatprep.subr.bf16.mxu0 0
        %3013 = vmatpush1.bf16.msra.mxu0 0
        %3014 = vmatprep.subr.bf16.mxu0 0
        %3015 = vmatpush1.bf16.msra.mxu0 0
        %3016 = vmatprep.subr.bf16.mxu0 0
        %3017 = vmatpush1.bf16.msra.mxu0 0
        %3018 = vmatprep.subr.bf16.mxu0 0
        %3019 = vmatpush1.bf16.msra.mxu0 0
        %3020 = vmatprep.subr.bf16.mxu0 0
        %3021 = vmatpush1.bf16.msra.mxu0 0
        %3022 = vmatprep.subr.bf16.mxu0 0
        %3023 = vmatpush1.bf16.msra.mxu0 0
        %3024 = vmatprep.subr.bf16.mxu0 0
        %3025 = vmatpush1.bf16.msra.mxu0 0
        %3026 = vmatprep.mubr.bf16.mxu0 0
        %3027 = vmatmul.mubr.bf16.gmra.mrb[0].mxu0 %v2947
        %v3028 = vpop.f32.mrb[0].mxu0
        %v3029 = vadd.f32 %v2932, %v3028
        %v3030 = vpop.f32.mrb[0].mxu0
        %v3031 = vpop.f32.mrb[0].mxu0
        %v3032 = vadd.f32 %v2932, %v3031
        %v3033 = vpop.f32.mrb[0].mxu0
        %3034 = vmatprep.mubr.bf16.mxu0 0
        %3035 = vmatmul.mubr.bf16.gmra.mrb[0].mxu0 %v2950
        %v3036 = vpop.f32.mrb[0].mxu0
        %v3037 = vadd.f32 %v2932, %v3036
        %v3038 = vpop.f32.mrb[0].mxu0
        %v3039 = vpop.f32.mrb[0].mxu0
        %v3040 = vadd.f32 %v2932, %v3039
        %v3041 = vpop.f32.mrb[0].mxu0
        %3042 = vmatprep.mubr.bf16.mxu0 0
        %3043 = vmatmul.mubr.bf16.gmra.mrb[0].mxu0 %v2953
        %v3044 = vpop.f32.mrb[0].mxu0
        %v3045 = vadd.f32 %v2932, %v3044
        %v3046 = vpop.f32.mrb[0].mxu0
        %v3047 = vpop.f32.mrb[0].mxu0
        %v3048 = vadd.f32 %v2932, %v3047
        %v3049 = vpop.f32.mrb[0].mxu0
        %3050 = vmatprep.mubr.bf16.mxu0 0
        %3051 = vmatmul.mubr.bf16.gmra.mrb[0].mxu0 %v2956
        %v3052 = vpop.f32.mrb[0].mxu0
        %v3053 = vadd.f32 %v2932, %v3052
        %v3054 = vpop.f32.mrb[0].mxu0
        %v3055 = vpop.f32.mrb[0].mxu0
        %v3056 = vadd.f32 %v2932, %v3055
        %v3057 = vpop.f32.mrb[0].mxu0
        %3058 = vmatprep.mubr.bf16.mxu0 0
        %3059 = vmatmul.mubr.bf16.gmra.mrb[0].mxu0 %v2959
        %v3060 = vpop.f32.mrb[0].mxu0
        %v3061 = vadd.f32 %v2932, %v3060
        %v3062 = vpop.f32.mrb[0].mxu0
        %v3063 = vpop.f32.mrb[0].mxu0
        %v3064 = vadd.f32 %v2932, %v3063
        %v3065 = vpop.f32.mrb[0].mxu0
        %3066 = vmatprep.mubr.bf16.mxu0 0
        %3067 = vmatmul.mubr.bf16.gmra.mrb[0].mxu0 %v2962
        %v3068 = vpop.f32.mrb[0].mxu0
        %v3069 = vadd.f32 %v2932, %v3068
        %v3070 = vpop.f32.mrb[0].mxu0
        %v3071 = vpop.f32.mrb[0].mxu0
        %v3072 = vadd.f32 %v2932, %v3071
        %v3073 = vpop.f32.mrb[0].mxu0
        %3074 = vmatprep.mubr.bf16.mxu0 0
        %3075 = vmatmul.mubr.bf16.gmra.mrb[0].mxu0 %v2965
        %v3076 = vpop.f32.mrb[0].mxu0
        %v3077 = vadd.f32 %v2932, %v3076
        %v3078 = vpop.f32.mrb[0].mxu0
        %v3079 = vpop.f32.mrb[0].mxu0
        %v3080 = vadd.f32 %v2932, %v3079
        %v3081 = vpop.f32.mrb[0].mxu0
        %3082 = vmatprep.mubr.bf16.mxu0 0
        %3083 = vmatmul.mubr.bf16.gmra.mrb[0].mxu0 %v2968
        %v3084 = vpop.f32.mrb[0].mxu0
        %v3085 = vadd.f32 %v2932, %v3084
        %v3086 = vpop.f32.mrb[0].mxu0
        %v3087 = vpop.f32.mrb[0].mxu0
        %v3088 = vadd.f32 %v2932, %v3087
        %v3089 = vpop.f32.mrb[0].mxu0
        %3090 = vmatprep.mubr.bf16.mxu0 0
        %3091 = vmatmul.mubr.bf16.gmra.mrb[0].mxu0 %v2971
        %v3092 = vpop.f32.mrb[0].mxu0
        %v3093 = vadd.f32 %v2932, %v3092
        %v3094 = vpop.f32.mrb[0].mxu0
        %v3095 = vpop.f32.mrb[0].mxu0
        %v3096 = vadd.f32 %v2932, %v3095
        %v3097 = vpop.f32.mrb[0].mxu0
        %3098 = vmatprep.mubr.bf16.mxu0 0
        %3099 = vmatmul.mubr.bf16.gmra.mrb[0].mxu0 %v2974
        %v3100 = vpop.f32.mrb[0].mxu0
        %v3101 = vadd.f32 %v2932, %v3100
        %v3102 = vpop.f32.mrb[0].mxu0
        %v3103 = vpop.f32.mrb[0].mxu0
        %v3104 = vadd.f32 %v2932, %v3103
        %v3105 = vpop.f32.mrb[0].mxu0
        %3106 = vmatprep.mubr.bf16.mxu0 0
        %3107 = vmatmul.mubr.bf16.gmra.mrb[0].mxu0 %v2977
        %v3108 = vpop.f32.mrb[0].mxu0
        %v3109 = vadd.f32 %v2932, %v3108
        %v3110 = vpop.f32.mrb[0].mxu0
        %v3111 = vpop.f32.mrb[0].mxu0
        %v3112 = vadd.f32 %v2932, %v3111
        %v3113 = vpop.f32.mrb[0].mxu0
        %3114 = vmatprep.mubr.bf16.mxu0 0
        %3115 = vmatmul.mubr.bf16.gmra.mrb[0].mxu0 %v2980
        %v3116 = vpop.f32.mrb[0].mxu0
        %v3117 = vadd.f32 %v2932, %v3116
        %v3118 = vpop.f32.mrb[0].mxu0
        %v3119 = vpop.f32.mrb[0].mxu0
        %v3120 = vadd.f32 %v2932, %v3119
        %v3121 = vpop.f32.mrb[0].mxu0
        %3122 = vmatprep.mubr.bf16.mxu0 0
        %3123 = vmatmul.mubr.bf16.gmra.mrb[0].mxu0 %v2983
        %v3124 = vpop.f32.mrb[0].mxu0
        %v3125 = vadd.f32 %v2932, %v3124
        %v3126 = vpop.f32.mrb[0].mxu0
        %v3127 = vpop.f32.mrb[0].mxu0
        %v3128 = vadd.f32 %v2932, %v3127
        %v3129 = vpop.f32.mrb[0].mxu0
        %3130 = vmatprep.mubr.bf16.mxu0 0
        %3131 = vmatmul.mubr.bf16.gmra.mrb[0].mxu0 %v2986
        %v3132 = vpop.f32.mrb[0].mxu0
        %v3133 = vadd.f32 %v2932, %v3132
        %v3134 = vpop.f32.mrb[0].mxu0
        %v3135 = vpop.f32.mrb[0].mxu0
        %v3136 = vadd.f32 %v2932, %v3135
        %v3137 = vpop.f32.mrb[0].mxu0
        %3138 = vmatprep.mubr.bf16.mxu0 0
        %3139 = vmatmul.mubr.bf16.gmra.mrb[0].mxu0 %v2989
        %v3140 = vpop.f32.mrb[0].mxu0
        %v3141 = vadd.f32 %v2932, %v3140
        %v3142 = vpop.f32.mrb[0].mxu0
        %v3143 = vpop.f32.mrb[0].mxu0
        %v3144 = vadd.f32 %v2932, %v3143
        %v3145 = vpop.f32.mrb[0].mxu0
        %3146 = vmatprep.mubr.bf16.mxu0 0
        %3147 = vmatmul.mubr.bf16.gmra.mrb[0].mxu0 %v2992
        %v3148 = vpop.f32.mrb[0].mxu0
        %v3149 = vadd.f32 %v2932, %v3148
        %v3150 = vpop.f32.mrb[0].mxu0
        %v3151 = vpop.f32.mrb[0].mxu0
        %v3152 = vadd.f32 %v2932, %v3151
        %v3153 = vpop.f32.mrb[0].mxu0
        %3154 = vdwg.mxu0
        %v3155 = vmax.f32 %v3029, 0.0
        %v3156 = vmax.f32 %v3032, 0.0
        %v3157 = vmax.f32 %v3037, 0.0
        %v3158 = vmax.f32 %v3040, 0.0
        %v3159 = vmax.f32 %v3045, 0.0
        %v3160 = vmax.f32 %v3048, 0.0
        %v3161 = vmax.f32 %v3053, 0.0
        %v3162 = vmax.f32 %v3056, 0.0
        %v3163 = vmax.f32 %v3061, 0.0
        %v3164 = vmax.f32 %v3064, 0.0
        %v3165 = vmax.f32 %v3069, 0.0
        %v3166 = vmax.f32 %v3072, 0.0
        %v3167 = vmax.f32 %v3077, 0.0
        %v3168 = vmax.f32 %v3080, 0.0
        %v3169 = vmax.f32 %v3085, 0.0
        %v3170 = vmax.f32 %v3088, 0.0
        %v3171 = vmax.f32 %v3093, 0.0
        %v3172 = vmax.f32 %v3096, 0.0
        %v3173 = vmax.f32 %v3101, 0.0
        %v3174 = vmax.f32 %v3104, 0.0
        %v3175 = vmax.f32 %v3109, 0.0
        %v3176 = vmax.f32 %v3112, 0.0
        %v3177 = vmax.f32 %v3117, 0.0
        %v3178 = vmax.f32 %v3120, 0.0
        %v3179 = vmax.f32 %v3125, 0.0
        %v3180 = vmax.f32 %v3128, 0.0
        %v3181 = vmax.f32 %v3133, 0.0
        %v3182 = vmax.f32 %v3136, 0.0
        %v3183 = vmax.f32 %v3141, 0.0
        %v3184 = vmax.f32 %v3144, 0.0
        %v3185 = vmax.f32 %v3149, 0.0
        %v3186 = vmax.f32 %v3152, 0.0
        %v3187 = vpack.c.bf16 %v3156, %v3155
        %v3188 = vpack.c.bf16 %v3158, %v3157
        %v3189 = vpack.c.bf16 %v3160, %v3159
        %v3190 = vpack.c.bf16 %v3162, %v3161
        %v3191 = vpack.c.bf16 %v3164, %v3163
        %v3192 = vpack.c.bf16 %v3166, %v3165
        %v3193 = vpack.c.bf16 %v3168, %v3167
        %v3194 = vpack.c.bf16 %v3170, %v3169
        %v3195 = vpack.c.bf16 %v3172, %v3171
        %v3196 = vpack.c.bf16 %v3174, %v3173
        %v3197 = vpack.c.bf16 %v3176, %v3175
        %v3198 = vpack.c.bf16 %v3178, %v3177
        %v3199 = vpack.c.bf16 %v3180, %v3179
        %v3200 = vpack.c.bf16 %v3182, %v3181
        %v3201 = vpack.c.bf16 %v3184, %v3183
        %v3202 = vpack.c.bf16 %v3186, %v3185
        %v3203 = vld [vmem:[%s8] sm:$0xf]
        %v3204 = vld [vmem:[%s8 + $0x4] sm:$0xf]
        %v3205 = vld [vmem:[%s8 + $0x8] sm:$0xf]
        %v3206 = vld [vmem:[%s8 + $0xc] sm:$0xf]
        %v3211 = vunpack.c.l.b16 %v3203
        %v3212 = vunpack.c.l.b16 %v3204
        %v3213 = vunpack.c.l.b16 %v3205
        %v3214 = vunpack.c.l.b16 %v3206
        %v3215 = vpack.c.b16 %v3212, %v3211
        %v3216 = vpack.c.b16 %v3214, %v3213
        %v3220 = vsel %vm2058, %v3187, 0
        %v3223 = vsel %vm2058, %v3188, 0
        %v3226 = vsel %vm2058, %v3189, 0
        %v3229 = vsel %vm2058, %v3190, 0
        %v3232 = vsel %vm2058, %v3191, 0
        %v3235 = vsel %vm2058, %v3192, 0
        %v3238 = vsel %vm2058, %v3193, 0
        %v3241 = vsel %vm2058, %v3194, 0
        %v3244 = vsel %vm2058, %v3195, 0
        %v3247 = vsel %vm2058, %v3196, 0
        %v3250 = vsel %vm2058, %v3197, 0
        %v3253 = vsel %vm2058, %v3198, 0
        %v3256 = vsel %vm2058, %v3199, 0
        %v3259 = vsel %vm2058, %v3200, 0
        %v3262 = vsel %vm2058, %v3201, 0
        %v3265 = vsel %vm2058, %v3202, 0
        %3267 = vmatprep.subr.bf16.mxu0 0
        %3268 = vmatpush1.bf16.msra.mxu0 %v3215
        %3269 = vmatprep.subr.bf16.mxu0 0
        %3270 = vmatpush1.bf16.msra.mxu0 %v3216
        %3271 = vmatprep.subr.bf16.mxu0 0
        %3272 = vmatpush1.bf16.msra.mxu0 0
        %3273 = vmatprep.subr.bf16.mxu0 0
        %3274 = vmatpush1.bf16.msra.mxu0 0
        %3275 = vmatprep.subr.bf16.mxu0 0
        %3276 = vmatpush1.bf16.msra.mxu0 0
        %3277 = vmatprep.subr.bf16.mxu0 0
        %3278 = vmatpush1.bf16.msra.mxu0 0
        %3279 = vmatprep.subr.bf16.mxu0 0
        %3280 = vmatpush1.bf16.msra.mxu0 0
        %3281 = vmatprep.subr.bf16.mxu0 0
        %3282 = vmatpush1.bf16.msra.mxu0 0
        %3283 = vmatprep.subr.bf16.mxu0 0
        %3284 = vmatpush1.bf16.msra.mxu0 0
        %3285 = vmatprep.subr.bf16.mxu0 0
        %3286 = vmatpush1.bf16.msra.mxu0 0
        %3287 = vmatprep.subr.bf16.mxu0 0
        %3288 = vmatpush1.bf16.msra.mxu0 0
        %3289 = vmatprep.subr.bf16.mxu0 0
        %3290 = vmatpush1.bf16.msra.mxu0 0
        %3291 = vmatprep.subr.bf16.mxu0 0
        %3292 = vmatpush1.bf16.msra.mxu0 0
        %3293 = vmatprep.subr.bf16.mxu0 0
        %3294 = vmatpush1.bf16.msra.mxu0 0
        %3295 = vmatprep.subr.bf16.mxu0 0
        %3296 = vmatpush1.bf16.msra.mxu0 0
        %3297 = vmatprep.subr.bf16.mxu0 0
        %3298 = vmatpush1.bf16.msra.mxu0 0
        %3299 = vmatprep.mubr.bf16.mxu0 0
        %3300 = vmatmul.mubr.bf16.gmra.mrb[0].mxu0 %v3220
        %v3301 = vpop.f32.mrb[0].mxu0
        %v3302 = vadd.f32 0.0, %v3301
        %v3303 = vpop.f32.mrb[0].mxu0
        %v3304 = vpop.f32.mrb[0].mxu0
        %v3305 = vadd.f32 0.0, %v3304
        %v3306 = vpop.f32.mrb[0].mxu0
        %3307 = vmatprep.mubr.bf16.mxu0 0
        %3308 = vmatmul.mubr.bf16.gmra.mrb[0].mxu0 %v3223
        %v3309 = vpop.f32.mrb[0].mxu0
        %v3310 = vadd.f32 0.0, %v3309
        %v3311 = vpop.f32.mrb[0].mxu0
        %v3312 = vpop.f32.mrb[0].mxu0
        %v3313 = vadd.f32 0.0, %v3312
        %v3314 = vpop.f32.mrb[0].mxu0
        %3315 = vmatprep.mubr.bf16.mxu0 0
        %3316 = vmatmul.mubr.bf16.gmra.mrb[0].mxu0 %v3226
        %v3317 = vpop.f32.mrb[0].mxu0
        %v3318 = vadd.f32 0.0, %v3317
        %v3319 = vpop.f32.mrb[0].mxu0
        %v3320 = vpop.f32.mrb[0].mxu0
        %v3321 = vadd.f32 0.0, %v3320
        %v3322 = vpop.f32.mrb[0].mxu0
        %3323 = vmatprep.mubr.bf16.mxu0 0
        %3324 = vmatmul.mubr.bf16.gmra.mrb[0].mxu0 %v3229
        %v3325 = vpop.f32.mrb[0].mxu0
        %v3326 = vadd.f32 0.0, %v3325
        %v3327 = vpop.f32.mrb[0].mxu0
        %v3328 = vpop.f32.mrb[0].mxu0
        %v3329 = vadd.f32 0.0, %v3328
        %v3330 = vpop.f32.mrb[0].mxu0
        %3331 = vmatprep.mubr.bf16.mxu0 0
        %3332 = vmatmul.mubr.bf16.gmra.mrb[0].mxu0 %v3232
        %v3333 = vpop.f32.mrb[0].mxu0
        %v3334 = vadd.f32 0.0, %v3333
        %v3335 = vpop.f32.mrb[0].mxu0
        %v3336 = vpop.f32.mrb[0].mxu0
        %v3337 = vadd.f32 0.0, %v3336
        %v3338 = vpop.f32.mrb[0].mxu0
        %3339 = vmatprep.mubr.bf16.mxu0 0
        %3340 = vmatmul.mubr.bf16.gmra.mrb[0].mxu0 %v3235
        %v3341 = vpop.f32.mrb[0].mxu0
        %v3342 = vadd.f32 0.0, %v3341
        %v3343 = vpop.f32.mrb[0].mxu0
        %v3344 = vpop.f32.mrb[0].mxu0
        %v3345 = vadd.f32 0.0, %v3344
        %v3346 = vpop.f32.mrb[0].mxu0
        %3347 = vmatprep.mubr.bf16.mxu0 0
        %3348 = vmatmul.mubr.bf16.gmra.mrb[0].mxu0 %v3238
        %v3349 = vpop.f32.mrb[0].mxu0
        %v3350 = vadd.f32 0.0, %v3349
        %v3351 = vpop.f32.mrb[0].mxu0
        %v3352 = vpop.f32.mrb[0].mxu0
        %v3353 = vadd.f32 0.0, %v3352
        %v3354 = vpop.f32.mrb[0].mxu0
        %3355 = vmatprep.mubr.bf16.mxu0 0
        %3356 = vmatmul.mubr.bf16.gmra.mrb[0].mxu0 %v3241
        %v3357 = vpop.f32.mrb[0].mxu0
        %v3358 = vadd.f32 0.0, %v3357
        %v3359 = vpop.f32.mrb[0].mxu0
        %v3360 = vpop.f32.mrb[0].mxu0
        %v3361 = vadd.f32 0.0, %v3360
        %v3362 = vpop.f32.mrb[0].mxu0
        %3363 = vmatprep.mubr.bf16.mxu0 0
        %3364 = vmatmul.mubr.bf16.gmra.mrb[0].mxu0 %v3244
        %v3365 = vpop.f32.mrb[0].mxu0
        %v3366 = vadd.f32 0.0, %v3365
        %v3367 = vpop.f32.mrb[0].mxu0
        %v3368 = vpop.f32.mrb[0].mxu0
        %v3369 = vadd.f32 0.0, %v3368
        %v3370 = vpop.f32.mrb[0].mxu0
        %3371 = vmatprep.mubr.bf16.mxu0 0
        %3372 = vmatmul.mubr.bf16.gmra.mrb[0].mxu0 %v3247
        %v3373 = vpop.f32.mrb[0].mxu0
        %v3374 = vadd.f32 0.0, %v3373
        %v3375 = vpop.f32.mrb[0].mxu0
        %v3376 = vpop.f32.mrb[0].mxu0
        %v3377 = vadd.f32 0.0, %v3376
        %v3378 = vpop.f32.mrb[0].mxu0
        %3379 = vmatprep.mubr.bf16.mxu0 0
        %3380 = vmatmul.mubr.bf16.gmra.mrb[0].mxu0 %v3250
        %v3381 = vpop.f32.mrb[0].mxu0
        %v3382 = vadd.f32 0.0, %v3381
        %v3383 = vpop.f32.mrb[0].mxu0
        %v3384 = vpop.f32.mrb[0].mxu0
        %v3385 = vadd.f32 0.0, %v3384
        %v3386 = vpop.f32.mrb[0].mxu0
        %3387 = vmatprep.mubr.bf16.mxu0 0
        %3388 = vmatmul.mubr.bf16.gmra.mrb[0].mxu0 %v3253
        %v3389 = vpop.f32.mrb[0].mxu0
        %v3390 = vadd.f32 0.0, %v3389
        %v3391 = vpop.f32.mrb[0].mxu0
        %v3392 = vpop.f32.mrb[0].mxu0
        %v3393 = vadd.f32 0.0, %v3392
        %v3394 = vpop.f32.mrb[0].mxu0
        %3395 = vmatprep.mubr.bf16.mxu0 0
        %3396 = vmatmul.mubr.bf16.gmra.mrb[0].mxu0 %v3256
        %v3397 = vpop.f32.mrb[0].mxu0
        %v3398 = vadd.f32 0.0, %v3397
        %v3399 = vpop.f32.mrb[0].mxu0
        %v3400 = vpop.f32.mrb[0].mxu0
        %v3401 = vadd.f32 0.0, %v3400
        %v3402 = vpop.f32.mrb[0].mxu0
        %3403 = vmatprep.mubr.bf16.mxu0 0
        %3404 = vmatmul.mubr.bf16.gmra.mrb[0].mxu0 %v3259
        %v3405 = vpop.f32.mrb[0].mxu0
        %v3406 = vadd.f32 0.0, %v3405
        %v3407 = vpop.f32.mrb[0].mxu0
        %v3408 = vpop.f32.mrb[0].mxu0
        %v3409 = vadd.f32 0.0, %v3408
        %v3410 = vpop.f32.mrb[0].mxu0
        %3411 = vmatprep.mubr.bf16.mxu0 0
        %3412 = vmatmul.mubr.bf16.gmra.mrb[0].mxu0 %v3262
        %v3413 = vpop.f32.mrb[0].mxu0
        %v3414 = vadd.f32 0.0, %v3413
        %v3415 = vpop.f32.mrb[0].mxu0
        %v3416 = vpop.f32.mrb[0].mxu0
        %v3417 = vadd.f32 0.0, %v3416
        %v3418 = vpop.f32.mrb[0].mxu0
        %3419 = vmatprep.mubr.bf16.mxu0 0
        %3420 = vmatmul.mubr.bf16.gmra.mrb[0].mxu0 %v3265
        %v3421 = vpop.f32.mrb[0].mxu0
        %v3422 = vadd.f32 0.0, %v3421
        %v3423 = vpop.f32.mrb[0].mxu0
        %v3424 = vpop.f32.mrb[0].mxu0
        %v3425 = vadd.f32 0.0, %v3424
        %v3426 = vpop.f32.mrb[0].mxu0
        %3427 = vdwg.mxu0
        %v3428 = vadd.f32 %v2875, %v3302
        %v3429 = vadd.f32 %v2876, %v3305
        %v3430 = vadd.f32 %v2877, %v3310
        %v3431 = vadd.f32 %v2878, %v3313
        %v3432 = vadd.f32 %v2879, %v3318
        %v3433 = vadd.f32 %v2880, %v3321
        %v3434 = vadd.f32 %v2881, %v3326
        %v3435 = vadd.f32 %v2882, %v3329
        %v3436 = vadd.f32 %v2883, %v3334
        %v3437 = vadd.f32 %v2884, %v3337
        %v3438 = vadd.f32 %v2885, %v3342
        %v3439 = vadd.f32 %v2886, %v3345
        %v3440 = vadd.f32 %v2887, %v3350
        %v3441 = vadd.f32 %v2888, %v3353
        %v3442 = vadd.f32 %v2889, %v3358
        %v3443 = vadd.f32 %v2890, %v3361
        %v3444 = vadd.f32 %v2891, %v3366
        %v3445 = vadd.f32 %v2892, %v3369
        %v3446 = vadd.f32 %v2893, %v3374
        %v3447 = vadd.f32 %v2894, %v3377
        %v3448 = vadd.f32 %v2895, %v3382
        %v3449 = vadd.f32 %v2896, %v3385
        %v3450 = vadd.f32 %v2897, %v3390
        %v3451 = vadd.f32 %v2898, %v3393
        %v3452 = vadd.f32 %v2899, %v3398
        %v3453 = vadd.f32 %v2900, %v3401
        %v3454 = vadd.f32 %v2901, %v3406
        %v3455 = vadd.f32 %v2902, %v3409
        %v3456 = vadd.f32 %v2903, %v3414
        %v3457 = vadd.f32 %v2904, %v3417
        %v3458 = vadd.f32 %v2905, %v3422
        %v3459 = vadd.f32 %v2906, %v3425
        %v3460 = vld [vmem:[%s9] sm:$0x1]
        %v3462 = vlaneseq
        %v3463 = vshrl.u32 %v3462, 7
        %v3464 = vsub.s32 0, %v3463
        %v3465 = vrot.slane %v3460, %v3464
        %v3467 = vadd.f32 %v3428, %v3465
        %v3468 = vadd.f32 %v3429, %v3465
        %v3469 = vadd.f32 %v3430, %v3465
        %v3470 = vadd.f32 %v3431, %v3465
        %v3471 = vadd.f32 %v3432, %v3465
        %v3472 = vadd.f32 %v3433, %v3465
        %v3473 = vadd.f32 %v3434, %v3465
        %v3474 = vadd.f32 %v3435, %v3465
        %v3475 = vadd.f32 %v3436, %v3465
        %v3476 = vadd.f32 %v3437, %v3465
        %v3477 = vadd.f32 %v3438, %v3465
        %v3478 = vadd.f32 %v3439, %v3465
        %v3479 = vadd.f32 %v3440, %v3465
        %v3480 = vadd.f32 %v3441, %v3465
        %v3481 = vadd.f32 %v3442, %v3465
        %v3482 = vadd.f32 %v3443, %v3465
        %v3483 = vadd.f32 %v3444, %v3465
        %v3484 = vadd.f32 %v3445, %v3465
        %v3485 = vadd.f32 %v3446, %v3465
        %v3486 = vadd.f32 %v3447, %v3465
        %v3487 = vadd.f32 %v3448, %v3465
        %v3488 = vadd.f32 %v3449, %v3465
        %v3489 = vadd.f32 %v3450, %v3465
        %v3490 = vadd.f32 %v3451, %v3465
        %v3491 = vadd.f32 %v3452, %v3465
        %v3492 = vadd.f32 %v3453, %v3465
        %v3493 = vadd.f32 %v3454, %v3465
        %v3494 = vadd.f32 %v3455, %v3465
        %v3495 = vadd.f32 %v3456, %v3465
        %v3496 = vadd.f32 %v3457, %v3465
        %v3497 = vadd.f32 %v3458, %v3465
        %v3498 = vadd.f32 %v3459, %v3465
        %3499 = vst.msk [vmem:[%s367] sm:$0xff] %vm2058, %v3467
        %3500 = vst.msk [vmem:[%s367 + $0x8] sm:$0xff] %vm2058, %v3468
        %3501 = vst.msk [vmem:[%s367 + $0x10] sm:$0xff] %vm2058, %v3469
        %3502 = vst.msk [vmem:[%s367 + $0x18] sm:$0xff] %vm2058, %v3470
        %3503 = vst.msk [vmem:[%s367 + $0x20] sm:$0xff] %vm2058, %v3471
        %3504 = vst.msk [vmem:[%s367 + $0x28] sm:$0xff] %vm2058, %v3472
        %3505 = vst.msk [vmem:[%s367 + $0x30] sm:$0xff] %vm2058, %v3473
        %3506 = vst.msk [vmem:[%s367 + $0x38] sm:$0xff] %vm2058, %v3474
        %3507 = vst.msk [vmem:[%s367 + $0x40] sm:$0xff] %vm2058, %v3475
        %3508 = vst.msk [vmem:[%s367 + $0x48] sm:$0xff] %vm2058, %v3476
        %3509 = vst.msk [vmem:[%s367 + $0x50] sm:$0xff] %vm2058, %v3477
        %3510 = vst.msk [vmem:[%s367 + $0x58] sm:$0xff] %vm2058, %v3478
        %3511 = vst.msk [vmem:[%s367 + $0x60] sm:$0xff] %vm2058, %v3479
        %3512 = vst.msk [vmem:[%s367 + $0x68] sm:$0xff] %vm2058, %v3480
        %3513 = vst.msk [vmem:[%s367 + $0x70] sm:$0xff] %vm2058, %v3481
        %3514 = vst.msk [vmem:[%s367 + $0x78] sm:$0xff] %vm2058, %v3482
        %3515 = vst.msk [vmem:[%s367 + $0x80] sm:$0xff] %vm2058, %v3483
        %3516 = vst.msk [vmem:[%s367 + $0x88] sm:$0xff] %vm2058, %v3484
        %3517 = vst.msk [vmem:[%s367 + $0x90] sm:$0xff] %vm2058, %v3485
        %3518 = vst.msk [vmem:[%s367 + $0x98] sm:$0xff] %vm2058, %v3486
        %3519 = vst.msk [vmem:[%s367 + $0xa0] sm:$0xff] %vm2058, %v3487
        %3520 = vst.msk [vmem:[%s367 + $0xa8] sm:$0xff] %vm2058, %v3488
        %3521 = vst.msk [vmem:[%s367 + $0xb0] sm:$0xff] %vm2058, %v3489
        %3522 = vst.msk [vmem:[%s367 + $0xb8] sm:$0xff] %vm2058, %v3490
        %3523 = vst.msk [vmem:[%s367 + $0xc0] sm:$0xff] %vm2058, %v3491
        %3524 = vst.msk [vmem:[%s367 + $0xc8] sm:$0xff] %vm2058, %v3492
        %3525 = vst.msk [vmem:[%s367 + $0xd0] sm:$0xff] %vm2058, %v3493
        %3526 = vst.msk [vmem:[%s367 + $0xd8] sm:$0xff] %vm2058, %v3494
        %3527 = vst.msk [vmem:[%s367 + $0xe0] sm:$0xff] %vm2058, %v3495
        %3528 = vst.msk [vmem:[%s367 + $0xe8] sm:$0xff] %vm2058, %v3496
        %3529 = vst.msk [vmem:[%s367 + $0xf0] sm:$0xff] %vm2058, %v3497
        %3530 = vst.msk [vmem:[%s367 + $0xf8] sm:$0xff] %vm2058, %v3498
        %s3531 = sand.u32 %s252, 1
        %s3532 = scalar_lea.sflag [#allocation3], %s3531
        %s3533 = sand.u32 %s252, 1
        %s3534 = smul.addr %s3533, 256
        %s3535 = scalar_lea.vmem [#allocation2], %s3534
        // Predicated region
        $region61: #{aggregation_mul_forward.3} parent=59 // pred_check
          %p3536 = pneg %p262
        $region62: #{aggregation_mul_forward.3} parent=59 // pred_check_branch
          %3538 = sbr.rel (%p3536) target = $region64
        $region63: #{aggregation_mul_forward.3} parent=59 // pred_region
          %s3540 = ssub.s32 4096, 4096
          %3541 = vsyncadd %s3532, %s3540
          %s3542 = smul.addr %s24, 32
          %s3543 = smul.addr %s3542, 128
          %s3544 = scalar_lea.hbm %s10, %s3543
          %s3545 = sshll.u32 %s3535, 4
          %s3546 = int_to_ptr.vmem [resolvable:$true] %s3545
          %3551 = dma.vmem_to_hbm [thread:$0]  %s3546, 4096, %s3544, %s3532, 128, 128, 8
        $region64: #{aggregation_mul_forward.3} parent=59 // pred_fallthru
          _
      $region60: #{aggregation_mul_forward.3} parent=5 // pred_fallthru
        _
      %p3552 = scmp.le.s32.totalorder 2, %s19
      // Predicated region
      $region65: #{aggregation_mul_forward.3} parent=5 // pred_check
        %p3553 = pneg %p3552
      $region66: #{aggregation_mul_forward.3} parent=5 // pred_check_branch
        %3555 = sbr.rel (%p3553) target = $region68
      $region67: #{aggregation_mul_forward.3} parent=5 // pred_region
        %s3556 = ssub.s32 %s19, 2
        // Predicated region
        $region69: #{aggregation_mul_forward.3} parent=67 // pred_check
          %p3557 = pneg %p268
        $region70: #{aggregation_mul_forward.3} parent=67 // pred_check_branch
          %3559 = sbr.rel (%p3557) target = $region72
        $region71: #{aggregation_mul_forward.3} parent=67 // pred_region
          %s3560 = sand.u32 %s253, 1
          %s3561 = scalar_lea.sflag [#allocation3], %s3560
          %s3562 = sand.u32 %s253, 1
          %s3563 = smul.addr %s3562, 256
          %s3564 = scalar_lea.vmem [#allocation2], %s3563
          %3565 = dma.done %s3561, 4096
        $region72: #{aggregation_mul_forward.3} parent=67 // pred_fallthru
          _
      $region68: #{aggregation_mul_forward.3} parent=5 // pred_fallthru
        _
    $region6: #{aggregation_mul_forward.3} parent=1 // loop_footer
      %s23 = sadd.s32 1, %s19
    $region7: #{aggregation_mul_forward.3} parent=1 // loop_footer_branch
      %18 = sbr.rel target = $region3
    $region8: #{aggregation_mul_forward.3} parent=1 // loop_exit
      _
    %3566 = vsyncpa [#allocation3], 1
    %s3567 = scalar_lea.sflag [#allocation3], 1
    %3568 = vsyncpa %s3567, 1

</llo_original>
